<compile_context>
chip_gen: v5e
topology: v5e:2x2
jax: 0.10.0
libtpu: 0.0.40
codegen_flags: <defaults>
</compile_context>

<pallas_src>
import functools

import numpy as np
import jax
import jax.numpy as jnp
from jax.experimental import pallas as pl
from jax.experimental.pallas import tpu as pltpu


def _round_up(x, m):
    return ((x + m - 1) // m) * m


_VMEM_CAP_CACHE = None


def _vmem_capacity_bytes():
    """Physical VMEM size for generation-aware tile / limit sizing."""
    global _VMEM_CAP_CACHE
    if _VMEM_CAP_CACHE is None:
        cap = 64 << 20                      # conservative default (v7x floor)
        try:
            cap = int(pltpu.get_tpu_info().vmem_capacity_bytes)
        except Exception:
            pass
        _VMEM_CAP_CACHE = cap
    return _VMEM_CAP_CACHE


# ----------------------------------------------------------------------------
# Pallas kernels
# ----------------------------------------------------------------------------
def _mlp_layer_kernel(*refs, apply_bn, use_mask):
    """[folded BN (scale/shift) + ReLU] -> 1x1 conv (MXU matmul) -> packed stats.

    Layout: activations are (C, RT) with the row axis (tile_points * nsample)
    on lanes; within a tile, column = s * tile_points + p (neighbor-major).
    """
    idx = 0
    a_ref = refs[idx]; idx += 1
    if apply_bn:
        scale_ref = refs[idx]
        shift_ref = refs[idx + 1]
        idx += 2
    if use_mask:
        mask_ref = refs[idx]; idx += 1
    w_ref = refs[idx]
    y_ref, stats_ref = refs[idx + 1], refs[idx + 2]

    a = a_ref[...]                                          # (Ci, RT) bf16
    if apply_bn:
        # Previous layer's BN folded to one multiply-add, then ReLU.
        af = a.astype(jnp.float32) * scale_ref[...] + shift_ref[...]
        a = jnp.maximum(af, 0.0).astype(jnp.bfloat16)

    # 1x1 Conv1d == matmul: bf16 inputs, f32 accumulation on the MXU.
    # (conv bias intentionally omitted — cancelled by the BN mean subtraction)
    y = jnp.dot(w_ref[...], a, preferred_element_type=jnp.float32)  # (Co, RT)

    if use_mask:
        # Zero rows belonging to padded points (one f32 multiply; replaces the
        # old iota/modulo mask) so they neither pollute batch statistics nor
        # leak into later layers.
        y = y * mask_ref[...]

    y_ref[...] = y.astype(y_ref.dtype)
    # Packed per-tile partial statistics: [sum ; sum-of-squares] along sublanes
    # -> single small output block per grid step.
    s1 = jnp.sum(y, axis=-1, keepdims=True)                 # (Co, 1)
    s2 = jnp.sum(y * y, axis=-1, keepdims=True)             # (Co, 1)
    stats_ref[0] = jnp.concatenate([s1, s2], axis=0)        # (2*Co, 1)


def _bn_relu_maxpool_kernel(y_ref, scale_ref, shift_ref, o_ref, *,
                            nsample, tile_points):
    """Final folded BN + ReLU + max over the nsample (neighbor) axis."""
    a = y_ref[...].astype(jnp.float32) * scale_ref[...] + shift_ref[...]
    a = jnp.maximum(a, 0.0)
    # Columns are ordered s*tile_points + p and tile_points is a multiple of
    # 128, so every slab below is lane-tile aligned (no relayout copies).
    m = a[:, 0:tile_points]
    for s in range(1, nsample):
        m = jnp.maximum(m, a[:, s * tile_points:(s + 1) * tile_points])
    o_ref[0] = m                                            # (C, TM), TM >= 128


# ----------------------------------------------------------------------------
# Wrapper: chained pallas_calls implementing conv->BN->ReLU (xL) -> max pool.
# Entire chain (layout plumbing included) is jitted so it fuses into one pass.
# ----------------------------------------------------------------------------
@functools.partial(jax.jit, static_argnames=("eps", "tile_points"))
def set_abstraction_mlp(new_points, weights, gammas, betas, eps=1e-5,
                        tile_points=512):
    """new_points: (M, nsample, Cin) f32 -> (M, Cout_last) f32.

    weights[l]: (Cout_l, Cin_l)  (== torch Conv1d weight[:, :, 0] layout).
    """
    M, nsample, cin = new_points.shape
    num_layers = len(weights)
    cout_last = weights[-1].shape[0]

    cin_pad = _round_up(cin, 16)              # bf16-friendly sublane padding
    c_pads = [cin_pad] + [_round_up(w.shape[0], 16) for w in weights]

    # --- generation-aware VMEM budgets -------------------------------------
    cap = _vmem_capacity_bytes()
    vmem_clamp = int(min(96 << 20, max(16 << 20, cap // 2)))
    budget = int(cap * 0.35)                  # double-buffered working set cap

    # --- tile sizing: tm multiple of 128 => rt and all slices lane-dense ----
    align = 128

    def _step_bytes(tm_):
        rt_ = tm_ * nsample
        worst = 0
        for li in range(num_layers):
            worst = max(worst,
                        2 * rt_ * (c_pads[li] + c_pads[li + 1]) * 2 + 2 * rt_ * 4)
        worst = max(worst, 2 * (rt_ * c_pads[-1] * 2 + tm_ * c_pads[-1] * 4))
        return worst

    m_pad_min = _round_up(M, align)
    tm = max(align, (min(tile_points, m_pad_min) // align) * align)
    while tm > align and _step_bytes(tm) > budget:
        tm -= align
    # v7x has 2 TensorCores sharing the single "parallel" grid axis: prefer a
    # grid of at least 2 tiles when M allows it.
    if m_pad_min >= 2 * align and _round_up(M, tm) // tm < 2:
        tm = max(align, _round_up((M + 1) // 2, align))
    m_pad = _round_up(M, tm)
    g = m_pad // tm
    rt = tm * nsample
    n_rows = float(M * nsample)               # BN batch-statistic count

    # --- input prep: pad, channels-first, neighbor-major tiles (fuses in jit)
    x = jnp.pad(new_points, ((0, m_pad - M), (0, 0), (0, cin_pad - cin)))
    x = x.reshape(g, tm, nsample, cin_pad).transpose(3, 0, 2, 1)
    a = x.reshape(cin_pad, g * rt).astype(jnp.bfloat16)

    # --- padded-point mask (only when padding exists) -----------------------
    use_mask = m_pad != M
    if use_mask:
        valid = (jnp.arange(m_pad) < M).astype(jnp.float32)           # (m_pad,)
        mask = jnp.broadcast_to(valid.reshape(g, 1, tm),
                                (g, nsample, tm)).reshape(1, g * rt)
    else:
        mask = None

    sems = ("parallel",)
    scale = shift = None
    c_prev_pad = cin_pad

    for li in range(num_layers):
        c_out, c_in = weights[li].shape
        c_out_pad = c_pads[li + 1]
        w = jnp.pad(weights[li], ((0, c_out_pad - c_out),
                                  (0, c_prev_pad - c_in))).astype(jnp.bfloat16)

        apply_bn = li > 0
        kernel = functools.partial(_mlp_layer_kernel, apply_bn=apply_bn,
                                   use_mask=use_mask)

        in_specs = [pl.BlockSpec((c_prev_pad, rt), lambda i: (0, i))]
        operands = [a]
        if apply_bn:
            in_specs += [pl.BlockSpec((c_prev_pad, 1), lambda i: (0, 0))] * 2
            operands += [scale, shift]
        if use_mask:
            in_specs.append(pl.BlockSpec((1, rt), lambda i: (0, i)))
            operands.append(mask)
        in_specs.append(pl.BlockSpec((c_out_pad, c_prev_pad), lambda i: (0, 0)))
        operands.append(w)

        out_shape = (jax.ShapeDtypeStruct((c_out_pad, g * rt), jnp.bfloat16),
                     jax.ShapeDtypeStruct((g, 2 * c_out_pad, 1), jnp.float32))
        out_specs = (pl.BlockSpec((c_out_pad, rt), lambda i: (0, i)),
                     pl.BlockSpec((1, 2 * c_out_pad, 1), lambda i: (i, 0, 0)))

        block_bytes = (2 * rt * (c_prev_pad + c_out_pad) * 2 +
                       (2 * rt * 4 if use_mask else 0))
        vmem_limit = int(min(max(2 * block_bytes + (4 << 20), 8 << 20), vmem_clamp))
        flops = int(2 * c_out_pad * c_prev_pad * g * rt)
        bytes_accessed = int(a.size * 2 + w.size * 2 + c_out_pad * g * rt * 2 +
                             g * 2 * c_out_pad * 4 +
                             (g * rt * 4 if use_mask else 0))

        a, stats = pl.pallas_call(
            kernel,
            out_shape=out_shape,
            grid=(g,),
            in_specs=in_specs,
            out_specs=out_specs,
            compiler_params=pltpu.CompilerParams(
                dimension_semantics=sems, vmem_limit_bytes=vmem_limit),
            cost_estimate=pl.CostEstimate(flops=flops, transcendentals=0,
                                          bytes_accessed=bytes_accessed),
        )(*operands)

        # Tiny cross-tile stat combine (training-mode batch statistics, biased
        # variance == torch BatchNorm1d forward in training mode), then fold
        # the affine into scale/shift for the next kernel.
        # NOTE: single-pass E[x^2]-E[x]^2 in f32; clamped at 0 for safety.
        tot = jnp.sum(stats, axis=0)                                  # (2C, 1)
        mean = tot[:c_out_pad] / n_rows
        var = jnp.maximum(tot[c_out_pad:] / n_rows - mean * mean, 0.0)
        istd = jax.lax.rsqrt(var + eps)
        gam = jnp.pad(gammas[li], (0, c_out_pad - c_out)).reshape(c_out_pad, 1)
        bet = jnp.pad(betas[li], (0, c_out_pad - c_out)).reshape(c_out_pad, 1)
        scale = gam * istd
        shift = bet - mean * scale
        c_prev_pad = c_out_pad

    # --- final folded BN + ReLU + max over nsample ---------------------------
    kernel = functools.partial(_bn_relu_maxpool_kernel, nsample=nsample,
                               tile_points=tm)
    block_bytes = 2 * (rt * c_prev_pad * 2 + tm * c_prev_pad * 4)
    vmem_limit = int(min(max(2 * block_bytes + (4 << 20), 8 << 20), vmem_clamp))
    out3 = pl.pallas_call(
        kernel,
        out_shape=jax.ShapeDtypeStruct((g, c_prev_pad, tm), jnp.float32),
        grid=(g,),
        in_specs=[pl.BlockSpec((c_prev_pad, rt), lambda i: (0, i)),
                  pl.BlockSpec((c_prev_pad, 1), lambda i: (0, 0)),
                  pl.BlockSpec((c_prev_pad, 1), lambda i: (0, 0))],
        out_specs=pl.BlockSpec((1, c_prev_pad, tm), lambda i: (i, 0, 0)),
        compiler_params=pltpu.CompilerParams(
            dimension_semantics=sems, vmem_limit_bytes=vmem_limit),
    )(a, scale, shift)

    # layout plumbing back to (M, Cout_last); fuses under jit.
    out = out3.transpose(0, 2, 1).reshape(m_pad, c_prev_pad)
    return out[:M, :cout_last]


# ----------------------------------------------------------------------------
# Glue: sample_and_group (FPS + kNN + gather) in plain JAX / numpy.
# ----------------------------------------------------------------------------
def _fps_numpy(xyz_seg, m):
    """Furthest point sampling on one batch segment, seeded at index 0."""
    xyz_seg = np.asarray(xyz_seg)
    sel = np.zeros((m,), dtype=np.int32)
    dist = np.sum((xyz_seg - xyz_seg[0]) ** 2, axis=-1)
    for i in range(1, m):
        nxt = int(np.argmax(dist))
        sel[i] = nxt
        dist = np.minimum(dist, np.sum((xyz_seg - xyz_seg[nxt]) ** 2, axis=-1))
    return sel


def sample_and_group(stride, nsample, xyz, points, offset, num_sector=1):
    # TODO(synk): sectorized_fps (num_sector > 1) has no clean equivalent here;
    # plain per-segment FPS is used regardless of num_sector.
    offset_np = np.asarray(offset, dtype=np.int64)
    starts = np.concatenate([[0], offset_np[:-1]])

    if stride > 1:
        fps_idx_list, new_offset, total = [], [], 0
        xyz_np = np.asarray(xyz)
        for s, e in zip(starts, offset_np):
            n = int(e - s)
            m = n // stride
            fps_idx_list.append(_fps_numpy(xyz_np[s:e], m) + s)
            total += m
            new_offset.append(total)
        fps_idx = jnp.asarray(np.concatenate(fps_idx_list), dtype=jnp.int32)
        new_xyz = xyz[fps_idx]
        new_offset_np = np.asarray(new_offset, dtype=np.int64)
    else:
        new_xyz = xyz
        new_offset_np = offset_np

    N, M = xyz.shape[0], new_xyz.shape[0]

    # kNN restricted to the matching batch segment (global indices).
    # TODO(synk): segments with fewer than nsample points would still pick
    # cross-segment neighbors through the inf-masked top_k.
    seg_src = np.searchsorted(offset_np, np.arange(N), side="right")
    seg_q = np.searchsorted(new_offset_np, np.arange(M), side="right")
    d2 = jnp.sum((new_xyz[:, None, :] - xyz[None, :, :]) ** 2, axis=-1)  # (M, N)
    mask = jnp.asarray(seg_q)[:, None] != jnp.asarray(seg_src)[None, :]
    d2 = jnp.where(mask, jnp.inf, d2)
    _, group_idx = jax.lax.top_k(-d2, nsample)                 # ascending dist

    group_xyz = xyz[group_idx.reshape(-1)].reshape(M, nsample, 3)
    group_xyz_norm = group_xyz - new_xyz[:, None, :]

    if points is not None:
        C = points.shape[1]
        group_points = points[group_idx.reshape(-1)].reshape(M, nsample, C)
        new_points = jnp.concatenate([group_xyz_norm, group_points], axis=-1)
    else:
        new_points = group_xyz_norm

    return new_xyz, new_points, jnp.asarray(new_offset_np, dtype=jnp.int32)


# ----------------------------------------------------------------------------
# Module wrapper
# ----------------------------------------------------------------------------
class PointNetSetAbstraction:
    def __init__(self, stride, nsample, in_channel, mlp, num_sector=1,
                 key=None, tile_points=512):
        self.stride = stride
        self.nsample = nsample
        self.num_sector = num_sector
        self.tile_points = tile_points
        key = jax.random.PRNGKey(0) if key is None else key

        # NOTE: Conv1d biases are omitted on purpose — every conv is followed
        # by training-mode BatchNorm whose mean subtraction cancels the bias
        # exactly, so the forward output is unchanged.
        self.weights, self.gammas, self.betas = [], [], []
        last = in_channel
        for out_c in mlp:
            key, kw = jax.random.split(key)
            bound = 1.0 / np.sqrt(last)      # torch Conv1d default init scale
            self.weights.append(
                jax.random.uniform(kw, (out_c, last), jnp.float32, -bound, bound))
            self.gammas.append(jnp.ones((out_c,), jnp.float32))   # BN gamma
            self.betas.append(jnp.zeros((out_c,), jnp.float32))   # BN beta
            last = out_c

    def __call__(self, pos_feat_off):
        xyz, points, offset = pos_feat_off
        new_xyz, new_points, new_offset = sample_and_group(
            self.stride, self.nsample, xyz, points, offset,
            num_sector=self.num_sector)
        new_feat = set_abstraction_mlp(
            new_points, self.weights, self.gammas, self.betas,
            tile_points=self.tile_points)
        return [new_xyz, new_feat, new_offset]


# ----------------------------------------------------------------------------
# Demo
# ----------------------------------------------------------------------------
if __name__ == "__main__":
    key = jax.random.PRNGKey(0)
    k_xyz, k_feat = jax.random.split(key)

    N, C_feat = 400, 6                       # 400 points, 6 feature channels
    xyz = jax.random.normal(k_xyz, (N, 3), jnp.float32)
    points = jax.random.normal(k_feat, (N, C_feat), jnp.float32)
    offset = jnp.asarray([208, 400], dtype=jnp.int32)   # 2 segments: 208 + 192

    sa = PointNetSetAbstraction(stride=4, nsample=16,
                                in_channel=3 + C_feat, mlp=[32, 64])

    new_xyz, new_feat, new_offset = sa((xyz, points, offset))
    jax.block_until_ready(new_feat)

    M = 208 // 4 + 192 // 4                  # 52 + 48 = 100 sampled points
    assert new_xyz.shape == (M, 3)
    assert new_feat.shape == (M, 64)
    assert new_feat.dtype == jnp.float32
    assert bool(jnp.all(jnp.isfinite(new_feat)))

    print("KERNEL_OK")
</pallas_src>

<mosaic_0001>
module attributes {stable_mosaic.version = 11 : i64} {
  func.func @_mlp_layer_kernel(%arg0: i32, %arg1: memref<16x2048xbf16, #tpu.memory_space<vmem>>, %arg2: memref<1x2048xf32, #tpu.memory_space<vmem>>, %arg3: memref<32x16xbf16, #tpu.memory_space<vmem>>, %arg4: memref<32x2048xbf16, #tpu.memory_space<vmem>>, %arg5: memref<1x64x1xf32, #tpu.memory_space<vmem>>) attributes {dimension_semantics = [#tpu.dimension_semantics<parallel>], iteration_bounds = array<i64: 1>, scalar_prefetch = 0 : i64, scratch_operands = 0 : i64, tpu.core_type = #tpu.core_type<tc>, window_params = [{transform_indices = @transform_0, window_bounds = array<i64: 16, 2048>}, {transform_indices = @transform_1, window_bounds = array<i64: 1, 2048>}, {pipeline_mode = #tpu.pipeline_mode<synchronous>, transform_indices = @transform_2, window_bounds = array<i64: 32, 16>}, {transform_indices = @transform_3, window_bounds = array<i64: 32, 2048>}, {transform_indices = @transform_4, window_bounds = array<i64: 1, 64, 1>}]} {
    %c0 = arith.constant 0 : index
    %c0_0 = arith.constant 0 : index
    %0 = vector.load %arg1[%c0, %c0_0] : memref<16x2048xbf16, #tpu.memory_space<vmem>>, vector<16x2048xbf16>
    %c0_1 = arith.constant 0 : index
    %c0_2 = arith.constant 0 : index
    %1 = vector.load %arg3[%c0_1, %c0_2] : memref<32x16xbf16, #tpu.memory_space<vmem>>, vector<32x16xbf16>
    %cst = arith.constant dense<0.000000e+00> : vector<32x2048xf32>
    %2 = tpu.matmul %1, %0, %cst {dimension_numbers = #tpu.dot_dimension_numbers<[1], [0], [0], [1], [0, 0, 1, 1], [], []>} : vector<32x16xbf16>, vector<16x2048xbf16>, vector<32x2048xf32> -> vector<32x2048xf32>
    %c0_3 = arith.constant 0 : index
    %c0_4 = arith.constant 0 : index
    %3 = vector.load %arg2[%c0_3, %c0_4] : memref<1x2048xf32, #tpu.memory_space<vmem>>, vector<1x2048xf32>
    %4 = vector.broadcast %3 : vector<1x2048xf32> to vector<32x2048xf32>
    %5 = arith.mulf %2, %4 : vector<32x2048xf32>
    %6 = arith.truncf %5 : vector<32x2048xf32> to vector<32x2048xbf16>
    %c0_5 = arith.constant 0 : index
    %c0_6 = arith.constant 0 : index
    %7 = vector.load %arg4[%c0_5, %c0_6] : memref<32x2048xbf16, #tpu.memory_space<vmem>>, vector<32x2048xbf16>
    tpu.vector_store %arg4[%c0_5, %c0_6], %6 {strides = array<i32>} : memref<32x2048xbf16, #tpu.memory_space<vmem>>, vector<32x2048xbf16>,
    %cst_7 = arith.constant dense<0.000000e+00> : vector<32xf32>
    %8 = vector.multi_reduction <add>, %5, %cst_7 [1] : vector<32x2048xf32> to vector<32xf32>
    %9 = vector.shape_cast %8 : vector<32xf32> to vector<32x1xf32>
    %10 = arith.mulf %5, %5 : vector<32x2048xf32>
    %cst_8 = arith.constant dense<0.000000e+00> : vector<32xf32>
    %11 = vector.multi_reduction <add>, %10, %cst_8 [1] : vector<32x2048xf32> to vector<32xf32>
    %12 = vector.shape_cast %11 : vector<32xf32> to vector<32x1xf32>
    %13 = tpu.concatenate %9, %12 in 0 : vector<32x1xf32>, vector<32x1xf32> -> vector<64x1xf32>
    %c0_9 = arith.constant 0 : index
    %c0_10 = arith.constant 0 : index
    %c0_11 = arith.constant 0 : index
    %14 = vector.load %arg5[%c0_9, %c0_10, %c0_11] : memref<1x64x1xf32, #tpu.memory_space<vmem>>, vector<1x64x1xf32>
    %15 = vector.shape_cast %14 : vector<1x64x1xf32> to vector<64x1xf32>
    %16 = vector.shape_cast %13 : vector<64x1xf32> to vector<1x64x1xf32>
    tpu.vector_store %arg5[%c0_9, %c0_10, %c0_11], %16 {strides = array<i32>} : memref<1x64x1xf32, #tpu.memory_space<vmem>>, vector<1x64x1xf32>,
    return
  }
  func.func @transform_0(%arg0: i32) -> (i32, i32) {
    %c0_i32 = arith.constant 0 : i32
    %c0_i32_0 = arith.constant 0 : i32
    return %c0_i32, %arg0 : i32, i32
  }
  func.func @transform_1(%arg0: i32) -> (i32, i32) {
    %c0_i32 = arith.constant 0 : i32
    %c0_i32_0 = arith.constant 0 : i32
    return %c0_i32, %arg0 : i32, i32
  }
  func.func @transform_2(%arg0: i32) -> (i32, i32) {
    %c0_i32 = arith.constant 0 : i32
    %c0_i32_0 = arith.constant 0 : i32
    %c0_i32_1 = arith.constant 0 : i32
    return %c0_i32, %c0_i32_0 : i32, i32
  }
  func.func @transform_3(%arg0: i32) -> (i32, i32) {
    %c0_i32 = arith.constant 0 : i32
    %c0_i32_0 = arith.constant 0 : i32
    return %c0_i32, %arg0 : i32, i32
  }
  func.func @transform_4(%arg0: i32) -> (i32, i32, i32) {
    %c0_i32 = arith.constant 0 : i32
    %c0_i32_0 = arith.constant 0 : i32
    %c0_i32_1 = arith.constant 0 : i32
    return %arg0, %c0_i32, %c0_i32_0 : i32, i32, i32
  }
}

module attributes {stable_mosaic.version = 11 : i64} {
  func.func @_mlp_layer_kernel(%arg0: i32, %arg1: memref<32x2048xbf16, #tpu.memory_space<vmem>>, %arg2: memref<32x1xf32, #tpu.memory_space<vmem>>, %arg3: memref<32x1xf32, #tpu.memory_space<vmem>>, %arg4: memref<1x2048xf32, #tpu.memory_space<vmem>>, %arg5: memref<64x32xbf16, #tpu.memory_space<vmem>>, %arg6: memref<64x2048xbf16, #tpu.memory_space<vmem>>, %arg7: memref<1x128x1xf32, #tpu.memory_space<vmem>>) attributes {dimension_semantics = [#tpu.dimension_semantics<parallel>], iteration_bounds = array<i64: 1>, scalar_prefetch = 0 : i64, scratch_operands = 0 : i64, tpu.core_type = #tpu.core_type<tc>, window_params = [{transform_indices = @transform_0, window_bounds = array<i64: 32, 2048>}, {pipeline_mode = #tpu.pipeline_mode<synchronous>, transform_indices = @transform_1, window_bounds = array<i64: 32, 1>}, {pipeline_mode = #tpu.pipeline_mode<synchronous>, transform_indices = @transform_2, window_bounds = array<i64: 32, 1>}, {transform_indices = @transform_3, window_bounds = array<i64: 1, 2048>}, {pipeline_mode = #tpu.pipeline_mode<synchronous>, transform_indices = @transform_4, window_bounds = array<i64: 64, 32>}, {transform_indices = @transform_5, window_bounds = array<i64: 64, 2048>}, {transform_indices = @transform_6, window_bounds = array<i64: 1, 128, 1>}]} {
    %c0 = arith.constant 0 : index
    %c0_0 = arith.constant 0 : index
    %0 = vector.load %arg1[%c0, %c0_0] : memref<32x2048xbf16, #tpu.memory_space<vmem>>, vector<32x2048xbf16>
    %1 = arith.extf %0 : vector<32x2048xbf16> to vector<32x2048xf32>
    %c0_1 = arith.constant 0 : index
    %c0_2 = arith.constant 0 : index
    %2 = vector.load %arg2[%c0_1, %c0_2] : memref<32x1xf32, #tpu.memory_space<vmem>>, vector<32x1xf32>
    %3 = vector.broadcast %2 : vector<32x1xf32> to vector<32x2048xf32>
    %4 = arith.mulf %1, %3 : vector<32x2048xf32>
    %c0_3 = arith.constant 0 : index
    %c0_4 = arith.constant 0 : index
    %5 = vector.load %arg3[%c0_3, %c0_4] : memref<32x1xf32, #tpu.memory_space<vmem>>, vector<32x1xf32>
    %6 = vector.broadcast %5 : vector<32x1xf32> to vector<32x2048xf32>
    %7 = arith.addf %4, %6 : vector<32x2048xf32>
    %cst = arith.constant 0.000000e+00 : f32
    %8 = vector.broadcast %cst : f32 to vector<32x2048xf32>
    %9 = arith.maximumf %7, %8 : vector<32x2048xf32>
    %10 = arith.truncf %9 : vector<32x2048xf32> to vector<32x2048xbf16>
    %c0_5 = arith.constant 0 : index
    %c0_6 = arith.constant 0 : index
    %11 = vector.load %arg5[%c0_5, %c0_6] : memref<64x32xbf16, #tpu.memory_space<vmem>>, vector<64x32xbf16>
    %cst_7 = arith.constant dense<0.000000e+00> : vector<64x2048xf32>
    %12 = tpu.matmul %11, %10, %cst_7 {dimension_numbers = #tpu.dot_dimension_numbers<[1], [0], [0], [1], [0, 0, 1, 1], [], []>} : vector<64x32xbf16>, vector<32x2048xbf16>, vector<64x2048xf32> -> vector<64x2048xf32>
    %c0_8 = arith.constant 0 : index
    %c0_9 = arith.constant 0 : index
    %13 = vector.load %arg4[%c0_8, %c0_9] : memref<1x2048xf32, #tpu.memory_space<vmem>>, vector<1x2048xf32>
    %14 = vector.broadcast %13 : vector<1x2048xf32> to vector<64x2048xf32>
    %15 = arith.mulf %12, %14 : vector<64x2048xf32>
    %16 = arith.truncf %15 : vector<64x2048xf32> to vector<64x2048xbf16>
    %c0_10 = arith.constant 0 : index
    %c0_11 = arith.constant 0 : index
    %17 = vector.load %arg6[%c0_10, %c0_11] : memref<64x2048xbf16, #tpu.memory_space<vmem>>, vector<64x2048xbf16>
    tpu.vector_store %arg6[%c0_10, %c0_11], %16 {strides = array<i32>} : memref<64x2048xbf16, #tpu.memory_space<vmem>>, vector<64x2048xbf16>,
    %cst_12 = arith.constant dense<0.000000e+00> : vector<64xf32>
    %18 = vector.multi_reduction <add>, %15, %cst_12 [1] : vector<64x2048xf32> to vector<64xf32>
    %19 = vector.shape_cast %18 : vector<64xf32> to vector<64x1xf32>
    %20 = arith.mulf %15, %15 : vector<64x2048xf32>
    %cst_13 = arith.constant dense<0.000000e+00> : vector<64xf32>
    %21 = vector.multi_reduction <add>, %20, %cst_13 [1] : vector<64x2048xf32> to vector<64xf32>
    %22 = vector.shape_cast %21 : vector<64xf32> to vector<64x1xf32>
    %23 = tpu.concatenate %19, %22 in 0 : vector<64x1xf32>, vector<64x1xf32> -> vector<128x1xf32>
    %c0_14 = arith.constant 0 : index
    %c0_15 = arith.constant 0 : index
    %c0_16 = arith.constant 0 : index
    %24 = vector.load %arg7[%c0_14, %c0_15, %c0_16] : memref<1x128x1xf32, #tpu.memory_space<vmem>>, vector<1x128x1xf32>
    %25 = vector.shape_cast %24 : vector<1x128x1xf32> to vector<128x1xf32>
    %26 = vector.shape_cast %23 : vector<128x1xf32> to vector<1x128x1xf32>
    tpu.vector_store %arg7[%c0_14, %c0_15, %c0_16], %26 {strides = array<i32>} : memref<1x128x1xf32, #tpu.memory_space<vmem>>, vector<1x128x1xf32>,
    return
  }
  func.func @transform_0(%arg0: i32) -> (i32, i32) {
    %c0_i32 = arith.constant 0 : i32
    %c0_i32_0 = arith.constant 0 : i32
    return %c0_i32, %arg0 : i32, i32
  }
  func.func @transform_1(%arg0: i32) -> (i32, i32) {
    %c0_i32 = arith.constant 0 : i32
    %c0_i32_0 = arith.constant 0 : i32
    %c0_i32_1 = arith.constant 0 : i32
    return %c0_i32, %c0_i32_0 : i32, i32
  }
  func.func @transform_2(%arg0: i32) -> (i32, i32) {
    %c0_i32 = arith.constant 0 : i32
    %c0_i32_0 = arith.constant 0 : i32
    %c0_i32_1 = arith.constant 0 : i32
    return %c0_i32, %c0_i32_0 : i32, i32
  }
  func.func @transform_3(%arg0: i32) -> (i32, i32) {
    %c0_i32 = arith.constant 0 : i32
    %c0_i32_0 = arith.constant 0 : i32
    return %c0_i32, %arg0 : i32, i32
  }
  func.func @transform_4(%arg0: i32) -> (i32, i32) {
    %c0_i32 = arith.constant 0 : i32
    %c0_i32_0 = arith.constant 0 : i32
    %c0_i32_1 = arith.constant 0 : i32
    return %c0_i32, %c0_i32_0 : i32, i32
  }
  func.func @transform_5(%arg0: i32) -> (i32, i32) {
    %c0_i32 = arith.constant 0 : i32
    %c0_i32_0 = arith.constant 0 : i32
    return %c0_i32, %arg0 : i32, i32
  }
  func.func @transform_6(%arg0: i32) -> (i32, i32, i32) {
    %c0_i32 = arith.constant 0 : i32
    %c0_i32_0 = arith.constant 0 : i32
    %c0_i32_1 = arith.constant 0 : i32
    return %arg0, %c0_i32, %c0_i32_0 : i32, i32, i32
  }
}

module attributes {stable_mosaic.version = 11 : i64} {
  func.func @_bn_relu_maxpool_kernel(%arg0: i32, %arg1: memref<64x2048xbf16, #tpu.memory_space<vmem>>, %arg2: memref<64x1xf32, #tpu.memory_space<vmem>>, %arg3: memref<64x1xf32, #tpu.memory_space<vmem>>, %arg4: memref<1x64x128xf32, #tpu.memory_space<vmem>>) attributes {dimension_semantics = [#tpu.dimension_semantics<parallel>], iteration_bounds = array<i64: 1>, scalar_prefetch = 0 : i64, scratch_operands = 0 : i64, tpu.core_type = #tpu.core_type<tc>, window_params = [{transform_indices = @transform_0, window_bounds = array<i64: 64, 2048>}, {pipeline_mode = #tpu.pipeline_mode<synchronous>, transform_indices = @transform_1, window_bounds = array<i64: 64, 1>}, {pipeline_mode = #tpu.pipeline_mode<synchronous>, transform_indices = @transform_2, window_bounds = array<i64: 64, 1>}, {transform_indices = @transform_3, window_bounds = array<i64: 1, 64, 128>}]} {
    %c0 = arith.constant 0 : index
    %c0_0 = arith.constant 0 : index
    %0 = vector.load %arg1[%c0, %c0_0] : memref<64x2048xbf16, #tpu.memory_space<vmem>>, vector<64x2048xbf16>
    %1 = arith.extf %0 : vector<64x2048xbf16> to vector<64x2048xf32>
    %c0_1 = arith.constant 0 : index
    %c0_2 = arith.constant 0 : index
    %2 = vector.load %arg2[%c0_1, %c0_2] : memref<64x1xf32, #tpu.memory_space<vmem>>, vector<64x1xf32>
    %3 = vector.broadcast %2 : vector<64x1xf32> to vector<64x2048xf32>
    %4 = arith.mulf %1, %3 : vector<64x2048xf32>
    %c0_3 = arith.constant 0 : index
    %c0_4 = arith.constant 0 : index
    %5 = vector.load %arg3[%c0_3, %c0_4] : memref<64x1xf32, #tpu.memory_space<vmem>>, vector<64x1xf32>
    %6 = vector.broadcast %5 : vector<64x1xf32> to vector<64x2048xf32>
    %7 = arith.addf %4, %6 : vector<64x2048xf32>
    %cst = arith.constant 0.000000e+00 : f32
    %8 = vector.broadcast %cst : f32 to vector<64x2048xf32>
    %9 = arith.maximumf %7, %8 : vector<64x2048xf32>
    %10 = vector.extract_strided_slice %9 {offsets = [0, 0], sizes = [64, 128], strides = [1, 1]} : vector<64x2048xf32> to vector<64x128xf32>
    %11 = vector.extract_strided_slice %9 {offsets = [0, 128], sizes = [64, 128], strides = [1, 1]} : vector<64x2048xf32> to vector<64x128xf32>
    %12 = arith.maximumf %10, %11 : vector<64x128xf32>
    %13 = vector.extract_strided_slice %9 {offsets = [0, 256], sizes = [64, 128], strides = [1, 1]} : vector<64x2048xf32> to vector<64x128xf32>
    %14 = arith.maximumf %12, %13 : vector<64x128xf32>
    %15 = vector.extract_strided_slice %9 {offsets = [0, 384], sizes = [64, 128], strides = [1, 1]} : vector<64x2048xf32> to vector<64x128xf32>
    %16 = arith.maximumf %14, %15 : vector<64x128xf32>
    %17 = vector.extract_strided_slice %9 {offsets = [0, 512], sizes = [64, 128], strides = [1, 1]} : vector<64x2048xf32> to vector<64x128xf32>
    %18 = arith.maximumf %16, %17 : vector<64x128xf32>
    %19 = vector.extract_strided_slice %9 {offsets = [0, 640], sizes = [64, 128], strides = [1, 1]} : vector<64x2048xf32> to vector<64x128xf32>
    %20 = arith.maximumf %18, %19 : vector<64x128xf32>
    %21 = vector.extract_strided_slice %9 {offsets = [0, 768], sizes = [64, 128], strides = [1, 1]} : vector<64x2048xf32> to vector<64x128xf32>
    %22 = arith.maximumf %20, %21 : vector<64x128xf32>
    %23 = vector.extract_strided_slice %9 {offsets = [0, 896], sizes = [64, 128], strides = [1, 1]} : vector<64x2048xf32> to vector<64x128xf32>
    %24 = arith.maximumf %22, %23 : vector<64x128xf32>
    %25 = vector.extract_strided_slice %9 {offsets = [0, 1024], sizes = [64, 128], strides = [1, 1]} : vector<64x2048xf32> to vector<64x128xf32>
    %26 = arith.maximumf %24, %25 : vector<64x128xf32>
    %27 = vector.extract_strided_slice %9 {offsets = [0, 1152], sizes = [64, 128], strides = [1, 1]} : vector<64x2048xf32> to vector<64x128xf32>
    %28 = arith.maximumf %26, %27 : vector<64x128xf32>
    %29 = vector.extract_strided_slice %9 {offsets = [0, 1280], sizes = [64, 128], strides = [1, 1]} : vector<64x2048xf32> to vector<64x128xf32>
    %30 = arith.maximumf %28, %29 : vector<64x128xf32>
    %31 = vector.extract_strided_slice %9 {offsets = [0, 1408], sizes = [64, 128], strides = [1, 1]} : vector<64x2048xf32> to vector<64x128xf32>
    %32 = arith.maximumf %30, %31 : vector<64x128xf32>
    %33 = vector.extract_strided_slice %9 {offsets = [0, 1536], sizes = [64, 128], strides = [1, 1]} : vector<64x2048xf32> to vector<64x128xf32>
    %34 = arith.maximumf %32, %33 : vector<64x128xf32>
    %35 = vector.extract_strided_slice %9 {offsets = [0, 1664], sizes = [64, 128], strides = [1, 1]} : vector<64x2048xf32> to vector<64x128xf32>
    %36 = arith.maximumf %34, %35 : vector<64x128xf32>
    %37 = vector.extract_strided_slice %9 {offsets = [0, 1792], sizes = [64, 128], strides = [1, 1]} : vector<64x2048xf32> to vector<64x128xf32>
    %38 = arith.maximumf %36, %37 : vector<64x128xf32>
    %39 = vector.extract_strided_slice %9 {offsets = [0, 1920], sizes = [64, 128], strides = [1, 1]} : vector<64x2048xf32> to vector<64x128xf32>
    %40 = arith.maximumf %38, %39 : vector<64x128xf32>
    %c0_5 = arith.constant 0 : index
    %c0_6 = arith.constant 0 : index
    %c0_7 = arith.constant 0 : index
    %41 = vector.load %arg4[%c0_5, %c0_6, %c0_7] : memref<1x64x128xf32, #tpu.memory_space<vmem>>, vector<1x64x128xf32>
    %42 = vector.shape_cast %41 : vector<1x64x128xf32> to vector<64x128xf32>
    %43 = vector.shape_cast %40 : vector<64x128xf32> to vector<1x64x128xf32>
    tpu.vector_store %arg4[%c0_5, %c0_6, %c0_7], %43 {strides = array<i32>} : memref<1x64x128xf32, #tpu.memory_space<vmem>>, vector<1x64x128xf32>,
    return
  }
  func.func @transform_0(%arg0: i32) -> (i32, i32) {
    %c0_i32 = arith.constant 0 : i32
    %c0_i32_0 = arith.constant 0 : i32
    return %c0_i32, %arg0 : i32, i32
  }
  func.func @transform_1(%arg0: i32) -> (i32, i32) {
    %c0_i32 = arith.constant 0 : i32
    %c0_i32_0 = arith.constant 0 : i32
    %c0_i32_1 = arith.constant 0 : i32
    return %c0_i32, %c0_i32_0 : i32, i32
  }
  func.func @transform_2(%arg0: i32) -> (i32, i32) {
    %c0_i32 = arith.constant 0 : i32
    %c0_i32_0 = arith.constant 0 : i32
    %c0_i32_1 = arith.constant 0 : i32
    return %c0_i32, %c0_i32_0 : i32, i32
  }
  func.func @transform_3(%arg0: i32) -> (i32, i32, i32) {
    %c0_i32 = arith.constant 0 : i32
    %c0_i32_0 = arith.constant 0 : i32
    %c0_i32_1 = arith.constant 0 : i32
    return %arg0, %c0_i32, %c0_i32_0 : i32, i32, i32
  }
}

</mosaic_0001>

<llo_original>
// kernel: set_abstraction_mlp.3
$region0: #{set_abstraction_mlp.3}
  #allocation0 [shape = 'u32[]', space=smem, size = 0x4, offset = 0x4, fixed_abs, tag = 'smem constant byte address 0x4 - core index']
  #allocation1 [shape = 'u32[72,128]{1,0:T(1,128)}', space=vmem, size = 0x9000, scoped, tag = 'internal scratch']
  %s0 = inlined_call_operand.vmem [shape: bf16[16,2048], index: 0, kind: input, shape index: {}]
  %s1 = inlined_call_operand.vmem [shape: f32[1,2048], index: 1, kind: input, shape index: {}]
  %s2 = inlined_call_operand.vmem [shape: bf16[32,16], index: 2, kind: input, shape index: {}]
  %s3 = inlined_call_operand.vmem [shape: bf16[32,2048], index: 3, kind: output, shape index: {0}]
  %s4 = inlined_call_operand.vmem [shape: f32[1,64,1], index: 4, kind: output, shape index: {1}]
  %5 = xla_tuple %s3, %s4
  %s6 = sld [smem:[#allocation0]]
  $region30: #{set_abstraction_mlp.3} parent=0
    _
  %s8 = ssub.s32 1, %s6
  %s9 = scalar_select 0, %s8, %s6
  // Predicated region
  $region2: #{set_abstraction_mlp.3} parent=0 // pred_check
    _
  $region3: #{set_abstraction_mlp.3} parent=0 // pred_check_branch
    %11 = sbr.rel (0) target = $region5
  $region4: #{set_abstraction_mlp.3} parent=0 // pred_region
    _
  $region5: #{set_abstraction_mlp.3} parent=0 // pred_fallthru
    _
  // Predicated region
  $region6: #{set_abstraction_mlp.3} parent=0 // pred_check
    _
  $region7: #{set_abstraction_mlp.3} parent=0 // pred_check_branch
    %13 = sbr.rel (0) target = $region9
  $region8: #{set_abstraction_mlp.3} parent=0 // pred_region
    _
  $region9: #{set_abstraction_mlp.3} parent=0 // pred_fallthru
    _
  // Predicated region
  $region10: #{set_abstraction_mlp.3} parent=0 // pred_check
    _
  $region11: #{set_abstraction_mlp.3} parent=0 // pred_check_branch
    %15 = sbr.rel (0) target = $region13
  $region12: #{set_abstraction_mlp.3} parent=0 // pred_region
    _
  $region13: #{set_abstraction_mlp.3} parent=0 // pred_fallthru
    _
  %v17 = vld [vmem:[%s0] sm:$0xff]
  %v18 = vld [vmem:[%s0 + $0x8] sm:$0xff]
  %v19 = vld [vmem:[%s0 + $0x10] sm:$0xff]
  %v20 = vld [vmem:[%s0 + $0x18] sm:$0xff]
  %v21 = vld [vmem:[%s0 + $0x20] sm:$0xff]
  %v22 = vld [vmem:[%s0 + $0x28] sm:$0xff]
  %v23 = vld [vmem:[%s0 + $0x30] sm:$0xff]
  %v24 = vld [vmem:[%s0 + $0x38] sm:$0xff]
  %v25 = vld [vmem:[%s0 + $0x40] sm:$0xff]
  %v26 = vld [vmem:[%s0 + $0x48] sm:$0xff]
  %v27 = vld [vmem:[%s0 + $0x50] sm:$0xff]
  %v28 = vld [vmem:[%s0 + $0x58] sm:$0xff]
  %v29 = vld [vmem:[%s0 + $0x60] sm:$0xff]
  %v30 = vld [vmem:[%s0 + $0x68] sm:$0xff]
  %v31 = vld [vmem:[%s0 + $0x70] sm:$0xff]
  %v32 = vld [vmem:[%s0 + $0x78] sm:$0xff]
  %v33 = vld [vmem:[%s2] sm:$0xf]
  %v34 = vld [vmem:[%s2 + $0x4] sm:$0xf]
  %v35 = vld [vmem:[%s2 + $0x8] sm:$0xf]
  %v36 = vld [vmem:[%s2 + $0xc] sm:$0xf]
  %v41 = vunpack.c.l.b16 %v33
  %v42 = vunpack.c.l.b16 %v34
  %v43 = vunpack.c.l.b16 %v35
  %v44 = vunpack.c.l.b16 %v36
  %v45 = vpack.c.b16 %v42, %v41
  %v46 = vpack.c.b16 %v44, %v43
  %v63 = vunpack.c.l.b16 %v17
  %v64 = vunpack.c.h.b16 %v17
  %v65 = vunpack.c.l.b16 %v18
  %v66 = vunpack.c.h.b16 %v18
  %v67 = vunpack.c.l.b16 %v19
  %v68 = vunpack.c.h.b16 %v19
  %v69 = vunpack.c.l.b16 %v20
  %v70 = vunpack.c.h.b16 %v20
  %v71 = vunpack.c.l.b16 %v21
  %v72 = vunpack.c.h.b16 %v21
  %v73 = vunpack.c.l.b16 %v22
  %v74 = vunpack.c.h.b16 %v22
  %v75 = vunpack.c.l.b16 %v23
  %v76 = vunpack.c.h.b16 %v23
  %v77 = vunpack.c.l.b16 %v24
  %v78 = vunpack.c.h.b16 %v24
  %v79 = vunpack.c.l.b16 %v25
  %v80 = vunpack.c.h.b16 %v25
  %v81 = vunpack.c.l.b16 %v26
  %v82 = vunpack.c.h.b16 %v26
  %v83 = vunpack.c.l.b16 %v27
  %v84 = vunpack.c.h.b16 %v27
  %v85 = vunpack.c.l.b16 %v28
  %v86 = vunpack.c.h.b16 %v28
  %v87 = vunpack.c.l.b16 %v29
  %v88 = vunpack.c.h.b16 %v29
  %v89 = vunpack.c.l.b16 %v30
  %v90 = vunpack.c.h.b16 %v30
  %v91 = vunpack.c.l.b16 %v31
  %v92 = vunpack.c.h.b16 %v31
  %v93 = vunpack.c.l.b16 %v32
  %v94 = vunpack.c.h.b16 %v32
  %v95 = vpack.c.b16 %v79, %v63
  %v96 = vpack.c.b16 %v80, %v64
  %v97 = vpack.c.b16 %v81, %v65
  %v98 = vpack.c.b16 %v82, %v66
  %v99 = vpack.c.b16 %v83, %v67
  %v100 = vpack.c.b16 %v84, %v68
  %v101 = vpack.c.b16 %v85, %v69
  %v102 = vpack.c.b16 %v86, %v70
  %v103 = vpack.c.b16 %v87, %v71
  %v104 = vpack.c.b16 %v88, %v72
  %v105 = vpack.c.b16 %v89, %v73
  %v106 = vpack.c.b16 %v90, %v74
  %v107 = vpack.c.b16 %v91, %v75
  %v108 = vpack.c.b16 %v92, %v76
  %v109 = vpack.c.b16 %v93, %v77
  %v110 = vpack.c.b16 %v94, %v78
  %vm127 = vcmask 130048
  %v129 = vsel %vm127, %v45, 0
  %v132 = vsel %vm127, %v46, 0
  %134 = vmatpush.bf16.msra.mxu0 0
  %135 = vmatpush.bf16.msra.mxu0 0
  %136 = vmatpush.bf16.msra.mxu0 0
  %137 = vmatpush.bf16.msra.mxu0 0
  %138 = vmatpush.bf16.msra.mxu0 0
  %139 = vmatpush.bf16.msra.mxu0 0
  %140 = vmatpush.bf16.msra.mxu0 0
  %141 = vmatpush.bf16.msra.mxu0 %v95
  %142 = vmatmul.bf16.gmra.mxu0 %v129
  %v143 = vpop.f32.mrf.mxu0
  %v144 = vadd.f32 0.0, %v143
  %v145 = vpop.f32.mrf.mxu0
  %v146 = vadd.f32 0.0, %v145
  %147 = vmatmul.bf16.gmra.mxu0 %v132
  %v148 = vpop.f32.mrf.mxu0
  %v149 = vadd.f32 0.0, %v148
  %v150 = vpop.f32.mrf.mxu0
  %v151 = vadd.f32 0.0, %v150
  %152 = vdwg.mxu0
  %153 = vmatpush.bf16.msra.mxu0 0
  %154 = vmatpush.bf16.msra.mxu0 0
  %155 = vmatpush.bf16.msra.mxu0 0
  %156 = vmatpush.bf16.msra.mxu0 0
  %157 = vmatpush.bf16.msra.mxu0 0
  %158 = vmatpush.bf16.msra.mxu0 0
  %159 = vmatpush.bf16.msra.mxu0 0
  %160 = vmatpush.bf16.msra.mxu0 %v96
  %161 = vmatmul.bf16.gmra.mxu0 %v129
  %v162 = vpop.f32.mrf.mxu0
  %v163 = vadd.f32 0.0, %v162
  %v164 = vpop.f32.mrf.mxu0
  %v165 = vadd.f32 0.0, %v164
  %166 = vmatmul.bf16.gmra.mxu0 %v132
  %v167 = vpop.f32.mrf.mxu0
  %v168 = vadd.f32 0.0, %v167
  %v169 = vpop.f32.mrf.mxu0
  %v170 = vadd.f32 0.0, %v169
  %171 = vdwg.mxu0
  %172 = vmatpush.bf16.msra.mxu0 0
  %173 = vmatpush.bf16.msra.mxu0 0
  %174 = vmatpush.bf16.msra.mxu0 0
  %175 = vmatpush.bf16.msra.mxu0 0
  %176 = vmatpush.bf16.msra.mxu0 0
  %177 = vmatpush.bf16.msra.mxu0 0
  %178 = vmatpush.bf16.msra.mxu0 0
  %179 = vmatpush.bf16.msra.mxu0 %v97
  %180 = vmatmul.bf16.gmra.mxu0 %v129
  %v181 = vpop.f32.mrf.mxu0
  %v182 = vadd.f32 0.0, %v181
  %v183 = vpop.f32.mrf.mxu0
  %v184 = vadd.f32 0.0, %v183
  %185 = vmatmul.bf16.gmra.mxu0 %v132
  %v186 = vpop.f32.mrf.mxu0
  %v187 = vadd.f32 0.0, %v186
  %v188 = vpop.f32.mrf.mxu0
  %v189 = vadd.f32 0.0, %v188
  %190 = vdwg.mxu0
  %191 = vmatpush.bf16.msra.mxu0 0
  %192 = vmatpush.bf16.msra.mxu0 0
  %193 = vmatpush.bf16.msra.mxu0 0
  %194 = vmatpush.bf16.msra.mxu0 0
  %195 = vmatpush.bf16.msra.mxu0 0
  %196 = vmatpush.bf16.msra.mxu0 0
  %197 = vmatpush.bf16.msra.mxu0 0
  %198 = vmatpush.bf16.msra.mxu0 %v98
  %199 = vmatmul.bf16.gmra.mxu0 %v129
  %v200 = vpop.f32.mrf.mxu0
  %v201 = vadd.f32 0.0, %v200
  %v202 = vpop.f32.mrf.mxu0
  %v203 = vadd.f32 0.0, %v202
  %204 = vmatmul.bf16.gmra.mxu0 %v132
  %v205 = vpop.f32.mrf.mxu0
  %v206 = vadd.f32 0.0, %v205
  %v207 = vpop.f32.mrf.mxu0
  %v208 = vadd.f32 0.0, %v207
  %209 = vdwg.mxu0
  %210 = vmatpush.bf16.msra.mxu0 0
  %211 = vmatpush.bf16.msra.mxu0 0
  %212 = vmatpush.bf16.msra.mxu0 0
  %213 = vmatpush.bf16.msra.mxu0 0
  %214 = vmatpush.bf16.msra.mxu0 0
  %215 = vmatpush.bf16.msra.mxu0 0
  %216 = vmatpush.bf16.msra.mxu0 0
  %217 = vmatpush.bf16.msra.mxu0 %v99
  %218 = vmatmul.bf16.gmra.mxu0 %v129
  %v219 = vpop.f32.mrf.mxu0
  %v220 = vadd.f32 0.0, %v219
  %v221 = vpop.f32.mrf.mxu0
  %v222 = vadd.f32 0.0, %v221
  %223 = vmatmul.bf16.gmra.mxu0 %v132
  %v224 = vpop.f32.mrf.mxu0
  %v225 = vadd.f32 0.0, %v224
  %v226 = vpop.f32.mrf.mxu0
  %v227 = vadd.f32 0.0, %v226
  %228 = vdwg.mxu0
  %229 = vmatpush.bf16.msra.mxu0 0
  %230 = vmatpush.bf16.msra.mxu0 0
  %231 = vmatpush.bf16.msra.mxu0 0
  %232 = vmatpush.bf16.msra.mxu0 0
  %233 = vmatpush.bf16.msra.mxu0 0
  %234 = vmatpush.bf16.msra.mxu0 0
  %235 = vmatpush.bf16.msra.mxu0 0
  %236 = vmatpush.bf16.msra.mxu0 %v100
  %237 = vmatmul.bf16.gmra.mxu0 %v129
  %v238 = vpop.f32.mrf.mxu0
  %v239 = vadd.f32 0.0, %v238
  %v240 = vpop.f32.mrf.mxu0
  %v241 = vadd.f32 0.0, %v240
  %242 = vmatmul.bf16.gmra.mxu0 %v132
  %v243 = vpop.f32.mrf.mxu0
  %v244 = vadd.f32 0.0, %v243
  %v245 = vpop.f32.mrf.mxu0
  %v246 = vadd.f32 0.0, %v245
  %247 = vdwg.mxu0
  %248 = vmatpush.bf16.msra.mxu0 0
  %249 = vmatpush.bf16.msra.mxu0 0
  %250 = vmatpush.bf16.msra.mxu0 0
  %251 = vmatpush.bf16.msra.mxu0 0
  %252 = vmatpush.bf16.msra.mxu0 0
  %253 = vmatpush.bf16.msra.mxu0 0
  %254 = vmatpush.bf16.msra.mxu0 0
  %255 = vmatpush.bf16.msra.mxu0 %v101
  %256 = vmatmul.bf16.gmra.mxu0 %v129
  %v257 = vpop.f32.mrf.mxu0
  %v258 = vadd.f32 0.0, %v257
  %v259 = vpop.f32.mrf.mxu0
  %v260 = vadd.f32 0.0, %v259
  %261 = vmatmul.bf16.gmra.mxu0 %v132
  %v262 = vpop.f32.mrf.mxu0
  %v263 = vadd.f32 0.0, %v262
  %v264 = vpop.f32.mrf.mxu0
  %v265 = vadd.f32 0.0, %v264
  %266 = vdwg.mxu0
  %267 = vmatpush.bf16.msra.mxu0 0
  %268 = vmatpush.bf16.msra.mxu0 0
  %269 = vmatpush.bf16.msra.mxu0 0
  %270 = vmatpush.bf16.msra.mxu0 0
  %271 = vmatpush.bf16.msra.mxu0 0
  %272 = vmatpush.bf16.msra.mxu0 0
  %273 = vmatpush.bf16.msra.mxu0 0
  %274 = vmatpush.bf16.msra.mxu0 %v102
  %275 = vmatmul.bf16.gmra.mxu0 %v129
  %v276 = vpop.f32.mrf.mxu0
  %v277 = vadd.f32 0.0, %v276
  %v278 = vpop.f32.mrf.mxu0
  %v279 = vadd.f32 0.0, %v278
  %280 = vmatmul.bf16.gmra.mxu0 %v132
  %v281 = vpop.f32.mrf.mxu0
  %v282 = vadd.f32 0.0, %v281
  %v283 = vpop.f32.mrf.mxu0
  %v284 = vadd.f32 0.0, %v283
  %285 = vdwg.mxu0
  %286 = vmatpush.bf16.msra.mxu0 0
  %287 = vmatpush.bf16.msra.mxu0 0
  %288 = vmatpush.bf16.msra.mxu0 0
  %289 = vmatpush.bf16.msra.mxu0 0
  %290 = vmatpush.bf16.msra.mxu0 0
  %291 = vmatpush.bf16.msra.mxu0 0
  %292 = vmatpush.bf16.msra.mxu0 0
  %293 = vmatpush.bf16.msra.mxu0 %v103
  %294 = vmatmul.bf16.gmra.mxu0 %v129
  %v295 = vpop.f32.mrf.mxu0
  %v296 = vadd.f32 0.0, %v295
  %v297 = vpop.f32.mrf.mxu0
  %v298 = vadd.f32 0.0, %v297
  %299 = vmatmul.bf16.gmra.mxu0 %v132
  %v300 = vpop.f32.mrf.mxu0
  %v301 = vadd.f32 0.0, %v300
  %v302 = vpop.f32.mrf.mxu0
  %v303 = vadd.f32 0.0, %v302
  %304 = vdwg.mxu0
  %305 = vmatpush.bf16.msra.mxu0 0
  %306 = vmatpush.bf16.msra.mxu0 0
  %307 = vmatpush.bf16.msra.mxu0 0
  %308 = vmatpush.bf16.msra.mxu0 0
  %309 = vmatpush.bf16.msra.mxu0 0
  %310 = vmatpush.bf16.msra.mxu0 0
  %311 = vmatpush.bf16.msra.mxu0 0
  %312 = vmatpush.bf16.msra.mxu0 %v104
  %313 = vmatmul.bf16.gmra.mxu0 %v129
  %v314 = vpop.f32.mrf.mxu0
  %v315 = vadd.f32 0.0, %v314
  %v316 = vpop.f32.mrf.mxu0
  %v317 = vadd.f32 0.0, %v316
  %318 = vmatmul.bf16.gmra.mxu0 %v132
  %v319 = vpop.f32.mrf.mxu0
  %v320 = vadd.f32 0.0, %v319
  %v321 = vpop.f32.mrf.mxu0
  %v322 = vadd.f32 0.0, %v321
  %323 = vdwg.mxu0
  %324 = vmatpush.bf16.msra.mxu0 0
  %325 = vmatpush.bf16.msra.mxu0 0
  %326 = vmatpush.bf16.msra.mxu0 0
  %327 = vmatpush.bf16.msra.mxu0 0
  %328 = vmatpush.bf16.msra.mxu0 0
  %329 = vmatpush.bf16.msra.mxu0 0
  %330 = vmatpush.bf16.msra.mxu0 0
  %331 = vmatpush.bf16.msra.mxu0 %v105
  %332 = vmatmul.bf16.gmra.mxu0 %v129
  %v333 = vpop.f32.mrf.mxu0
  %v334 = vadd.f32 0.0, %v333
  %v335 = vpop.f32.mrf.mxu0
  %v336 = vadd.f32 0.0, %v335
  %337 = vmatmul.bf16.gmra.mxu0 %v132
  %v338 = vpop.f32.mrf.mxu0
  %v339 = vadd.f32 0.0, %v338
  %v340 = vpop.f32.mrf.mxu0
  %v341 = vadd.f32 0.0, %v340
  %342 = vdwg.mxu0
  %343 = vmatpush.bf16.msra.mxu0 0
  %344 = vmatpush.bf16.msra.mxu0 0
  %345 = vmatpush.bf16.msra.mxu0 0
  %346 = vmatpush.bf16.msra.mxu0 0
  %347 = vmatpush.bf16.msra.mxu0 0
  %348 = vmatpush.bf16.msra.mxu0 0
  %349 = vmatpush.bf16.msra.mxu0 0
  %350 = vmatpush.bf16.msra.mxu0 %v106
  %351 = vmatmul.bf16.gmra.mxu0 %v129
  %v352 = vpop.f32.mrf.mxu0
  %v353 = vadd.f32 0.0, %v352
  %v354 = vpop.f32.mrf.mxu0
  %v355 = vadd.f32 0.0, %v354
  %356 = vmatmul.bf16.gmra.mxu0 %v132
  %v357 = vpop.f32.mrf.mxu0
  %v358 = vadd.f32 0.0, %v357
  %v359 = vpop.f32.mrf.mxu0
  %v360 = vadd.f32 0.0, %v359
  %361 = vdwg.mxu0
  %362 = vmatpush.bf16.msra.mxu0 0
  %363 = vmatpush.bf16.msra.mxu0 0
  %364 = vmatpush.bf16.msra.mxu0 0
  %365 = vmatpush.bf16.msra.mxu0 0
  %366 = vmatpush.bf16.msra.mxu0 0
  %367 = vmatpush.bf16.msra.mxu0 0
  %368 = vmatpush.bf16.msra.mxu0 0
  %369 = vmatpush.bf16.msra.mxu0 %v107
  %370 = vmatmul.bf16.gmra.mxu0 %v129
  %v371 = vpop.f32.mrf.mxu0
  %v372 = vadd.f32 0.0, %v371
  %v373 = vpop.f32.mrf.mxu0
  %v374 = vadd.f32 0.0, %v373
  %375 = vmatmul.bf16.gmra.mxu0 %v132
  %v376 = vpop.f32.mrf.mxu0
  %v377 = vadd.f32 0.0, %v376
  %v378 = vpop.f32.mrf.mxu0
  %v379 = vadd.f32 0.0, %v378
  %380 = vdwg.mxu0
  %381 = vmatpush.bf16.msra.mxu0 0
  %382 = vmatpush.bf16.msra.mxu0 0
  %383 = vmatpush.bf16.msra.mxu0 0
  %384 = vmatpush.bf16.msra.mxu0 0
  %385 = vmatpush.bf16.msra.mxu0 0
  %386 = vmatpush.bf16.msra.mxu0 0
  %387 = vmatpush.bf16.msra.mxu0 0
  %388 = vmatpush.bf16.msra.mxu0 %v108
  %389 = vmatmul.bf16.gmra.mxu0 %v129
  %v390 = vpop.f32.mrf.mxu0
  %v391 = vadd.f32 0.0, %v390
  %v392 = vpop.f32.mrf.mxu0
  %v393 = vadd.f32 0.0, %v392
  %394 = vmatmul.bf16.gmra.mxu0 %v132
  %v395 = vpop.f32.mrf.mxu0
  %v396 = vadd.f32 0.0, %v395
  %v397 = vpop.f32.mrf.mxu0
  %v398 = vadd.f32 0.0, %v397
  %399 = vdwg.mxu0
  %400 = vmatpush.bf16.msra.mxu0 0
  %401 = vmatpush.bf16.msra.mxu0 0
  %402 = vmatpush.bf16.msra.mxu0 0
  %403 = vmatpush.bf16.msra.mxu0 0
  %404 = vmatpush.bf16.msra.mxu0 0
  %405 = vmatpush.bf16.msra.mxu0 0
  %406 = vmatpush.bf16.msra.mxu0 0
  %407 = vmatpush.bf16.msra.mxu0 %v109
  %408 = vmatmul.bf16.gmra.mxu0 %v129
  %v409 = vpop.f32.mrf.mxu0
  %v410 = vadd.f32 0.0, %v409
  %v411 = vpop.f32.mrf.mxu0
  %v412 = vadd.f32 0.0, %v411
  %413 = vmatmul.bf16.gmra.mxu0 %v132
  %v414 = vpop.f32.mrf.mxu0
  %v415 = vadd.f32 0.0, %v414
  %v416 = vpop.f32.mrf.mxu0
  %v417 = vadd.f32 0.0, %v416
  %418 = vdwg.mxu0
  %419 = vmatpush.bf16.msra.mxu0 0
  %420 = vmatpush.bf16.msra.mxu0 0
  %421 = vmatpush.bf16.msra.mxu0 0
  %422 = vmatpush.bf16.msra.mxu0 0
  %423 = vmatpush.bf16.msra.mxu0 0
  %424 = vmatpush.bf16.msra.mxu0 0
  %425 = vmatpush.bf16.msra.mxu0 0
  %426 = vmatpush.bf16.msra.mxu0 %v110
  %427 = vmatmul.bf16.gmra.mxu0 %v129
  %v428 = vpop.f32.mrf.mxu0
  %v429 = vadd.f32 0.0, %v428
  %v430 = vpop.f32.mrf.mxu0
  %v431 = vadd.f32 0.0, %v430
  %432 = vmatmul.bf16.gmra.mxu0 %v132
  %v433 = vpop.f32.mrf.mxu0
  %v434 = vadd.f32 0.0, %v433
  %v435 = vpop.f32.mrf.mxu0
  %v436 = vadd.f32 0.0, %v435
  %437 = vdwg.mxu0
  %v438 = vld [vmem:[%s1] sm:$0xff]
  %v439 = vld [vmem:[%s1 + $0x8] sm:$0xff]
  %v442 = vperm.slane %v438, 0
  %v443 = vperm.slane %v438, 1
  %v444 = vperm.slane %v438, 2
  %v445 = vperm.slane %v438, 3
  %v446 = vperm.slane %v438, 4
  %v447 = vperm.slane %v438, 5
  %v448 = vperm.slane %v438, 6
  %v449 = vperm.slane %v438, 7
  %v450 = vperm.slane %v439, 0
  %v451 = vperm.slane %v439, 1
  %v452 = vperm.slane %v439, 2
  %v453 = vperm.slane %v439, 3
  %v454 = vperm.slane %v439, 4
  %v455 = vperm.slane %v439, 5
  %v456 = vperm.slane %v439, 6
  %v457 = vperm.slane %v439, 7
  %v474 = vmul.f32 %v144, %v442
  %v475 = vmul.f32 %v163, %v443
  %v476 = vmul.f32 %v182, %v444
  %v477 = vmul.f32 %v201, %v445
  %v478 = vmul.f32 %v220, %v446
  %v479 = vmul.f32 %v239, %v447
  %v480 = vmul.f32 %v258, %v448
  %v481 = vmul.f32 %v277, %v449
  %v482 = vmul.f32 %v296, %v450
  %v483 = vmul.f32 %v315, %v451
  %v484 = vmul.f32 %v334, %v452
  %v485 = vmul.f32 %v353, %v453
  %v486 = vmul.f32 %v372, %v454
  %v487 = vmul.f32 %v391, %v455
  %v488 = vmul.f32 %v410, %v456
  %v489 = vmul.f32 %v429, %v457
  %v490 = vmul.f32 %v146, %v442
  %v491 = vmul.f32 %v165, %v443
  %v492 = vmul.f32 %v184, %v444
  %v493 = vmul.f32 %v203, %v445
  %v494 = vmul.f32 %v222, %v446
  %v495 = vmul.f32 %v241, %v447
  %v496 = vmul.f32 %v260, %v448
  %v497 = vmul.f32 %v279, %v449
  %v498 = vmul.f32 %v298, %v450
  %v499 = vmul.f32 %v317, %v451
  %v500 = vmul.f32 %v336, %v452
  %v501 = vmul.f32 %v355, %v453
  %v502 = vmul.f32 %v374, %v454
  %v503 = vmul.f32 %v393, %v455
  %v504 = vmul.f32 %v412, %v456
  %v505 = vmul.f32 %v431, %v457
  %v506 = vmul.f32 %v149, %v442
  %v507 = vmul.f32 %v168, %v443
  %v508 = vmul.f32 %v187, %v444
  %v509 = vmul.f32 %v206, %v445
  %v510 = vmul.f32 %v225, %v446
  %v511 = vmul.f32 %v244, %v447
  %v512 = vmul.f32 %v263, %v448
  %v513 = vmul.f32 %v282, %v449
  %v514 = vmul.f32 %v301, %v450
  %v515 = vmul.f32 %v320, %v451
  %v516 = vmul.f32 %v339, %v452
  %v517 = vmul.f32 %v358, %v453
  %v518 = vmul.f32 %v377, %v454
  %v519 = vmul.f32 %v396, %v455
  %v520 = vmul.f32 %v415, %v456
  %v521 = vmul.f32 %v434, %v457
  %v522 = vmul.f32 %v151, %v442
  %v523 = vmul.f32 %v170, %v443
  %v524 = vmul.f32 %v189, %v444
  %v525 = vmul.f32 %v208, %v445
  %v526 = vmul.f32 %v227, %v446
  %v527 = vmul.f32 %v246, %v447
  %v528 = vmul.f32 %v265, %v448
  %v529 = vmul.f32 %v284, %v449
  %v530 = vmul.f32 %v303, %v450
  %v531 = vmul.f32 %v322, %v451
  %v532 = vmul.f32 %v341, %v452
  %v533 = vmul.f32 %v360, %v453
  %v534 = vmul.f32 %v379, %v454
  %v535 = vmul.f32 %v398, %v455
  %v536 = vmul.f32 %v417, %v456
  %v537 = vmul.f32 %v436, %v457
  %v538 = vpack.c.bf16 %v475, %v474
  %v539 = vpack.c.bf16 %v477, %v476
  %v540 = vpack.c.bf16 %v479, %v478
  %v541 = vpack.c.bf16 %v481, %v480
  %v542 = vpack.c.bf16 %v483, %v482
  %v543 = vpack.c.bf16 %v485, %v484
  %v544 = vpack.c.bf16 %v487, %v486
  %v545 = vpack.c.bf16 %v489, %v488
  %v546 = vpack.c.bf16 %v491, %v490
  %v547 = vpack.c.bf16 %v493, %v492
  %v548 = vpack.c.bf16 %v495, %v494
  %v549 = vpack.c.bf16 %v497, %v496
  %v550 = vpack.c.bf16 %v499, %v498
  %v551 = vpack.c.bf16 %v501, %v500
  %v552 = vpack.c.bf16 %v503, %v502
  %v553 = vpack.c.bf16 %v505, %v504
  %v554 = vpack.c.bf16 %v507, %v506
  %v555 = vpack.c.bf16 %v509, %v508
  %v556 = vpack.c.bf16 %v511, %v510
  %v557 = vpack.c.bf16 %v513, %v512
  %v558 = vpack.c.bf16 %v515, %v514
  %v559 = vpack.c.bf16 %v517, %v516
  %v560 = vpack.c.bf16 %v519, %v518
  %v561 = vpack.c.bf16 %v521, %v520
  %v562 = vpack.c.bf16 %v523, %v522
  %v563 = vpack.c.bf16 %v525, %v524
  %v564 = vpack.c.bf16 %v527, %v526
  %v565 = vpack.c.bf16 %v529, %v528
  %v566 = vpack.c.bf16 %v531, %v530
  %v567 = vpack.c.bf16 %v533, %v532
  %v568 = vpack.c.bf16 %v535, %v534
  %v569 = vpack.c.bf16 %v537, %v536
  %570 = vst [vmem:[%s3] sm:$0xff] %v538
  %571 = vst [vmem:[%s3 + $0x8] sm:$0xff] %v539
  %572 = vst [vmem:[%s3 + $0x10] sm:$0xff] %v540
  %573 = vst [vmem:[%s3 + $0x18] sm:$0xff] %v541
  %574 = vst [vmem:[%s3 + $0x20] sm:$0xff] %v542
  %575 = vst [vmem:[%s3 + $0x28] sm:$0xff] %v543
  %576 = vst [vmem:[%s3 + $0x30] sm:$0xff] %v544
  %577 = vst [vmem:[%s3 + $0x38] sm:$0xff] %v545
  %578 = vst [vmem:[%s3 + $0x40] sm:$0xff] %v546
  %579 = vst [vmem:[%s3 + $0x48] sm:$0xff] %v547
  %580 = vst [vmem:[%s3 + $0x50] sm:$0xff] %v548
  %581 = vst [vmem:[%s3 + $0x58] sm:$0xff] %v549
  %582 = vst [vmem:[%s3 + $0x60] sm:$0xff] %v550
  %583 = vst [vmem:[%s3 + $0x68] sm:$0xff] %v551
  %584 = vst [vmem:[%s3 + $0x70] sm:$0xff] %v552
  %585 = vst [vmem:[%s3 + $0x78] sm:$0xff] %v553
  %586 = vst [vmem:[%s3 + $0x80] sm:$0xff] %v554
  %587 = vst [vmem:[%s3 + $0x88] sm:$0xff] %v555
  %588 = vst [vmem:[%s3 + $0x90] sm:$0xff] %v556
  %589 = vst [vmem:[%s3 + $0x98] sm:$0xff] %v557
  %590 = vst [vmem:[%s3 + $0xa0] sm:$0xff] %v558
  %591 = vst [vmem:[%s3 + $0xa8] sm:$0xff] %v559
  %592 = vst [vmem:[%s3 + $0xb0] sm:$0xff] %v560
  %593 = vst [vmem:[%s3 + $0xb8] sm:$0xff] %v561
  %594 = vst [vmem:[%s3 + $0xc0] sm:$0xff] %v562
  %595 = vst [vmem:[%s3 + $0xc8] sm:$0xff] %v563
  %596 = vst [vmem:[%s3 + $0xd0] sm:$0xff] %v564
  %597 = vst [vmem:[%s3 + $0xd8] sm:$0xff] %v565
  %598 = vst [vmem:[%s3 + $0xe0] sm:$0xff] %v566
  %599 = vst [vmem:[%s3 + $0xe8] sm:$0xff] %v567
  %600 = vst [vmem:[%s3 + $0xf0] sm:$0xff] %v568
  %601 = vst [vmem:[%s3 + $0xf8] sm:$0xff] %v569
  %v602 = vadd.f32 %v474, %v475
  %v603 = vadd.f32 %v602, %v476
  %v604 = vadd.f32 %v603, %v477
  %v605 = vadd.f32 %v604, %v478
  %v606 = vadd.f32 %v605, %v479
  %v607 = vadd.f32 %v606, %v480
  %v608 = vadd.f32 %v607, %v481
  %v609 = vadd.f32 %v608, %v482
  %v610 = vadd.f32 %v609, %v483
  %v611 = vadd.f32 %v610, %v484
  %v612 = vadd.f32 %v611, %v485
  %v613 = vadd.f32 %v612, %v486
  %v614 = vadd.f32 %v613, %v487
  %v615 = vadd.f32 %v614, %v488
  %v616 = vadd.f32 %v615, %v489
  %617 = vadd.xlane.f32.xlu0 %v616
  %v618 = vpop.xlane.xlu0 %617
  %v619 = vadd.f32 %v490, %v491
  %v620 = vadd.f32 %v619, %v492
  %v621 = vadd.f32 %v620, %v493
  %v622 = vadd.f32 %v621, %v494
  %v623 = vadd.f32 %v622, %v495
  %v624 = vadd.f32 %v623, %v496
  %v625 = vadd.f32 %v624, %v497
  %v626 = vadd.f32 %v625, %v498
  %v627 = vadd.f32 %v626, %v499
  %v628 = vadd.f32 %v627, %v500
  %v629 = vadd.f32 %v628, %v501
  %v630 = vadd.f32 %v629, %v502
  %v631 = vadd.f32 %v630, %v503
  %v632 = vadd.f32 %v631, %v504
  %v633 = vadd.f32 %v632, %v505
  %634 = vadd.xlane.f32.xlu0 %v633
  %v635 = vpop.xlane.xlu0 %634
  %v636 = vadd.f32 %v506, %v507
  %v637 = vadd.f32 %v636, %v508
  %v638 = vadd.f32 %v637, %v509
  %v639 = vadd.f32 %v638, %v510
  %v640 = vadd.f32 %v639, %v511
  %v641 = vadd.f32 %v640, %v512
  %v642 = vadd.f32 %v641, %v513
  %v643 = vadd.f32 %v642, %v514
  %v644 = vadd.f32 %v643, %v515
  %v645 = vadd.f32 %v644, %v516
  %v646 = vadd.f32 %v645, %v517
  %v647 = vadd.f32 %v646, %v518
  %v648 = vadd.f32 %v647, %v519
  %v649 = vadd.f32 %v648, %v520
  %v650 = vadd.f32 %v649, %v521
  %651 = vadd.xlane.f32.xlu0 %v650
  %v652 = vpop.xlane.xlu0 %651
  %v653 = vadd.f32 %v522, %v523
  %v654 = vadd.f32 %v653, %v524
  %v655 = vadd.f32 %v654, %v525
  %v656 = vadd.f32 %v655, %v526
  %v657 = vadd.f32 %v656, %v527
  %v658 = vadd.f32 %v657, %v528
  %v659 = vadd.f32 %v658, %v529
  %v660 = vadd.f32 %v659, %v530
  %v661 = vadd.f32 %v660, %v531
  %v662 = vadd.f32 %v661, %v532
  %v663 = vadd.f32 %v662, %v533
  %v664 = vadd.f32 %v663, %v534
  %v665 = vadd.f32 %v664, %v535
  %v666 = vadd.f32 %v665, %v536
  %v667 = vadd.f32 %v666, %v537
  %668 = vadd.xlane.f32.xlu0 %v667
  %v669 = vpop.xlane.xlu0 %668
  %v670 = vmul.f32 %v474, %v474
  %v671 = vmul.f32 %v475, %v475
  %v672 = vmul.f32 %v476, %v476
  %v673 = vmul.f32 %v477, %v477
  %v674 = vmul.f32 %v478, %v478
  %v675 = vmul.f32 %v479, %v479
  %v676 = vmul.f32 %v480, %v480
  %v677 = vmul.f32 %v481, %v481
  %v678 = vmul.f32 %v482, %v482
  %v679 = vmul.f32 %v483, %v483
  %v680 = vmul.f32 %v484, %v484
  %v681 = vmul.f32 %v485, %v485
  %v682 = vmul.f32 %v486, %v486
  %v683 = vmul.f32 %v487, %v487
  %v684 = vmul.f32 %v488, %v488
  %v685 = vmul.f32 %v489, %v489
  %v686 = vmul.f32 %v490, %v490
  %v687 = vmul.f32 %v491, %v491
  %v688 = vmul.f32 %v492, %v492
  %v689 = vmul.f32 %v493, %v493
  %v690 = vmul.f32 %v494, %v494
  %v691 = vmul.f32 %v495, %v495
  %v692 = vmul.f32 %v496, %v496
  %v693 = vmul.f32 %v497, %v497
  %v694 = vmul.f32 %v498, %v498
  %v695 = vmul.f32 %v499, %v499
  %v696 = vmul.f32 %v500, %v500
  %v697 = vmul.f32 %v501, %v501
  %v698 = vmul.f32 %v502, %v502
  %v699 = vmul.f32 %v503, %v503
  %v700 = vmul.f32 %v504, %v504
  %v701 = vmul.f32 %v505, %v505
  %v702 = vmul.f32 %v506, %v506
  %v703 = vmul.f32 %v507, %v507
  %v704 = vmul.f32 %v508, %v508
  %v705 = vmul.f32 %v509, %v509
  %v706 = vmul.f32 %v510, %v510
  %v707 = vmul.f32 %v511, %v511
  %v708 = vmul.f32 %v512, %v512
  %v709 = vmul.f32 %v513, %v513
  %v710 = vmul.f32 %v514, %v514
  %v711 = vmul.f32 %v515, %v515
  %v712 = vmul.f32 %v516, %v516
  %v713 = vmul.f32 %v517, %v517
  %v714 = vmul.f32 %v518, %v518
  %v715 = vmul.f32 %v519, %v519
  %v716 = vmul.f32 %v520, %v520
  %v717 = vmul.f32 %v521, %v521
  %v718 = vmul.f32 %v522, %v522
  %v719 = vmul.f32 %v523, %v523
  %v720 = vmul.f32 %v524, %v524
  %v721 = vmul.f32 %v525, %v525
  %v722 = vmul.f32 %v526, %v526
  %v723 = vmul.f32 %v527, %v527
  %v724 = vmul.f32 %v528, %v528
  %v725 = vmul.f32 %v529, %v529
  %v726 = vmul.f32 %v530, %v530
  %v727 = vmul.f32 %v531, %v531
  %v728 = vmul.f32 %v532, %v532
  %v729 = vmul.f32 %v533, %v533
  %v730 = vmul.f32 %v534, %v534
  %v731 = vmul.f32 %v535, %v535
  %v732 = vmul.f32 %v536, %v536
  %v733 = vmul.f32 %v537, %v537
  %v734 = vadd.f32 %v670, %v671
  %v735 = vadd.f32 %v734, %v672
  %v736 = vadd.f32 %v735, %v673
  %v737 = vadd.f32 %v736, %v674
  %v738 = vadd.f32 %v737, %v675
  %v739 = vadd.f32 %v738, %v676
  %v740 = vadd.f32 %v739, %v677
  %v741 = vadd.f32 %v740, %v678
  %v742 = vadd.f32 %v741, %v679
  %v743 = vadd.f32 %v742, %v680
  %v744 = vadd.f32 %v743, %v681
  %v745 = vadd.f32 %v744, %v682
  %v746 = vadd.f32 %v745, %v683
  %v747 = vadd.f32 %v746, %v684
  %v748 = vadd.f32 %v747, %v685
  %749 = vadd.xlane.f32.xlu0 %v748
  %v750 = vpop.xlane.xlu0 %749
  %v751 = vadd.f32 %v686, %v687
  %v752 = vadd.f32 %v751, %v688
  %v753 = vadd.f32 %v752, %v689
  %v754 = vadd.f32 %v753, %v690
  %v755 = vadd.f32 %v754, %v691
  %v756 = vadd.f32 %v755, %v692
  %v757 = vadd.f32 %v756, %v693
  %v758 = vadd.f32 %v757, %v694
  %v759 = vadd.f32 %v758, %v695
  %v760 = vadd.f32 %v759, %v696
  %v761 = vadd.f32 %v760, %v697
  %v762 = vadd.f32 %v761, %v698
  %v763 = vadd.f32 %v762, %v699
  %v764 = vadd.f32 %v763, %v700
  %v765 = vadd.f32 %v764, %v701
  %766 = vadd.xlane.f32.xlu0 %v765
  %v767 = vpop.xlane.xlu0 %766
  %v768 = vadd.f32 %v702, %v703
  %v769 = vadd.f32 %v768, %v704
  %v770 = vadd.f32 %v769, %v705
  %v771 = vadd.f32 %v770, %v706
  %v772 = vadd.f32 %v771, %v707
  %v773 = vadd.f32 %v772, %v708
  %v774 = vadd.f32 %v773, %v709
  %v775 = vadd.f32 %v774, %v710
  %v776 = vadd.f32 %v775, %v711
  %v777 = vadd.f32 %v776, %v712
  %v778 = vadd.f32 %v777, %v713
  %v779 = vadd.f32 %v778, %v714
  %v780 = vadd.f32 %v779, %v715
  %v781 = vadd.f32 %v780, %v716
  %v782 = vadd.f32 %v781, %v717
  %783 = vadd.xlane.f32.xlu0 %v782
  %v784 = vpop.xlane.xlu0 %783
  %v785 = vadd.f32 %v718, %v719
  %v786 = vadd.f32 %v785, %v720
  %v787 = vadd.f32 %v786, %v721
  %v788 = vadd.f32 %v787, %v722
  %v789 = vadd.f32 %v788, %v723
  %v790 = vadd.f32 %v789, %v724
  %v791 = vadd.f32 %v790, %v725
  %v792 = vadd.f32 %v791, %v726
  %v793 = vadd.f32 %v792, %v727
  %v794 = vadd.f32 %v793, %v728
  %v795 = vadd.f32 %v794, %v729
  %v796 = vadd.f32 %v795, %v730
  %v797 = vadd.f32 %v796, %v731
  %v798 = vadd.f32 %v797, %v732
  %v799 = vadd.f32 %v798, %v733
  %800 = vadd.xlane.f32.xlu0 %v799
  %v801 = vpop.xlane.xlu0 %800
  %vm802 = vcmask 7168
  %803 = vst.msk [vmem:[%s4] sm:$0xff] %vm802, %v618
  %804 = vst.msk [vmem:[%s4 + $0x8] sm:$0xff] %vm802, %v635
  %805 = vst.msk [vmem:[%s4 + $0x10] sm:$0xff] %vm802, %v652
  %806 = vst.msk [vmem:[%s4 + $0x18] sm:$0xff] %vm802, %v669
  %807 = vst.msk [vmem:[%s4 + $0x20] sm:$0xff] %vm802, %v750
  %808 = vst.msk [vmem:[%s4 + $0x28] sm:$0xff] %vm802, %v767
  %809 = vst.msk [vmem:[%s4 + $0x30] sm:$0xff] %vm802, %v784
  %810 = vst.msk [vmem:[%s4 + $0x38] sm:$0xff] %vm802, %v801
  // Predicated region
  $region14: #{set_abstraction_mlp.3} parent=0 // pred_check
    _
  $region15: #{set_abstraction_mlp.3} parent=0 // pred_check_branch
    %812 = sbr.rel (0) target = $region17
  $region16: #{set_abstraction_mlp.3} parent=0 // pred_region
    _
  $region17: #{set_abstraction_mlp.3} parent=0 // pred_fallthru
    _
  // Predicated region
  $region18: #{set_abstraction_mlp.3} parent=0 // pred_check
    _
  $region19: #{set_abstraction_mlp.3} parent=0 // pred_check_branch
    %814 = sbr.rel (0) target = $region21
  $region20: #{set_abstraction_mlp.3} parent=0 // pred_region
    _
  $region21: #{set_abstraction_mlp.3} parent=0 // pred_fallthru
    _
  // Predicated region
  $region22: #{set_abstraction_mlp.3} parent=0 // pred_check
    _
  $region23: #{set_abstraction_mlp.3} parent=0 // pred_check_branch
    %816 = sbr.rel (0) target = $region25
  $region24: #{set_abstraction_mlp.3} parent=0 // pred_region
    _
  $region25: #{set_abstraction_mlp.3} parent=0 // pred_fallthru
    _
  // Predicated region
  $region26: #{set_abstraction_mlp.3} parent=0 // pred_check
    _
  $region27: #{set_abstraction_mlp.3} parent=0 // pred_check_branch
    %818 = sbr.rel (0) target = $region29
  $region28: #{set_abstraction_mlp.3} parent=0 // pred_region
    _
  $region29: #{set_abstraction_mlp.3} parent=0 // pred_fallthru
    _

// kernel: set_abstraction_mlp.5
$region0: #{set_abstraction_mlp.5}
  #allocation0 [shape = 'u32[]', space=smem, size = 0x4, offset = 0x4, fixed_abs, tag = 'smem constant byte address 0x4 - core index']
  #allocation1 [shape = 'u32[72,128]{1,0:T(1,128)}', space=vmem, size = 0x9000, scoped, tag = 'internal scratch']
  %s0 = inlined_call_operand.vmem [shape: bf16[64,2048], index: 0, kind: input, shape index: {}]
  %s1 = inlined_call_operand.vmem [shape: f32[64,1], index: 1, kind: input, shape index: {}]
  %s2 = inlined_call_operand.vmem [shape: f32[64,1], index: 2, kind: input, shape index: {}]
  %s3 = inlined_call_operand.vmem [shape: f32[1,64,128], index: 3, kind: output, shape index: {}]
  %s4 = sld [smem:[#allocation0]]
  $region22: #{set_abstraction_mlp.5} parent=0
    _
  %s6 = ssub.s32 1, %s4
  %s7 = scalar_select 0, %s6, %s4
  // Predicated region
  $region2: #{set_abstraction_mlp.5} parent=0 // pred_check
    _
  $region3: #{set_abstraction_mlp.5} parent=0 // pred_check_branch
    %9 = sbr.rel (0) target = $region5
  $region4: #{set_abstraction_mlp.5} parent=0 // pred_region
    _
  $region5: #{set_abstraction_mlp.5} parent=0 // pred_fallthru
    _
  // Predicated region
  $region6: #{set_abstraction_mlp.5} parent=0 // pred_check
    _
  $region7: #{set_abstraction_mlp.5} parent=0 // pred_check_branch
    %11 = sbr.rel (0) target = $region9
  $region8: #{set_abstraction_mlp.5} parent=0 // pred_region
    _
  $region9: #{set_abstraction_mlp.5} parent=0 // pred_fallthru
    _
  // Predicated region
  $region10: #{set_abstraction_mlp.5} parent=0 // pred_check
    _
  $region11: #{set_abstraction_mlp.5} parent=0 // pred_check_branch
    %13 = sbr.rel (0) target = $region13
  $region12: #{set_abstraction_mlp.5} parent=0 // pred_region
    _
  $region13: #{set_abstraction_mlp.5} parent=0 // pred_fallthru
    _
  %v14 = vld [vmem:[%s0] sm:$0xff]
  %v15 = vld [vmem:[%s0 + $0x8] sm:$0xff]
  %v16 = vld [vmem:[%s0 + $0x10] sm:$0xff]
  %v17 = vld [vmem:[%s0 + $0x18] sm:$0xff]
  %v18 = vld [vmem:[%s0 + $0x20] sm:$0xff]
  %v19 = vld [vmem:[%s0 + $0x28] sm:$0xff]
  %v20 = vld [vmem:[%s0 + $0x30] sm:$0xff]
  %v21 = vld [vmem:[%s0 + $0x38] sm:$0xff]
  %v22 = vld [vmem:[%s0 + $0x40] sm:$0xff]
  %v23 = vld [vmem:[%s0 + $0x48] sm:$0xff]
  %v24 = vld [vmem:[%s0 + $0x50] sm:$0xff]
  %v25 = vld [vmem:[%s0 + $0x58] sm:$0xff]
  %v26 = vld [vmem:[%s0 + $0x60] sm:$0xff]
  %v27 = vld [vmem:[%s0 + $0x68] sm:$0xff]
  %v28 = vld [vmem:[%s0 + $0x70] sm:$0xff]
  %v29 = vld [vmem:[%s0 + $0x78] sm:$0xff]
  %v30 = vld [vmem:[%s0 + $0x80] sm:$0xff]
  %v31 = vld [vmem:[%s0 + $0x88] sm:$0xff]
  %v32 = vld [vmem:[%s0 + $0x90] sm:$0xff]
  %v33 = vld [vmem:[%s0 + $0x98] sm:$0xff]
  %v34 = vld [vmem:[%s0 + $0xa0] sm:$0xff]
  %v35 = vld [vmem:[%s0 + $0xa8] sm:$0xff]
  %v36 = vld [vmem:[%s0 + $0xb0] sm:$0xff]
  %v37 = vld [vmem:[%s0 + $0xb8] sm:$0xff]
  %v38 = vld [vmem:[%s0 + $0xc0] sm:$0xff]
  %v39 = vld [vmem:[%s0 + $0xc8] sm:$0xff]
  %v40 = vld [vmem:[%s0 + $0xd0] sm:$0xff]
  %v41 = vld [vmem:[%s0 + $0xd8] sm:$0xff]
  %v42 = vld [vmem:[%s0 + $0xe0] sm:$0xff]
  %v43 = vld [vmem:[%s0 + $0xe8] sm:$0xff]
  %v44 = vld [vmem:[%s0 + $0xf0] sm:$0xff]
  %v45 = vld [vmem:[%s0 + $0xf8] sm:$0xff]
  %v46 = vld [vmem:[%s0 + $0x100] sm:$0xff]
  %v47 = vld [vmem:[%s0 + $0x108] sm:$0xff]
  %v48 = vld [vmem:[%s0 + $0x110] sm:$0xff]
  %v49 = vld [vmem:[%s0 + $0x118] sm:$0xff]
  %v50 = vld [vmem:[%s0 + $0x120] sm:$0xff]
  %v51 = vld [vmem:[%s0 + $0x128] sm:$0xff]
  %v52 = vld [vmem:[%s0 + $0x130] sm:$0xff]
  %v53 = vld [vmem:[%s0 + $0x138] sm:$0xff]
  %v54 = vld [vmem:[%s0 + $0x140] sm:$0xff]
  %v55 = vld [vmem:[%s0 + $0x148] sm:$0xff]
  %v56 = vld [vmem:[%s0 + $0x150] sm:$0xff]
  %v57 = vld [vmem:[%s0 + $0x158] sm:$0xff]
  %v58 = vld [vmem:[%s0 + $0x160] sm:$0xff]
  %v59 = vld [vmem:[%s0 + $0x168] sm:$0xff]
  %v60 = vld [vmem:[%s0 + $0x170] sm:$0xff]
  %v61 = vld [vmem:[%s0 + $0x178] sm:$0xff]
  %v62 = vld [vmem:[%s0 + $0x180] sm:$0xff]
  %v63 = vld [vmem:[%s0 + $0x188] sm:$0xff]
  %v64 = vld [vmem:[%s0 + $0x190] sm:$0xff]
  %v65 = vld [vmem:[%s0 + $0x198] sm:$0xff]
  %v66 = vld [vmem:[%s0 + $0x1a0] sm:$0xff]
  %v67 = vld [vmem:[%s0 + $0x1a8] sm:$0xff]
  %v68 = vld [vmem:[%s0 + $0x1b0] sm:$0xff]
  %v69 = vld [vmem:[%s0 + $0x1b8] sm:$0xff]
  %v70 = vld [vmem:[%s0 + $0x1c0] sm:$0xff]
  %v71 = vld [vmem:[%s0 + $0x1c8] sm:$0xff]
  %v72 = vld [vmem:[%s0 + $0x1d0] sm:$0xff]
  %v73 = vld [vmem:[%s0 + $0x1d8] sm:$0xff]
  %v74 = vld [vmem:[%s0 + $0x1e0] sm:$0xff]
  %v75 = vld [vmem:[%s0 + $0x1e8] sm:$0xff]
  %v76 = vld [vmem:[%s0 + $0x1f0] sm:$0xff]
  %v77 = vld [vmem:[%s0 + $0x1f8] sm:$0xff]
  %v78 = vunpack.c.l.bf16 %v14
  %v79 = vunpack.c.h.bf16 %v14
  %v80 = vunpack.c.l.bf16 %v15
  %v81 = vunpack.c.h.bf16 %v15
  %v82 = vunpack.c.l.bf16 %v16
  %v83 = vunpack.c.h.bf16 %v16
  %v84 = vunpack.c.l.bf16 %v17
  %v85 = vunpack.c.h.bf16 %v17
  %v86 = vunpack.c.l.bf16 %v18
  %v87 = vunpack.c.h.bf16 %v18
  %v88 = vunpack.c.l.bf16 %v19
  %v89 = vunpack.c.h.bf16 %v19
  %v90 = vunpack.c.l.bf16 %v20
  %v91 = vunpack.c.h.bf16 %v20
  %v92 = vunpack.c.l.bf16 %v21
  %v93 = vunpack.c.h.bf16 %v21
  %v94 = vunpack.c.l.bf16 %v22
  %v95 = vunpack.c.h.bf16 %v22
  %v96 = vunpack.c.l.bf16 %v23
  %v97 = vunpack.c.h.bf16 %v23
  %v98 = vunpack.c.l.bf16 %v24
  %v99 = vunpack.c.h.bf16 %v24
  %v100 = vunpack.c.l.bf16 %v25
  %v101 = vunpack.c.h.bf16 %v25
  %v102 = vunpack.c.l.bf16 %v26
  %v103 = vunpack.c.h.bf16 %v26
  %v104 = vunpack.c.l.bf16 %v27
  %v105 = vunpack.c.h.bf16 %v27
  %v106 = vunpack.c.l.bf16 %v28
  %v107 = vunpack.c.h.bf16 %v28
  %v108 = vunpack.c.l.bf16 %v29
  %v109 = vunpack.c.h.bf16 %v29
  %v110 = vunpack.c.l.bf16 %v30
  %v111 = vunpack.c.h.bf16 %v30
  %v112 = vunpack.c.l.bf16 %v31
  %v113 = vunpack.c.h.bf16 %v31
  %v114 = vunpack.c.l.bf16 %v32
  %v115 = vunpack.c.h.bf16 %v32
  %v116 = vunpack.c.l.bf16 %v33
  %v117 = vunpack.c.h.bf16 %v33
  %v118 = vunpack.c.l.bf16 %v34
  %v119 = vunpack.c.h.bf16 %v34
  %v120 = vunpack.c.l.bf16 %v35
  %v121 = vunpack.c.h.bf16 %v35
  %v122 = vunpack.c.l.bf16 %v36
  %v123 = vunpack.c.h.bf16 %v36
  %v124 = vunpack.c.l.bf16 %v37
  %v125 = vunpack.c.h.bf16 %v37
  %v126 = vunpack.c.l.bf16 %v38
  %v127 = vunpack.c.h.bf16 %v38
  %v128 = vunpack.c.l.bf16 %v39
  %v129 = vunpack.c.h.bf16 %v39
  %v130 = vunpack.c.l.bf16 %v40
  %v131 = vunpack.c.h.bf16 %v40
  %v132 = vunpack.c.l.bf16 %v41
  %v133 = vunpack.c.h.bf16 %v41
  %v134 = vunpack.c.l.bf16 %v42
  %v135 = vunpack.c.h.bf16 %v42
  %v136 = vunpack.c.l.bf16 %v43
  %v137 = vunpack.c.h.bf16 %v43
  %v138 = vunpack.c.l.bf16 %v44
  %v139 = vunpack.c.h.bf16 %v44
  %v140 = vunpack.c.l.bf16 %v45
  %v141 = vunpack.c.h.bf16 %v45
  %v142 = vunpack.c.l.bf16 %v46
  %v143 = vunpack.c.h.bf16 %v46
  %v144 = vunpack.c.l.bf16 %v47
  %v145 = vunpack.c.h.bf16 %v47
  %v146 = vunpack.c.l.bf16 %v48
  %v147 = vunpack.c.h.bf16 %v48
  %v148 = vunpack.c.l.bf16 %v49
  %v149 = vunpack.c.h.bf16 %v49
  %v150 = vunpack.c.l.bf16 %v50
  %v151 = vunpack.c.h.bf16 %v50
  %v152 = vunpack.c.l.bf16 %v51
  %v153 = vunpack.c.h.bf16 %v51
  %v154 = vunpack.c.l.bf16 %v52
  %v155 = vunpack.c.h.bf16 %v52
  %v156 = vunpack.c.l.bf16 %v53
  %v157 = vunpack.c.h.bf16 %v53
  %v158 = vunpack.c.l.bf16 %v54
  %v159 = vunpack.c.h.bf16 %v54
  %v160 = vunpack.c.l.bf16 %v55
  %v161 = vunpack.c.h.bf16 %v55
  %v162 = vunpack.c.l.bf16 %v56
  %v163 = vunpack.c.h.bf16 %v56
  %v164 = vunpack.c.l.bf16 %v57
  %v165 = vunpack.c.h.bf16 %v57
  %v166 = vunpack.c.l.bf16 %v58
  %v167 = vunpack.c.h.bf16 %v58
  %v168 = vunpack.c.l.bf16 %v59
  %v169 = vunpack.c.h.bf16 %v59
  %v170 = vunpack.c.l.bf16 %v60
  %v171 = vunpack.c.h.bf16 %v60
  %v172 = vunpack.c.l.bf16 %v61
  %v173 = vunpack.c.h.bf16 %v61
  %v174 = vunpack.c.l.bf16 %v62
  %v175 = vunpack.c.h.bf16 %v62
  %v176 = vunpack.c.l.bf16 %v63
  %v177 = vunpack.c.h.bf16 %v63
  %v178 = vunpack.c.l.bf16 %v64
  %v179 = vunpack.c.h.bf16 %v64
  %v180 = vunpack.c.l.bf16 %v65
  %v181 = vunpack.c.h.bf16 %v65
  %v182 = vunpack.c.l.bf16 %v66
  %v183 = vunpack.c.h.bf16 %v66
  %v184 = vunpack.c.l.bf16 %v67
  %v185 = vunpack.c.h.bf16 %v67
  %v186 = vunpack.c.l.bf16 %v68
  %v187 = vunpack.c.h.bf16 %v68
  %v188 = vunpack.c.l.bf16 %v69
  %v189 = vunpack.c.h.bf16 %v69
  %v190 = vunpack.c.l.bf16 %v70
  %v191 = vunpack.c.h.bf16 %v70
  %v192 = vunpack.c.l.bf16 %v71
  %v193 = vunpack.c.h.bf16 %v71
  %v194 = vunpack.c.l.bf16 %v72
  %v195 = vunpack.c.h.bf16 %v72
  %v196 = vunpack.c.l.bf16 %v73
  %v197 = vunpack.c.h.bf16 %v73
  %v198 = vunpack.c.l.bf16 %v74
  %v199 = vunpack.c.h.bf16 %v74
  %v200 = vunpack.c.l.bf16 %v75
  %v201 = vunpack.c.h.bf16 %v75
  %v202 = vunpack.c.l.bf16 %v76
  %v203 = vunpack.c.h.bf16 %v76
  %v204 = vunpack.c.l.bf16 %v77
  %v205 = vunpack.c.h.bf16 %v77
  %v206 = vld [vmem:[%s1] sm:$0xff]
  %v207 = vld [vmem:[%s1 + $0x8] sm:$0xff]
  %v208 = vld [vmem:[%s1 + $0x10] sm:$0xff]
  %v209 = vld [vmem:[%s1 + $0x18] sm:$0xff]
  %v210 = vld [vmem:[%s1 + $0x20] sm:$0xff]
  %v211 = vld [vmem:[%s1 + $0x28] sm:$0xff]
  %v212 = vld [vmem:[%s1 + $0x30] sm:$0xff]
  %v213 = vld [vmem:[%s1 + $0x38] sm:$0xff]
  %215 = vset.pattern.permute.xlu0 0
  %216 = vperm.xlu0 %215, %v206
  %v217 = vpop.permute.xlu0 %216
  %220 = vset.pattern.permute.xlu0 0
  %221 = vperm.xlu0 %220, %v207
  %v222 = vpop.permute.xlu0 %221
  %225 = vset.pattern.permute.xlu0 0
  %226 = vperm.xlu0 %225, %v208
  %v227 = vpop.permute.xlu0 %226
  %230 = vset.pattern.permute.xlu0 0
  %231 = vperm.xlu0 %230, %v209
  %v232 = vpop.permute.xlu0 %231
  %235 = vset.pattern.permute.xlu0 0
  %236 = vperm.xlu0 %235, %v210
  %v237 = vpop.permute.xlu0 %236
  %240 = vset.pattern.permute.xlu0 0
  %241 = vperm.xlu0 %240, %v211
  %v242 = vpop.permute.xlu0 %241
  %245 = vset.pattern.permute.xlu0 0
  %246 = vperm.xlu0 %245, %v212
  %v247 = vpop.permute.xlu0 %246
  %250 = vset.pattern.permute.xlu0 0
  %251 = vperm.xlu0 %250, %v213
  %v252 = vpop.permute.xlu0 %251
  %v254 = vmul.f32 %v78, %v217
  %v255 = vmul.f32 %v79, %v217
  %v256 = vmul.f32 %v80, %v217
  %v257 = vmul.f32 %v81, %v217
  %v258 = vmul.f32 %v82, %v217
  %v259 = vmul.f32 %v83, %v217
  %v260 = vmul.f32 %v84, %v217
  %v261 = vmul.f32 %v85, %v217
  %v262 = vmul.f32 %v86, %v217
  %v263 = vmul.f32 %v87, %v217
  %v264 = vmul.f32 %v88, %v217
  %v265 = vmul.f32 %v89, %v217
  %v266 = vmul.f32 %v90, %v217
  %v267 = vmul.f32 %v91, %v217
  %v268 = vmul.f32 %v92, %v217
  %v269 = vmul.f32 %v93, %v217
  %v270 = vmul.f32 %v94, %v222
  %v271 = vmul.f32 %v95, %v222
  %v272 = vmul.f32 %v96, %v222
  %v273 = vmul.f32 %v97, %v222
  %v274 = vmul.f32 %v98, %v222
  %v275 = vmul.f32 %v99, %v222
  %v276 = vmul.f32 %v100, %v222
  %v277 = vmul.f32 %v101, %v222
  %v278 = vmul.f32 %v102, %v222
  %v279 = vmul.f32 %v103, %v222
  %v280 = vmul.f32 %v104, %v222
  %v281 = vmul.f32 %v105, %v222
  %v282 = vmul.f32 %v106, %v222
  %v283 = vmul.f32 %v107, %v222
  %v284 = vmul.f32 %v108, %v222
  %v285 = vmul.f32 %v109, %v222
  %v286 = vmul.f32 %v110, %v227
  %v287 = vmul.f32 %v111, %v227
  %v288 = vmul.f32 %v112, %v227
  %v289 = vmul.f32 %v113, %v227
  %v290 = vmul.f32 %v114, %v227
  %v291 = vmul.f32 %v115, %v227
  %v292 = vmul.f32 %v116, %v227
  %v293 = vmul.f32 %v117, %v227
  %v294 = vmul.f32 %v118, %v227
  %v295 = vmul.f32 %v119, %v227
  %v296 = vmul.f32 %v120, %v227
  %v297 = vmul.f32 %v121, %v227
  %v298 = vmul.f32 %v122, %v227
  %v299 = vmul.f32 %v123, %v227
  %v300 = vmul.f32 %v124, %v227
  %v301 = vmul.f32 %v125, %v227
  %v302 = vmul.f32 %v126, %v232
  %v303 = vmul.f32 %v127, %v232
  %v304 = vmul.f32 %v128, %v232
  %v305 = vmul.f32 %v129, %v232
  %v306 = vmul.f32 %v130, %v232
  %v307 = vmul.f32 %v131, %v232
  %v308 = vmul.f32 %v132, %v232
  %v309 = vmul.f32 %v133, %v232
  %v310 = vmul.f32 %v134, %v232
  %v311 = vmul.f32 %v135, %v232
  %v312 = vmul.f32 %v136, %v232
  %v313 = vmul.f32 %v137, %v232
  %v314 = vmul.f32 %v138, %v232
  %v315 = vmul.f32 %v139, %v232
  %v316 = vmul.f32 %v140, %v232
  %v317 = vmul.f32 %v141, %v232
  %v318 = vmul.f32 %v142, %v237
  %v319 = vmul.f32 %v143, %v237
  %v320 = vmul.f32 %v144, %v237
  %v321 = vmul.f32 %v145, %v237
  %v322 = vmul.f32 %v146, %v237
  %v323 = vmul.f32 %v147, %v237
  %v324 = vmul.f32 %v148, %v237
  %v325 = vmul.f32 %v149, %v237
  %v326 = vmul.f32 %v150, %v237
  %v327 = vmul.f32 %v151, %v237
  %v328 = vmul.f32 %v152, %v237
  %v329 = vmul.f32 %v153, %v237
  %v330 = vmul.f32 %v154, %v237
  %v331 = vmul.f32 %v155, %v237
  %v332 = vmul.f32 %v156, %v237
  %v333 = vmul.f32 %v157, %v237
  %v334 = vmul.f32 %v158, %v242
  %v335 = vmul.f32 %v159, %v242
  %v336 = vmul.f32 %v160, %v242
  %v337 = vmul.f32 %v161, %v242
  %v338 = vmul.f32 %v162, %v242
  %v339 = vmul.f32 %v163, %v242
  %v340 = vmul.f32 %v164, %v242
  %v341 = vmul.f32 %v165, %v242
  %v342 = vmul.f32 %v166, %v242
  %v343 = vmul.f32 %v167, %v242
  %v344 = vmul.f32 %v168, %v242
  %v345 = vmul.f32 %v169, %v242
  %v346 = vmul.f32 %v170, %v242
  %v347 = vmul.f32 %v171, %v242
  %v348 = vmul.f32 %v172, %v242
  %v349 = vmul.f32 %v173, %v242
  %v350 = vmul.f32 %v174, %v247
  %v351 = vmul.f32 %v175, %v247
  %v352 = vmul.f32 %v176, %v247
  %v353 = vmul.f32 %v177, %v247
  %v354 = vmul.f32 %v178, %v247
  %v355 = vmul.f32 %v179, %v247
  %v356 = vmul.f32 %v180, %v247
  %v357 = vmul.f32 %v181, %v247
  %v358 = vmul.f32 %v182, %v247
  %v359 = vmul.f32 %v183, %v247
  %v360 = vmul.f32 %v184, %v247
  %v361 = vmul.f32 %v185, %v247
  %v362 = vmul.f32 %v186, %v247
  %v363 = vmul.f32 %v187, %v247
  %v364 = vmul.f32 %v188, %v247
  %v365 = vmul.f32 %v189, %v247
  %v366 = vmul.f32 %v190, %v252
  %v367 = vmul.f32 %v191, %v252
  %v368 = vmul.f32 %v192, %v252
  %v369 = vmul.f32 %v193, %v252
  %v370 = vmul.f32 %v194, %v252
  %v371 = vmul.f32 %v195, %v252
  %v372 = vmul.f32 %v196, %v252
  %v373 = vmul.f32 %v197, %v252
  %v374 = vmul.f32 %v198, %v252
  %v375 = vmul.f32 %v199, %v252
  %v376 = vmul.f32 %v200, %v252
  %v377 = vmul.f32 %v201, %v252
  %v378 = vmul.f32 %v202, %v252
  %v379 = vmul.f32 %v203, %v252
  %v380 = vmul.f32 %v204, %v252
  %v381 = vmul.f32 %v205, %v252
  %v382 = vld [vmem:[%s2] sm:$0xff]
  %v383 = vld [vmem:[%s2 + $0x8] sm:$0xff]
  %v384 = vld [vmem:[%s2 + $0x10] sm:$0xff]
  %v385 = vld [vmem:[%s2 + $0x18] sm:$0xff]
  %v386 = vld [vmem:[%s2 + $0x20] sm:$0xff]
  %v387 = vld [vmem:[%s2 + $0x28] sm:$0xff]
  %v388 = vld [vmem:[%s2 + $0x30] sm:$0xff]
  %v389 = vld [vmem:[%s2 + $0x38] sm:$0xff]
  %391 = vset.pattern.permute.xlu0 0
  %392 = vperm.xlu0 %391, %v382
  %v393 = vpop.permute.xlu0 %392
  %396 = vset.pattern.permute.xlu0 0
  %397 = vperm.xlu0 %396, %v383
  %v398 = vpop.permute.xlu0 %397
  %401 = vset.pattern.permute.xlu0 0
  %402 = vperm.xlu0 %401, %v384
  %v403 = vpop.permute.xlu0 %402
  %406 = vset.pattern.permute.xlu0 0
  %407 = vperm.xlu0 %406, %v385
  %v408 = vpop.permute.xlu0 %407
  %411 = vset.pattern.permute.xlu0 0
  %412 = vperm.xlu0 %411, %v386
  %v413 = vpop.permute.xlu0 %412
  %416 = vset.pattern.permute.xlu0 0
  %417 = vperm.xlu0 %416, %v387
  %v418 = vpop.permute.xlu0 %417
  %421 = vset.pattern.permute.xlu0 0
  %422 = vperm.xlu0 %421, %v388
  %v423 = vpop.permute.xlu0 %422
  %426 = vset.pattern.permute.xlu0 0
  %427 = vperm.xlu0 %426, %v389
  %v428 = vpop.permute.xlu0 %427
  %v430 = vadd.f32 %v254, %v393
  %v431 = vadd.f32 %v255, %v393
  %v432 = vadd.f32 %v256, %v393
  %v433 = vadd.f32 %v257, %v393
  %v434 = vadd.f32 %v258, %v393
  %v435 = vadd.f32 %v259, %v393
  %v436 = vadd.f32 %v260, %v393
  %v437 = vadd.f32 %v261, %v393
  %v438 = vadd.f32 %v262, %v393
  %v439 = vadd.f32 %v263, %v393
  %v440 = vadd.f32 %v264, %v393
  %v441 = vadd.f32 %v265, %v393
  %v442 = vadd.f32 %v266, %v393
  %v443 = vadd.f32 %v267, %v393
  %v444 = vadd.f32 %v268, %v393
  %v445 = vadd.f32 %v269, %v393
  %v446 = vadd.f32 %v270, %v398
  %v447 = vadd.f32 %v271, %v398
  %v448 = vadd.f32 %v272, %v398
  %v449 = vadd.f32 %v273, %v398
  %v450 = vadd.f32 %v274, %v398
  %v451 = vadd.f32 %v275, %v398
  %v452 = vadd.f32 %v276, %v398
  %v453 = vadd.f32 %v277, %v398
  %v454 = vadd.f32 %v278, %v398
  %v455 = vadd.f32 %v279, %v398
  %v456 = vadd.f32 %v280, %v398
  %v457 = vadd.f32 %v281, %v398
  %v458 = vadd.f32 %v282, %v398
  %v459 = vadd.f32 %v283, %v398
  %v460 = vadd.f32 %v284, %v398
  %v461 = vadd.f32 %v285, %v398
  %v462 = vadd.f32 %v286, %v403
  %v463 = vadd.f32 %v287, %v403
  %v464 = vadd.f32 %v288, %v403
  %v465 = vadd.f32 %v289, %v403
  %v466 = vadd.f32 %v290, %v403
  %v467 = vadd.f32 %v291, %v403
  %v468 = vadd.f32 %v292, %v403
  %v469 = vadd.f32 %v293, %v403
  %v470 = vadd.f32 %v294, %v403
  %v471 = vadd.f32 %v295, %v403
  %v472 = vadd.f32 %v296, %v403
  %v473 = vadd.f32 %v297, %v403
  %v474 = vadd.f32 %v298, %v403
  %v475 = vadd.f32 %v299, %v403
  %v476 = vadd.f32 %v300, %v403
  %v477 = vadd.f32 %v301, %v403
  %v478 = vadd.f32 %v302, %v408
  %v479 = vadd.f32 %v303, %v408
  %v480 = vadd.f32 %v304, %v408
  %v481 = vadd.f32 %v305, %v408
  %v482 = vadd.f32 %v306, %v408
  %v483 = vadd.f32 %v307, %v408
  %v484 = vadd.f32 %v308, %v408
  %v485 = vadd.f32 %v309, %v408
  %v486 = vadd.f32 %v310, %v408
  %v487 = vadd.f32 %v311, %v408
  %v488 = vadd.f32 %v312, %v408
  %v489 = vadd.f32 %v313, %v408
  %v490 = vadd.f32 %v314, %v408
  %v491 = vadd.f32 %v315, %v408
  %v492 = vadd.f32 %v316, %v408
  %v493 = vadd.f32 %v317, %v408
  %v494 = vadd.f32 %v318, %v413
  %v495 = vadd.f32 %v319, %v413
  %v496 = vadd.f32 %v320, %v413
  %v497 = vadd.f32 %v321, %v413
  %v498 = vadd.f32 %v322, %v413
  %v499 = vadd.f32 %v323, %v413
  %v500 = vadd.f32 %v324, %v413
  %v501 = vadd.f32 %v325, %v413
  %v502 = vadd.f32 %v326, %v413
  %v503 = vadd.f32 %v327, %v413
  %v504 = vadd.f32 %v328, %v413
  %v505 = vadd.f32 %v329, %v413
  %v506 = vadd.f32 %v330, %v413
  %v507 = vadd.f32 %v331, %v413
  %v508 = vadd.f32 %v332, %v413
  %v509 = vadd.f32 %v333, %v413
  %v510 = vadd.f32 %v334, %v418
  %v511 = vadd.f32 %v335, %v418
  %v512 = vadd.f32 %v336, %v418
  %v513 = vadd.f32 %v337, %v418
  %v514 = vadd.f32 %v338, %v418
  %v515 = vadd.f32 %v339, %v418
  %v516 = vadd.f32 %v340, %v418
  %v517 = vadd.f32 %v341, %v418
  %v518 = vadd.f32 %v342, %v418
  %v519 = vadd.f32 %v343, %v418
  %v520 = vadd.f32 %v344, %v418
  %v521 = vadd.f32 %v345, %v418
  %v522 = vadd.f32 %v346, %v418
  %v523 = vadd.f32 %v347, %v418
  %v524 = vadd.f32 %v348, %v418
  %v525 = vadd.f32 %v349, %v418
  %v526 = vadd.f32 %v350, %v423
  %v527 = vadd.f32 %v351, %v423
  %v528 = vadd.f32 %v352, %v423
  %v529 = vadd.f32 %v353, %v423
  %v530 = vadd.f32 %v354, %v423
  %v531 = vadd.f32 %v355, %v423
  %v532 = vadd.f32 %v356, %v423
  %v533 = vadd.f32 %v357, %v423
  %v534 = vadd.f32 %v358, %v423
  %v535 = vadd.f32 %v359, %v423
  %v536 = vadd.f32 %v360, %v423
  %v537 = vadd.f32 %v361, %v423
  %v538 = vadd.f32 %v362, %v423
  %v539 = vadd.f32 %v363, %v423
  %v540 = vadd.f32 %v364, %v423
  %v541 = vadd.f32 %v365, %v423
  %v542 = vadd.f32 %v366, %v428
  %v543 = vadd.f32 %v367, %v428
  %v544 = vadd.f32 %v368, %v428
  %v545 = vadd.f32 %v369, %v428
  %v546 = vadd.f32 %v370, %v428
  %v547 = vadd.f32 %v371, %v428
  %v548 = vadd.f32 %v372, %v428
  %v549 = vadd.f32 %v373, %v428
  %v550 = vadd.f32 %v374, %v428
  %v551 = vadd.f32 %v375, %v428
  %v552 = vadd.f32 %v376, %v428
  %v553 = vadd.f32 %v377, %v428
  %v554 = vadd.f32 %v378, %v428
  %v555 = vadd.f32 %v379, %v428
  %v556 = vadd.f32 %v380, %v428
  %v557 = vadd.f32 %v381, %v428
  %v558 = vmax.f32 %v430, 0.0
  %v559 = vmax.f32 %v431, 0.0
  %v560 = vmax.f32 %v432, 0.0
  %v561 = vmax.f32 %v433, 0.0
  %v562 = vmax.f32 %v434, 0.0
  %v563 = vmax.f32 %v435, 0.0
  %v564 = vmax.f32 %v436, 0.0
  %v565 = vmax.f32 %v437, 0.0
  %v566 = vmax.f32 %v438, 0.0
  %v567 = vmax.f32 %v439, 0.0
  %v568 = vmax.f32 %v440, 0.0
  %v569 = vmax.f32 %v441, 0.0
  %v570 = vmax.f32 %v442, 0.0
  %v571 = vmax.f32 %v443, 0.0
  %v572 = vmax.f32 %v444, 0.0
  %v573 = vmax.f32 %v445, 0.0
  %v574 = vmax.f32 %v446, 0.0
  %v575 = vmax.f32 %v447, 0.0
  %v576 = vmax.f32 %v448, 0.0
  %v577 = vmax.f32 %v449, 0.0
  %v578 = vmax.f32 %v450, 0.0
  %v579 = vmax.f32 %v451, 0.0
  %v580 = vmax.f32 %v452, 0.0
  %v581 = vmax.f32 %v453, 0.0
  %v582 = vmax.f32 %v454, 0.0
  %v583 = vmax.f32 %v455, 0.0
  %v584 = vmax.f32 %v456, 0.0
  %v585 = vmax.f32 %v457, 0.0
  %v586 = vmax.f32 %v458, 0.0
  %v587 = vmax.f32 %v459, 0.0
  %v588 = vmax.f32 %v460, 0.0
  %v589 = vmax.f32 %v461, 0.0
  %v590 = vmax.f32 %v462, 0.0
  %v591 = vmax.f32 %v463, 0.0
  %v592 = vmax.f32 %v464, 0.0
  %v593 = vmax.f32 %v465, 0.0
  %v594 = vmax.f32 %v466, 0.0
  %v595 = vmax.f32 %v467, 0.0
  %v596 = vmax.f32 %v468, 0.0
  %v597 = vmax.f32 %v469, 0.0
  %v598 = vmax.f32 %v470, 0.0
  %v599 = vmax.f32 %v471, 0.0
  %v600 = vmax.f32 %v472, 0.0
  %v601 = vmax.f32 %v473, 0.0
  %v602 = vmax.f32 %v474, 0.0
  %v603 = vmax.f32 %v475, 0.0
  %v604 = vmax.f32 %v476, 0.0
  %v605 = vmax.f32 %v477, 0.0
  %v606 = vmax.f32 %v478, 0.0
  %v607 = vmax.f32 %v479, 0.0
  %v608 = vmax.f32 %v480, 0.0
  %v609 = vmax.f32 %v481, 0.0
  %v610 = vmax.f32 %v482, 0.0
  %v611 = vmax.f32 %v483, 0.0
  %v612 = vmax.f32 %v484, 0.0
  %v613 = vmax.f32 %v485, 0.0
  %v614 = vmax.f32 %v486, 0.0
  %v615 = vmax.f32 %v487, 0.0
  %v616 = vmax.f32 %v488, 0.0
  %v617 = vmax.f32 %v489, 0.0
  %v618 = vmax.f32 %v490, 0.0
  %v619 = vmax.f32 %v491, 0.0
  %v620 = vmax.f32 %v492, 0.0
  %v621 = vmax.f32 %v493, 0.0
  %v622 = vmax.f32 %v494, 0.0
  %v623 = vmax.f32 %v495, 0.0
  %v624 = vmax.f32 %v496, 0.0
  %v625 = vmax.f32 %v497, 0.0
  %v626 = vmax.f32 %v498, 0.0
  %v627 = vmax.f32 %v499, 0.0
  %v628 = vmax.f32 %v500, 0.0
  %v629 = vmax.f32 %v501, 0.0
  %v630 = vmax.f32 %v502, 0.0
  %v631 = vmax.f32 %v503, 0.0
  %v632 = vmax.f32 %v504, 0.0
  %v633 = vmax.f32 %v505, 0.0
  %v634 = vmax.f32 %v506, 0.0
  %v635 = vmax.f32 %v507, 0.0
  %v636 = vmax.f32 %v508, 0.0
  %v637 = vmax.f32 %v509, 0.0
  %v638 = vmax.f32 %v510, 0.0
  %v639 = vmax.f32 %v511, 0.0
  %v640 = vmax.f32 %v512, 0.0
  %v641 = vmax.f32 %v513, 0.0
  %v642 = vmax.f32 %v514, 0.0
  %v643 = vmax.f32 %v515, 0.0
  %v644 = vmax.f32 %v516, 0.0
  %v645 = vmax.f32 %v517, 0.0
  %v646 = vmax.f32 %v518, 0.0
  %v647 = vmax.f32 %v519, 0.0
  %v648 = vmax.f32 %v520, 0.0
  %v649 = vmax.f32 %v521, 0.0
  %v650 = vmax.f32 %v522, 0.0
  %v651 = vmax.f32 %v523, 0.0
  %v652 = vmax.f32 %v524, 0.0
  %v653 = vmax.f32 %v525, 0.0
  %v654 = vmax.f32 %v526, 0.0
  %v655 = vmax.f32 %v527, 0.0
  %v656 = vmax.f32 %v528, 0.0
  %v657 = vmax.f32 %v529, 0.0
  %v658 = vmax.f32 %v530, 0.0
  %v659 = vmax.f32 %v531, 0.0
  %v660 = vmax.f32 %v532, 0.0
  %v661 = vmax.f32 %v533, 0.0
  %v662 = vmax.f32 %v534, 0.0
  %v663 = vmax.f32 %v535, 0.0
  %v664 = vmax.f32 %v536, 0.0
  %v665 = vmax.f32 %v537, 0.0
  %v666 = vmax.f32 %v538, 0.0
  %v667 = vmax.f32 %v539, 0.0
  %v668 = vmax.f32 %v540, 0.0
  %v669 = vmax.f32 %v541, 0.0
  %v670 = vmax.f32 %v542, 0.0
  %v671 = vmax.f32 %v543, 0.0
  %v672 = vmax.f32 %v544, 0.0
  %v673 = vmax.f32 %v545, 0.0
  %v674 = vmax.f32 %v546, 0.0
  %v675 = vmax.f32 %v547, 0.0
  %v676 = vmax.f32 %v548, 0.0
  %v677 = vmax.f32 %v549, 0.0
  %v678 = vmax.f32 %v550, 0.0
  %v679 = vmax.f32 %v551, 0.0
  %v680 = vmax.f32 %v552, 0.0
  %v681 = vmax.f32 %v553, 0.0
  %v682 = vmax.f32 %v554, 0.0
  %v683 = vmax.f32 %v555, 0.0
  %v684 = vmax.f32 %v556, 0.0
  %v685 = vmax.f32 %v557, 0.0
  %v686 = vmax.f32 %v558, %v559
  %v687 = vmax.f32 %v574, %v575
  %v688 = vmax.f32 %v590, %v591
  %v689 = vmax.f32 %v606, %v607
  %v690 = vmax.f32 %v622, %v623
  %v691 = vmax.f32 %v638, %v639
  %v692 = vmax.f32 %v654, %v655
  %v693 = vmax.f32 %v670, %v671
  %v694 = vmax.f32 %v686, %v560
  %v695 = vmax.f32 %v687, %v576
  %v696 = vmax.f32 %v688, %v592
  %v697 = vmax.f32 %v689, %v608
  %v698 = vmax.f32 %v690, %v624
  %v699 = vmax.f32 %v691, %v640
  %v700 = vmax.f32 %v692, %v656
  %v701 = vmax.f32 %v693, %v672
  %v702 = vmax.f32 %v694, %v561
  %v703 = vmax.f32 %v695, %v577
  %v704 = vmax.f32 %v696, %v593
  %v705 = vmax.f32 %v697, %v609
  %v706 = vmax.f32 %v698, %v625
  %v707 = vmax.f32 %v699, %v641
  %v708 = vmax.f32 %v700, %v657
  %v709 = vmax.f32 %v701, %v673
  %v710 = vmax.f32 %v702, %v562
  %v711 = vmax.f32 %v703, %v578
  %v712 = vmax.f32 %v704, %v594
  %v713 = vmax.f32 %v705, %v610
  %v714 = vmax.f32 %v706, %v626
  %v715 = vmax.f32 %v707, %v642
  %v716 = vmax.f32 %v708, %v658
  %v717 = vmax.f32 %v709, %v674
  %v718 = vmax.f32 %v710, %v563
  %v719 = vmax.f32 %v711, %v579
  %v720 = vmax.f32 %v712, %v595
  %v721 = vmax.f32 %v713, %v611
  %v722 = vmax.f32 %v714, %v627
  %v723 = vmax.f32 %v715, %v643
  %v724 = vmax.f32 %v716, %v659
  %v725 = vmax.f32 %v717, %v675
  %v726 = vmax.f32 %v718, %v564
  %v727 = vmax.f32 %v719, %v580
  %v728 = vmax.f32 %v720, %v596
  %v729 = vmax.f32 %v721, %v612
  %v730 = vmax.f32 %v722, %v628
  %v731 = vmax.f32 %v723, %v644
  %v732 = vmax.f32 %v724, %v660
  %v733 = vmax.f32 %v725, %v676
  %v734 = vmax.f32 %v726, %v565
  %v735 = vmax.f32 %v727, %v581
  %v736 = vmax.f32 %v728, %v597
  %v737 = vmax.f32 %v729, %v613
  %v738 = vmax.f32 %v730, %v629
  %v739 = vmax.f32 %v731, %v645
  %v740 = vmax.f32 %v732, %v661
  %v741 = vmax.f32 %v733, %v677
  %v742 = vmax.f32 %v734, %v566
  %v743 = vmax.f32 %v735, %v582
  %v744 = vmax.f32 %v736, %v598
  %v745 = vmax.f32 %v737, %v614
  %v746 = vmax.f32 %v738, %v630
  %v747 = vmax.f32 %v739, %v646
  %v748 = vmax.f32 %v740, %v662
  %v749 = vmax.f32 %v741, %v678
  %v750 = vmax.f32 %v742, %v567
  %v751 = vmax.f32 %v743, %v583
  %v752 = vmax.f32 %v744, %v599
  %v753 = vmax.f32 %v745, %v615
  %v754 = vmax.f32 %v746, %v631
  %v755 = vmax.f32 %v747, %v647
  %v756 = vmax.f32 %v748, %v663
  %v757 = vmax.f32 %v749, %v679
  %v758 = vmax.f32 %v750, %v568
  %v759 = vmax.f32 %v751, %v584
  %v760 = vmax.f32 %v752, %v600
  %v761 = vmax.f32 %v753, %v616
  %v762 = vmax.f32 %v754, %v632
  %v763 = vmax.f32 %v755, %v648
  %v764 = vmax.f32 %v756, %v664
  %v765 = vmax.f32 %v757, %v680
  %v766 = vmax.f32 %v758, %v569
  %v767 = vmax.f32 %v759, %v585
  %v768 = vmax.f32 %v760, %v601
  %v769 = vmax.f32 %v761, %v617
  %v770 = vmax.f32 %v762, %v633
  %v771 = vmax.f32 %v763, %v649
  %v772 = vmax.f32 %v764, %v665
  %v773 = vmax.f32 %v765, %v681
  %v774 = vmax.f32 %v766, %v570
  %v775 = vmax.f32 %v767, %v586
  %v776 = vmax.f32 %v768, %v602
  %v777 = vmax.f32 %v769, %v618
  %v778 = vmax.f32 %v770, %v634
  %v779 = vmax.f32 %v771, %v650
  %v780 = vmax.f32 %v772, %v666
  %v781 = vmax.f32 %v773, %v682
  %v782 = vmax.f32 %v774, %v571
  %v783 = vmax.f32 %v775, %v587
  %v784 = vmax.f32 %v776, %v603
  %v785 = vmax.f32 %v777, %v619
  %v786 = vmax.f32 %v778, %v635
  %v787 = vmax.f32 %v779, %v651
  %v788 = vmax.f32 %v780, %v667
  %v789 = vmax.f32 %v781, %v683
  %v790 = vmax.f32 %v782, %v572
  %v791 = vmax.f32 %v783, %v588
  %v792 = vmax.f32 %v784, %v604
  %v793 = vmax.f32 %v785, %v620
  %v794 = vmax.f32 %v786, %v636
  %v795 = vmax.f32 %v787, %v652
  %v796 = vmax.f32 %v788, %v668
  %v797 = vmax.f32 %v789, %v684
  %v798 = vmax.f32 %v790, %v573
  %v799 = vmax.f32 %v791, %v589
  %v800 = vmax.f32 %v792, %v605
  %v801 = vmax.f32 %v793, %v621
  %v802 = vmax.f32 %v794, %v637
  %v803 = vmax.f32 %v795, %v653
  %v804 = vmax.f32 %v796, %v669
  %v805 = vmax.f32 %v797, %v685
  %806 = vst [vmem:[%s3] sm:$0xff] %v798
  %807 = vst [vmem:[%s3 + $0x8] sm:$0xff] %v799
  %808 = vst [vmem:[%s3 + $0x10] sm:$0xff] %v800
  %809 = vst [vmem:[%s3 + $0x18] sm:$0xff] %v801
  %810 = vst [vmem:[%s3 + $0x20] sm:$0xff] %v802
  %811 = vst [vmem:[%s3 + $0x28] sm:$0xff] %v803
  %812 = vst [vmem:[%s3 + $0x30] sm:$0xff] %v804
  %813 = vst [vmem:[%s3 + $0x38] sm:$0xff] %v805
  // Predicated region
  $region14: #{set_abstraction_mlp.5} parent=0 // pred_check
    _
  $region15: #{set_abstraction_mlp.5} parent=0 // pred_check_branch
    %815 = sbr.rel (0) target = $region17
  $region16: #{set_abstraction_mlp.5} parent=0 // pred_region
    _
  $region17: #{set_abstraction_mlp.5} parent=0 // pred_fallthru
    _
  // Predicated region
  $region18: #{set_abstraction_mlp.5} parent=0 // pred_check
    _
  $region19: #{set_abstraction_mlp.5} parent=0 // pred_check_branch
    %817 = sbr.rel (0) target = $region21
  $region20: #{set_abstraction_mlp.5} parent=0 // pred_region
    _
  $region21: #{set_abstraction_mlp.5} parent=0 // pred_fallthru
    _

// kernel: set_abstraction_mlp.4
$region0: #{set_abstraction_mlp.4}
  #allocation0 [shape = 'u32[]', space=smem, size = 0x4, offset = 0x4, fixed_abs, tag = 'smem constant byte address 0x4 - core index']
  #allocation1 [shape = 'u32[72,128]{1,0:T(1,128)}', space=vmem, size = 0x9000, scoped, tag = 'internal scratch']
  %s0 = inlined_call_operand.vmem [shape: bf16[32,2048], index: 0, kind: input, shape index: {}]
  %s1 = inlined_call_operand.vmem [shape: f32[32,1], index: 1, kind: input, shape index: {}]
  %s2 = inlined_call_operand.vmem [shape: f32[32,1], index: 2, kind: input, shape index: {}]
  %s3 = inlined_call_operand.vmem [shape: f32[1,2048], index: 3, kind: input, shape index: {}]
  %s4 = inlined_call_operand.vmem [shape: bf16[64,32], index: 4, kind: input, shape index: {}]
  %s5 = inlined_call_operand.vmem [shape: bf16[64,2048], index: 5, kind: output, shape index: {0}]
  %s6 = inlined_call_operand.vmem [shape: f32[1,128,1], index: 6, kind: output, shape index: {1}]
  %7 = xla_tuple %s5, %s6
  %s8 = sld [smem:[#allocation0]]
  $region38: #{set_abstraction_mlp.4} parent=0
    _
  %s10 = ssub.s32 1, %s8
  %s11 = scalar_select 0, %s10, %s8
  // Predicated region
  $region2: #{set_abstraction_mlp.4} parent=0 // pred_check
    _
  $region3: #{set_abstraction_mlp.4} parent=0 // pred_check_branch
    %13 = sbr.rel (0) target = $region5
  $region4: #{set_abstraction_mlp.4} parent=0 // pred_region
    _
  $region5: #{set_abstraction_mlp.4} parent=0 // pred_fallthru
    _
  // Predicated region
  $region6: #{set_abstraction_mlp.4} parent=0 // pred_check
    _
  $region7: #{set_abstraction_mlp.4} parent=0 // pred_check_branch
    %15 = sbr.rel (0) target = $region9
  $region8: #{set_abstraction_mlp.4} parent=0 // pred_region
    _
  $region9: #{set_abstraction_mlp.4} parent=0 // pred_fallthru
    _
  // Predicated region
  $region10: #{set_abstraction_mlp.4} parent=0 // pred_check
    _
  $region11: #{set_abstraction_mlp.4} parent=0 // pred_check_branch
    %17 = sbr.rel (0) target = $region13
  $region12: #{set_abstraction_mlp.4} parent=0 // pred_region
    _
  $region13: #{set_abstraction_mlp.4} parent=0 // pred_fallthru
    _
  // Predicated region
  $region14: #{set_abstraction_mlp.4} parent=0 // pred_check
    _
  $region15: #{set_abstraction_mlp.4} parent=0 // pred_check_branch
    %19 = sbr.rel (0) target = $region17
  $region16: #{set_abstraction_mlp.4} parent=0 // pred_region
    _
  $region17: #{set_abstraction_mlp.4} parent=0 // pred_fallthru
    _
  // Predicated region
  $region18: #{set_abstraction_mlp.4} parent=0 // pred_check
    _
  $region19: #{set_abstraction_mlp.4} parent=0 // pred_check_branch
    %21 = sbr.rel (0) target = $region21
  $region20: #{set_abstraction_mlp.4} parent=0 // pred_region
    _
  $region21: #{set_abstraction_mlp.4} parent=0 // pred_fallthru
    _
  %v23 = vld [vmem:[%s0] sm:$0xff]
  %v24 = vld [vmem:[%s0 + $0x8] sm:$0xff]
  %v25 = vld [vmem:[%s0 + $0x10] sm:$0xff]
  %v26 = vld [vmem:[%s0 + $0x18] sm:$0xff]
  %v27 = vld [vmem:[%s0 + $0x20] sm:$0xff]
  %v28 = vld [vmem:[%s0 + $0x28] sm:$0xff]
  %v29 = vld [vmem:[%s0 + $0x30] sm:$0xff]
  %v30 = vld [vmem:[%s0 + $0x38] sm:$0xff]
  %v31 = vld [vmem:[%s0 + $0x40] sm:$0xff]
  %v32 = vld [vmem:[%s0 + $0x48] sm:$0xff]
  %v33 = vld [vmem:[%s0 + $0x50] sm:$0xff]
  %v34 = vld [vmem:[%s0 + $0x58] sm:$0xff]
  %v35 = vld [vmem:[%s0 + $0x60] sm:$0xff]
  %v36 = vld [vmem:[%s0 + $0x68] sm:$0xff]
  %v37 = vld [vmem:[%s0 + $0x70] sm:$0xff]
  %v38 = vld [vmem:[%s0 + $0x78] sm:$0xff]
  %v39 = vld [vmem:[%s0 + $0x80] sm:$0xff]
  %v40 = vld [vmem:[%s0 + $0x88] sm:$0xff]
  %v41 = vld [vmem:[%s0 + $0x90] sm:$0xff]
  %v42 = vld [vmem:[%s0 + $0x98] sm:$0xff]
  %v43 = vld [vmem:[%s0 + $0xa0] sm:$0xff]
  %v44 = vld [vmem:[%s0 + $0xa8] sm:$0xff]
  %v45 = vld [vmem:[%s0 + $0xb0] sm:$0xff]
  %v46 = vld [vmem:[%s0 + $0xb8] sm:$0xff]
  %v47 = vld [vmem:[%s0 + $0xc0] sm:$0xff]
  %v48 = vld [vmem:[%s0 + $0xc8] sm:$0xff]
  %v49 = vld [vmem:[%s0 + $0xd0] sm:$0xff]
  %v50 = vld [vmem:[%s0 + $0xd8] sm:$0xff]
  %v51 = vld [vmem:[%s0 + $0xe0] sm:$0xff]
  %v52 = vld [vmem:[%s0 + $0xe8] sm:$0xff]
  %v53 = vld [vmem:[%s0 + $0xf0] sm:$0xff]
  %v54 = vld [vmem:[%s0 + $0xf8] sm:$0xff]
  %v55 = vunpack.c.l.bf16 %v23
  %v56 = vunpack.c.h.bf16 %v23
  %v57 = vunpack.c.l.bf16 %v24
  %v58 = vunpack.c.h.bf16 %v24
  %v59 = vunpack.c.l.bf16 %v25
  %v60 = vunpack.c.h.bf16 %v25
  %v61 = vunpack.c.l.bf16 %v26
  %v62 = vunpack.c.h.bf16 %v26
  %v63 = vunpack.c.l.bf16 %v27
  %v64 = vunpack.c.h.bf16 %v27
  %v65 = vunpack.c.l.bf16 %v28
  %v66 = vunpack.c.h.bf16 %v28
  %v67 = vunpack.c.l.bf16 %v29
  %v68 = vunpack.c.h.bf16 %v29
  %v69 = vunpack.c.l.bf16 %v30
  %v70 = vunpack.c.h.bf16 %v30
  %v71 = vunpack.c.l.bf16 %v31
  %v72 = vunpack.c.h.bf16 %v31
  %v73 = vunpack.c.l.bf16 %v32
  %v74 = vunpack.c.h.bf16 %v32
  %v75 = vunpack.c.l.bf16 %v33
  %v76 = vunpack.c.h.bf16 %v33
  %v77 = vunpack.c.l.bf16 %v34
  %v78 = vunpack.c.h.bf16 %v34
  %v79 = vunpack.c.l.bf16 %v35
  %v80 = vunpack.c.h.bf16 %v35
  %v81 = vunpack.c.l.bf16 %v36
  %v82 = vunpack.c.h.bf16 %v36
  %v83 = vunpack.c.l.bf16 %v37
  %v84 = vunpack.c.h.bf16 %v37
  %v85 = vunpack.c.l.bf16 %v38
  %v86 = vunpack.c.h.bf16 %v38
  %v87 = vunpack.c.l.bf16 %v39
  %v88 = vunpack.c.h.bf16 %v39
  %v89 = vunpack.c.l.bf16 %v40
  %v90 = vunpack.c.h.bf16 %v40
  %v91 = vunpack.c.l.bf16 %v41
  %v92 = vunpack.c.h.bf16 %v41
  %v93 = vunpack.c.l.bf16 %v42
  %v94 = vunpack.c.h.bf16 %v42
  %v95 = vunpack.c.l.bf16 %v43
  %v96 = vunpack.c.h.bf16 %v43
  %v97 = vunpack.c.l.bf16 %v44
  %v98 = vunpack.c.h.bf16 %v44
  %v99 = vunpack.c.l.bf16 %v45
  %v100 = vunpack.c.h.bf16 %v45
  %v101 = vunpack.c.l.bf16 %v46
  %v102 = vunpack.c.h.bf16 %v46
  %v103 = vunpack.c.l.bf16 %v47
  %v104 = vunpack.c.h.bf16 %v47
  %v105 = vunpack.c.l.bf16 %v48
  %v106 = vunpack.c.h.bf16 %v48
  %v107 = vunpack.c.l.bf16 %v49
  %v108 = vunpack.c.h.bf16 %v49
  %v109 = vunpack.c.l.bf16 %v50
  %v110 = vunpack.c.h.bf16 %v50
  %v111 = vunpack.c.l.bf16 %v51
  %v112 = vunpack.c.h.bf16 %v51
  %v113 = vunpack.c.l.bf16 %v52
  %v114 = vunpack.c.h.bf16 %v52
  %v115 = vunpack.c.l.bf16 %v53
  %v116 = vunpack.c.h.bf16 %v53
  %v117 = vunpack.c.l.bf16 %v54
  %v118 = vunpack.c.h.bf16 %v54
  %v119 = vld [vmem:[%s1] sm:$0xff]
  %v120 = vld [vmem:[%s1 + $0x8] sm:$0xff]
  %v121 = vld [vmem:[%s1 + $0x10] sm:$0xff]
  %v122 = vld [vmem:[%s1 + $0x18] sm:$0xff]
  %124 = vset.pattern.permute.xlu0 0
  %125 = vperm.xlu0 %124, %v119
  %v126 = vpop.permute.xlu0 %125
  %129 = vset.pattern.permute.xlu0 0
  %130 = vperm.xlu0 %129, %v120
  %v131 = vpop.permute.xlu0 %130
  %134 = vset.pattern.permute.xlu0 0
  %135 = vperm.xlu0 %134, %v121
  %v136 = vpop.permute.xlu0 %135
  %139 = vset.pattern.permute.xlu0 0
  %140 = vperm.xlu0 %139, %v122
  %v141 = vpop.permute.xlu0 %140
  %v143 = vmul.f32 %v55, %v126
  %v144 = vmul.f32 %v56, %v126
  %v145 = vmul.f32 %v57, %v126
  %v146 = vmul.f32 %v58, %v126
  %v147 = vmul.f32 %v59, %v126
  %v148 = vmul.f32 %v60, %v126
  %v149 = vmul.f32 %v61, %v126
  %v150 = vmul.f32 %v62, %v126
  %v151 = vmul.f32 %v63, %v126
  %v152 = vmul.f32 %v64, %v126
  %v153 = vmul.f32 %v65, %v126
  %v154 = vmul.f32 %v66, %v126
  %v155 = vmul.f32 %v67, %v126
  %v156 = vmul.f32 %v68, %v126
  %v157 = vmul.f32 %v69, %v126
  %v158 = vmul.f32 %v70, %v126
  %v159 = vmul.f32 %v71, %v131
  %v160 = vmul.f32 %v72, %v131
  %v161 = vmul.f32 %v73, %v131
  %v162 = vmul.f32 %v74, %v131
  %v163 = vmul.f32 %v75, %v131
  %v164 = vmul.f32 %v76, %v131
  %v165 = vmul.f32 %v77, %v131
  %v166 = vmul.f32 %v78, %v131
  %v167 = vmul.f32 %v79, %v131
  %v168 = vmul.f32 %v80, %v131
  %v169 = vmul.f32 %v81, %v131
  %v170 = vmul.f32 %v82, %v131
  %v171 = vmul.f32 %v83, %v131
  %v172 = vmul.f32 %v84, %v131
  %v173 = vmul.f32 %v85, %v131
  %v174 = vmul.f32 %v86, %v131
  %v175 = vmul.f32 %v87, %v136
  %v176 = vmul.f32 %v88, %v136
  %v177 = vmul.f32 %v89, %v136
  %v178 = vmul.f32 %v90, %v136
  %v179 = vmul.f32 %v91, %v136
  %v180 = vmul.f32 %v92, %v136
  %v181 = vmul.f32 %v93, %v136
  %v182 = vmul.f32 %v94, %v136
  %v183 = vmul.f32 %v95, %v136
  %v184 = vmul.f32 %v96, %v136
  %v185 = vmul.f32 %v97, %v136
  %v186 = vmul.f32 %v98, %v136
  %v187 = vmul.f32 %v99, %v136
  %v188 = vmul.f32 %v100, %v136
  %v189 = vmul.f32 %v101, %v136
  %v190 = vmul.f32 %v102, %v136
  %v191 = vmul.f32 %v103, %v141
  %v192 = vmul.f32 %v104, %v141
  %v193 = vmul.f32 %v105, %v141
  %v194 = vmul.f32 %v106, %v141
  %v195 = vmul.f32 %v107, %v141
  %v196 = vmul.f32 %v108, %v141
  %v197 = vmul.f32 %v109, %v141
  %v198 = vmul.f32 %v110, %v141
  %v199 = vmul.f32 %v111, %v141
  %v200 = vmul.f32 %v112, %v141
  %v201 = vmul.f32 %v113, %v141
  %v202 = vmul.f32 %v114, %v141
  %v203 = vmul.f32 %v115, %v141
  %v204 = vmul.f32 %v116, %v141
  %v205 = vmul.f32 %v117, %v141
  %v206 = vmul.f32 %v118, %v141
  %v207 = vld [vmem:[%s2] sm:$0xff]
  %v208 = vld [vmem:[%s2 + $0x8] sm:$0xff]
  %v209 = vld [vmem:[%s2 + $0x10] sm:$0xff]
  %v210 = vld [vmem:[%s2 + $0x18] sm:$0xff]
  %212 = vset.pattern.permute.xlu0 0
  %213 = vperm.xlu0 %212, %v207
  %v214 = vpop.permute.xlu0 %213
  %217 = vset.pattern.permute.xlu0 0
  %218 = vperm.xlu0 %217, %v208
  %v219 = vpop.permute.xlu0 %218
  %222 = vset.pattern.permute.xlu0 0
  %223 = vperm.xlu0 %222, %v209
  %v224 = vpop.permute.xlu0 %223
  %227 = vset.pattern.permute.xlu0 0
  %228 = vperm.xlu0 %227, %v210
  %v229 = vpop.permute.xlu0 %228
  %v231 = vadd.f32 %v143, %v214
  %v232 = vadd.f32 %v144, %v214
  %v233 = vadd.f32 %v145, %v214
  %v234 = vadd.f32 %v146, %v214
  %v235 = vadd.f32 %v147, %v214
  %v236 = vadd.f32 %v148, %v214
  %v237 = vadd.f32 %v149, %v214
  %v238 = vadd.f32 %v150, %v214
  %v239 = vadd.f32 %v151, %v214
  %v240 = vadd.f32 %v152, %v214
  %v241 = vadd.f32 %v153, %v214
  %v242 = vadd.f32 %v154, %v214
  %v243 = vadd.f32 %v155, %v214
  %v244 = vadd.f32 %v156, %v214
  %v245 = vadd.f32 %v157, %v214
  %v246 = vadd.f32 %v158, %v214
  %v247 = vadd.f32 %v159, %v219
  %v248 = vadd.f32 %v160, %v219
  %v249 = vadd.f32 %v161, %v219
  %v250 = vadd.f32 %v162, %v219
  %v251 = vadd.f32 %v163, %v219
  %v252 = vadd.f32 %v164, %v219
  %v253 = vadd.f32 %v165, %v219
  %v254 = vadd.f32 %v166, %v219
  %v255 = vadd.f32 %v167, %v219
  %v256 = vadd.f32 %v168, %v219
  %v257 = vadd.f32 %v169, %v219
  %v258 = vadd.f32 %v170, %v219
  %v259 = vadd.f32 %v171, %v219
  %v260 = vadd.f32 %v172, %v219
  %v261 = vadd.f32 %v173, %v219
  %v262 = vadd.f32 %v174, %v219
  %v263 = vadd.f32 %v175, %v224
  %v264 = vadd.f32 %v176, %v224
  %v265 = vadd.f32 %v177, %v224
  %v266 = vadd.f32 %v178, %v224
  %v267 = vadd.f32 %v179, %v224
  %v268 = vadd.f32 %v180, %v224
  %v269 = vadd.f32 %v181, %v224
  %v270 = vadd.f32 %v182, %v224
  %v271 = vadd.f32 %v183, %v224
  %v272 = vadd.f32 %v184, %v224
  %v273 = vadd.f32 %v185, %v224
  %v274 = vadd.f32 %v186, %v224
  %v275 = vadd.f32 %v187, %v224
  %v276 = vadd.f32 %v188, %v224
  %v277 = vadd.f32 %v189, %v224
  %v278 = vadd.f32 %v190, %v224
  %v279 = vadd.f32 %v191, %v229
  %v280 = vadd.f32 %v192, %v229
  %v281 = vadd.f32 %v193, %v229
  %v282 = vadd.f32 %v194, %v229
  %v283 = vadd.f32 %v195, %v229
  %v284 = vadd.f32 %v196, %v229
  %v285 = vadd.f32 %v197, %v229
  %v286 = vadd.f32 %v198, %v229
  %v287 = vadd.f32 %v199, %v229
  %v288 = vadd.f32 %v200, %v229
  %v289 = vadd.f32 %v201, %v229
  %v290 = vadd.f32 %v202, %v229
  %v291 = vadd.f32 %v203, %v229
  %v292 = vadd.f32 %v204, %v229
  %v293 = vadd.f32 %v205, %v229
  %v294 = vadd.f32 %v206, %v229
  %v295 = vmax.f32 %v231, 0.0
  %v296 = vmax.f32 %v232, 0.0
  %v297 = vmax.f32 %v233, 0.0
  %v298 = vmax.f32 %v234, 0.0
  %v299 = vmax.f32 %v235, 0.0
  %v300 = vmax.f32 %v236, 0.0
  %v301 = vmax.f32 %v237, 0.0
  %v302 = vmax.f32 %v238, 0.0
  %v303 = vmax.f32 %v239, 0.0
  %v304 = vmax.f32 %v240, 0.0
  %v305 = vmax.f32 %v241, 0.0
  %v306 = vmax.f32 %v242, 0.0
  %v307 = vmax.f32 %v243, 0.0
  %v308 = vmax.f32 %v244, 0.0
  %v309 = vmax.f32 %v245, 0.0
  %v310 = vmax.f32 %v246, 0.0
  %v311 = vmax.f32 %v247, 0.0
  %v312 = vmax.f32 %v248, 0.0
  %v313 = vmax.f32 %v249, 0.0
  %v314 = vmax.f32 %v250, 0.0
  %v315 = vmax.f32 %v251, 0.0
  %v316 = vmax.f32 %v252, 0.0
  %v317 = vmax.f32 %v253, 0.0
  %v318 = vmax.f32 %v254, 0.0
  %v319 = vmax.f32 %v255, 0.0
  %v320 = vmax.f32 %v256, 0.0
  %v321 = vmax.f32 %v257, 0.0
  %v322 = vmax.f32 %v258, 0.0
  %v323 = vmax.f32 %v259, 0.0
  %v324 = vmax.f32 %v260, 0.0
  %v325 = vmax.f32 %v261, 0.0
  %v326 = vmax.f32 %v262, 0.0
  %v327 = vmax.f32 %v263, 0.0
  %v328 = vmax.f32 %v264, 0.0
  %v329 = vmax.f32 %v265, 0.0
  %v330 = vmax.f32 %v266, 0.0
  %v331 = vmax.f32 %v267, 0.0
  %v332 = vmax.f32 %v268, 0.0
  %v333 = vmax.f32 %v269, 0.0
  %v334 = vmax.f32 %v270, 0.0
  %v335 = vmax.f32 %v271, 0.0
  %v336 = vmax.f32 %v272, 0.0
  %v337 = vmax.f32 %v273, 0.0
  %v338 = vmax.f32 %v274, 0.0
  %v339 = vmax.f32 %v275, 0.0
  %v340 = vmax.f32 %v276, 0.0
  %v341 = vmax.f32 %v277, 0.0
  %v342 = vmax.f32 %v278, 0.0
  %v343 = vmax.f32 %v279, 0.0
  %v344 = vmax.f32 %v280, 0.0
  %v345 = vmax.f32 %v281, 0.0
  %v346 = vmax.f32 %v282, 0.0
  %v347 = vmax.f32 %v283, 0.0
  %v348 = vmax.f32 %v284, 0.0
  %v349 = vmax.f32 %v285, 0.0
  %v350 = vmax.f32 %v286, 0.0
  %v351 = vmax.f32 %v287, 0.0
  %v352 = vmax.f32 %v288, 0.0
  %v353 = vmax.f32 %v289, 0.0
  %v354 = vmax.f32 %v290, 0.0
  %v355 = vmax.f32 %v291, 0.0
  %v356 = vmax.f32 %v292, 0.0
  %v357 = vmax.f32 %v293, 0.0
  %v358 = vmax.f32 %v294, 0.0
  %v359 = vpack.c.bf16 %v311, %v295
  %v360 = vpack.c.bf16 %v312, %v296
  %v361 = vpack.c.bf16 %v313, %v297
  %v362 = vpack.c.bf16 %v314, %v298
  %v363 = vpack.c.bf16 %v315, %v299
  %v364 = vpack.c.bf16 %v316, %v300
  %v365 = vpack.c.bf16 %v317, %v301
  %v366 = vpack.c.bf16 %v318, %v302
  %v367 = vpack.c.bf16 %v319, %v303
  %v368 = vpack.c.bf16 %v320, %v304
  %v369 = vpack.c.bf16 %v321, %v305
  %v370 = vpack.c.bf16 %v322, %v306
  %v371 = vpack.c.bf16 %v323, %v307
  %v372 = vpack.c.bf16 %v324, %v308
  %v373 = vpack.c.bf16 %v325, %v309
  %v374 = vpack.c.bf16 %v326, %v310
  %v375 = vpack.c.bf16 %v343, %v327
  %v376 = vpack.c.bf16 %v344, %v328
  %v377 = vpack.c.bf16 %v345, %v329
  %v378 = vpack.c.bf16 %v346, %v330
  %v379 = vpack.c.bf16 %v347, %v331
  %v380 = vpack.c.bf16 %v348, %v332
  %v381 = vpack.c.bf16 %v349, %v333
  %v382 = vpack.c.bf16 %v350, %v334
  %v383 = vpack.c.bf16 %v351, %v335
  %v384 = vpack.c.bf16 %v352, %v336
  %v385 = vpack.c.bf16 %v353, %v337
  %v386 = vpack.c.bf16 %v354, %v338
  %v387 = vpack.c.bf16 %v355, %v339
  %v388 = vpack.c.bf16 %v356, %v340
  %v389 = vpack.c.bf16 %v357, %v341
  %v390 = vpack.c.bf16 %v358, %v342
  %v391 = vld [vmem:[%s4] sm:$0xf]
  %v392 = vld [vmem:[%s4 + $0x4] sm:$0xf]
  %v393 = vld [vmem:[%s4 + $0x8] sm:$0xf]
  %v394 = vld [vmem:[%s4 + $0xc] sm:$0xf]
  %v395 = vld [vmem:[%s4 + $0x10] sm:$0xf]
  %v396 = vld [vmem:[%s4 + $0x14] sm:$0xf]
  %v397 = vld [vmem:[%s4 + $0x18] sm:$0xf]
  %v398 = vld [vmem:[%s4 + $0x1c] sm:$0xf]
  %v407 = vunpack.c.l.b16 %v391
  %v408 = vunpack.c.l.b16 %v392
  %v409 = vunpack.c.l.b16 %v393
  %v410 = vunpack.c.l.b16 %v394
  %v411 = vunpack.c.l.b16 %v395
  %v412 = vunpack.c.l.b16 %v396
  %v413 = vunpack.c.l.b16 %v397
  %v414 = vunpack.c.l.b16 %v398
  %v415 = vpack.c.b16 %v408, %v407
  %v416 = vpack.c.b16 %v410, %v409
  %v417 = vpack.c.b16 %v412, %v411
  %v418 = vpack.c.b16 %v414, %v413
  %vm419 = vcmask 261120
  %v421 = vsel %vm419, %v415, 0
  %v424 = vsel %vm419, %v416, 0
  %v427 = vsel %vm419, %v417, 0
  %v430 = vsel %vm419, %v418, 0
  %432 = vmatpush.bf16.msra.mxu0 0
  %433 = vmatpush.bf16.msra.mxu0 0
  %434 = vmatpush.bf16.msra.mxu0 0
  %435 = vmatpush.bf16.msra.mxu0 0
  %436 = vmatpush.bf16.msra.mxu0 0
  %437 = vmatpush.bf16.msra.mxu0 0
  %438 = vmatpush.bf16.msra.mxu0 %v375
  %439 = vmatpush.bf16.msra.mxu0 %v359
  %440 = vmatmul.bf16.gmra.mxu0 %v421
  %v441 = vpop.f32.mrf.mxu0
  %v442 = vadd.f32 0.0, %v441
  %v443 = vpop.f32.mrf.mxu0
  %v444 = vadd.f32 0.0, %v443
  %445 = vmatmul.bf16.gmra.mxu0 %v424
  %v446 = vpop.f32.mrf.mxu0
  %v447 = vadd.f32 0.0, %v446
  %v448 = vpop.f32.mrf.mxu0
  %v449 = vadd.f32 0.0, %v448
  %450 = vmatmul.bf16.gmra.mxu0 %v427
  %v451 = vpop.f32.mrf.mxu0
  %v452 = vadd.f32 0.0, %v451
  %v453 = vpop.f32.mrf.mxu0
  %v454 = vadd.f32 0.0, %v453
  %455 = vmatmul.bf16.gmra.mxu0 %v430
  %v456 = vpop.f32.mrf.mxu0
  %v457 = vadd.f32 0.0, %v456
  %v458 = vpop.f32.mrf.mxu0
  %v459 = vadd.f32 0.0, %v458
  %460 = vdwg.mxu0
  %461 = vmatpush.bf16.msra.mxu0 0
  %462 = vmatpush.bf16.msra.mxu0 0
  %463 = vmatpush.bf16.msra.mxu0 0
  %464 = vmatpush.bf16.msra.mxu0 0
  %465 = vmatpush.bf16.msra.mxu0 0
  %466 = vmatpush.bf16.msra.mxu0 0
  %467 = vmatpush.bf16.msra.mxu0 %v376
  %468 = vmatpush.bf16.msra.mxu0 %v360
  %469 = vmatmul.bf16.gmra.mxu0 %v421
  %v470 = vpop.f32.mrf.mxu0
  %v471 = vadd.f32 0.0, %v470
  %v472 = vpop.f32.mrf.mxu0
  %v473 = vadd.f32 0.0, %v472
  %474 = vmatmul.bf16.gmra.mxu0 %v424
  %v475 = vpop.f32.mrf.mxu0
  %v476 = vadd.f32 0.0, %v475
  %v477 = vpop.f32.mrf.mxu0
  %v478 = vadd.f32 0.0, %v477
  %479 = vmatmul.bf16.gmra.mxu0 %v427
  %v480 = vpop.f32.mrf.mxu0
  %v481 = vadd.f32 0.0, %v480
  %v482 = vpop.f32.mrf.mxu0
  %v483 = vadd.f32 0.0, %v482
  %484 = vmatmul.bf16.gmra.mxu0 %v430
  %v485 = vpop.f32.mrf.mxu0
  %v486 = vadd.f32 0.0, %v485
  %v487 = vpop.f32.mrf.mxu0
  %v488 = vadd.f32 0.0, %v487
  %489 = vdwg.mxu0
  %490 = vmatpush.bf16.msra.mxu0 0
  %491 = vmatpush.bf16.msra.mxu0 0
  %492 = vmatpush.bf16.msra.mxu0 0
  %493 = vmatpush.bf16.msra.mxu0 0
  %494 = vmatpush.bf16.msra.mxu0 0
  %495 = vmatpush.bf16.msra.mxu0 0
  %496 = vmatpush.bf16.msra.mxu0 %v377
  %497 = vmatpush.bf16.msra.mxu0 %v361
  %498 = vmatmul.bf16.gmra.mxu0 %v421
  %v499 = vpop.f32.mrf.mxu0
  %v500 = vadd.f32 0.0, %v499
  %v501 = vpop.f32.mrf.mxu0
  %v502 = vadd.f32 0.0, %v501
  %503 = vmatmul.bf16.gmra.mxu0 %v424
  %v504 = vpop.f32.mrf.mxu0
  %v505 = vadd.f32 0.0, %v504
  %v506 = vpop.f32.mrf.mxu0
  %v507 = vadd.f32 0.0, %v506
  %508 = vmatmul.bf16.gmra.mxu0 %v427
  %v509 = vpop.f32.mrf.mxu0
  %v510 = vadd.f32 0.0, %v509
  %v511 = vpop.f32.mrf.mxu0
  %v512 = vadd.f32 0.0, %v511
  %513 = vmatmul.bf16.gmra.mxu0 %v430
  %v514 = vpop.f32.mrf.mxu0
  %v515 = vadd.f32 0.0, %v514
  %v516 = vpop.f32.mrf.mxu0
  %v517 = vadd.f32 0.0, %v516
  %518 = vdwg.mxu0
  %519 = vmatpush.bf16.msra.mxu0 0
  %520 = vmatpush.bf16.msra.mxu0 0
  %521 = vmatpush.bf16.msra.mxu0 0
  %522 = vmatpush.bf16.msra.mxu0 0
  %523 = vmatpush.bf16.msra.mxu0 0
  %524 = vmatpush.bf16.msra.mxu0 0
  %525 = vmatpush.bf16.msra.mxu0 %v378
  %526 = vmatpush.bf16.msra.mxu0 %v362
  %527 = vmatmul.bf16.gmra.mxu0 %v421
  %v528 = vpop.f32.mrf.mxu0
  %v529 = vadd.f32 0.0, %v528
  %v530 = vpop.f32.mrf.mxu0
  %v531 = vadd.f32 0.0, %v530
  %532 = vmatmul.bf16.gmra.mxu0 %v424
  %v533 = vpop.f32.mrf.mxu0
  %v534 = vadd.f32 0.0, %v533
  %v535 = vpop.f32.mrf.mxu0
  %v536 = vadd.f32 0.0, %v535
  %537 = vmatmul.bf16.gmra.mxu0 %v427
  %v538 = vpop.f32.mrf.mxu0
  %v539 = vadd.f32 0.0, %v538
  %v540 = vpop.f32.mrf.mxu0
  %v541 = vadd.f32 0.0, %v540
  %542 = vmatmul.bf16.gmra.mxu0 %v430
  %v543 = vpop.f32.mrf.mxu0
  %v544 = vadd.f32 0.0, %v543
  %v545 = vpop.f32.mrf.mxu0
  %v546 = vadd.f32 0.0, %v545
  %547 = vdwg.mxu0
  %548 = vmatpush.bf16.msra.mxu0 0
  %549 = vmatpush.bf16.msra.mxu0 0
  %550 = vmatpush.bf16.msra.mxu0 0
  %551 = vmatpush.bf16.msra.mxu0 0
  %552 = vmatpush.bf16.msra.mxu0 0
  %553 = vmatpush.bf16.msra.mxu0 0
  %554 = vmatpush.bf16.msra.mxu0 %v379
  %555 = vmatpush.bf16.msra.mxu0 %v363
  %556 = vmatmul.bf16.gmra.mxu0 %v421
  %v557 = vpop.f32.mrf.mxu0
  %v558 = vadd.f32 0.0, %v557
  %v559 = vpop.f32.mrf.mxu0
  %v560 = vadd.f32 0.0, %v559
  %561 = vmatmul.bf16.gmra.mxu0 %v424
  %v562 = vpop.f32.mrf.mxu0
  %v563 = vadd.f32 0.0, %v562
  %v564 = vpop.f32.mrf.mxu0
  %v565 = vadd.f32 0.0, %v564
  %566 = vmatmul.bf16.gmra.mxu0 %v427
  %v567 = vpop.f32.mrf.mxu0
  %v568 = vadd.f32 0.0, %v567
  %v569 = vpop.f32.mrf.mxu0
  %v570 = vadd.f32 0.0, %v569
  %571 = vmatmul.bf16.gmra.mxu0 %v430
  %v572 = vpop.f32.mrf.mxu0
  %v573 = vadd.f32 0.0, %v572
  %v574 = vpop.f32.mrf.mxu0
  %v575 = vadd.f32 0.0, %v574
  %576 = vdwg.mxu0
  %577 = vmatpush.bf16.msra.mxu0 0
  %578 = vmatpush.bf16.msra.mxu0 0
  %579 = vmatpush.bf16.msra.mxu0 0
  %580 = vmatpush.bf16.msra.mxu0 0
  %581 = vmatpush.bf16.msra.mxu0 0
  %582 = vmatpush.bf16.msra.mxu0 0
  %583 = vmatpush.bf16.msra.mxu0 %v380
  %584 = vmatpush.bf16.msra.mxu0 %v364
  %585 = vmatmul.bf16.gmra.mxu0 %v421
  %v586 = vpop.f32.mrf.mxu0
  %v587 = vadd.f32 0.0, %v586
  %v588 = vpop.f32.mrf.mxu0
  %v589 = vadd.f32 0.0, %v588
  %590 = vmatmul.bf16.gmra.mxu0 %v424
  %v591 = vpop.f32.mrf.mxu0
  %v592 = vadd.f32 0.0, %v591
  %v593 = vpop.f32.mrf.mxu0
  %v594 = vadd.f32 0.0, %v593
  %595 = vmatmul.bf16.gmra.mxu0 %v427
  %v596 = vpop.f32.mrf.mxu0
  %v597 = vadd.f32 0.0, %v596
  %v598 = vpop.f32.mrf.mxu0
  %v599 = vadd.f32 0.0, %v598
  %600 = vmatmul.bf16.gmra.mxu0 %v430
  %v601 = vpop.f32.mrf.mxu0
  %v602 = vadd.f32 0.0, %v601
  %v603 = vpop.f32.mrf.mxu0
  %v604 = vadd.f32 0.0, %v603
  %605 = vdwg.mxu0
  %606 = vmatpush.bf16.msra.mxu0 0
  %607 = vmatpush.bf16.msra.mxu0 0
  %608 = vmatpush.bf16.msra.mxu0 0
  %609 = vmatpush.bf16.msra.mxu0 0
  %610 = vmatpush.bf16.msra.mxu0 0
  %611 = vmatpush.bf16.msra.mxu0 0
  %612 = vmatpush.bf16.msra.mxu0 %v381
  %613 = vmatpush.bf16.msra.mxu0 %v365
  %614 = vmatmul.bf16.gmra.mxu0 %v421
  %v615 = vpop.f32.mrf.mxu0
  %v616 = vadd.f32 0.0, %v615
  %v617 = vpop.f32.mrf.mxu0
  %v618 = vadd.f32 0.0, %v617
  %619 = vmatmul.bf16.gmra.mxu0 %v424
  %v620 = vpop.f32.mrf.mxu0
  %v621 = vadd.f32 0.0, %v620
  %v622 = vpop.f32.mrf.mxu0
  %v623 = vadd.f32 0.0, %v622
  %624 = vmatmul.bf16.gmra.mxu0 %v427
  %v625 = vpop.f32.mrf.mxu0
  %v626 = vadd.f32 0.0, %v625
  %v627 = vpop.f32.mrf.mxu0
  %v628 = vadd.f32 0.0, %v627
  %629 = vmatmul.bf16.gmra.mxu0 %v430
  %v630 = vpop.f32.mrf.mxu0
  %v631 = vadd.f32 0.0, %v630
  %v632 = vpop.f32.mrf.mxu0
  %v633 = vadd.f32 0.0, %v632
  %634 = vdwg.mxu0
  %635 = vmatpush.bf16.msra.mxu0 0
  %636 = vmatpush.bf16.msra.mxu0 0
  %637 = vmatpush.bf16.msra.mxu0 0
  %638 = vmatpush.bf16.msra.mxu0 0
  %639 = vmatpush.bf16.msra.mxu0 0
  %640 = vmatpush.bf16.msra.mxu0 0
  %641 = vmatpush.bf16.msra.mxu0 %v382
  %642 = vmatpush.bf16.msra.mxu0 %v366
  %643 = vmatmul.bf16.gmra.mxu0 %v421
  %v644 = vpop.f32.mrf.mxu0
  %v645 = vadd.f32 0.0, %v644
  %v646 = vpop.f32.mrf.mxu0
  %v647 = vadd.f32 0.0, %v646
  %648 = vmatmul.bf16.gmra.mxu0 %v424
  %v649 = vpop.f32.mrf.mxu0
  %v650 = vadd.f32 0.0, %v649
  %v651 = vpop.f32.mrf.mxu0
  %v652 = vadd.f32 0.0, %v651
  %653 = vmatmul.bf16.gmra.mxu0 %v427
  %v654 = vpop.f32.mrf.mxu0
  %v655 = vadd.f32 0.0, %v654
  %v656 = vpop.f32.mrf.mxu0
  %v657 = vadd.f32 0.0, %v656
  %658 = vmatmul.bf16.gmra.mxu0 %v430
  %v659 = vpop.f32.mrf.mxu0
  %v660 = vadd.f32 0.0, %v659
  %v661 = vpop.f32.mrf.mxu0
  %v662 = vadd.f32 0.0, %v661
  %663 = vdwg.mxu0
  %664 = vmatpush.bf16.msra.mxu0 0
  %665 = vmatpush.bf16.msra.mxu0 0
  %666 = vmatpush.bf16.msra.mxu0 0
  %667 = vmatpush.bf16.msra.mxu0 0
  %668 = vmatpush.bf16.msra.mxu0 0
  %669 = vmatpush.bf16.msra.mxu0 0
  %670 = vmatpush.bf16.msra.mxu0 %v383
  %671 = vmatpush.bf16.msra.mxu0 %v367
  %672 = vmatmul.bf16.gmra.mxu0 %v421
  %v673 = vpop.f32.mrf.mxu0
  %v674 = vadd.f32 0.0, %v673
  %v675 = vpop.f32.mrf.mxu0
  %v676 = vadd.f32 0.0, %v675
  %677 = vmatmul.bf16.gmra.mxu0 %v424
  %v678 = vpop.f32.mrf.mxu0
  %v679 = vadd.f32 0.0, %v678
  %v680 = vpop.f32.mrf.mxu0
  %v681 = vadd.f32 0.0, %v680
  %682 = vmatmul.bf16.gmra.mxu0 %v427
  %v683 = vpop.f32.mrf.mxu0
  %v684 = vadd.f32 0.0, %v683
  %v685 = vpop.f32.mrf.mxu0
  %v686 = vadd.f32 0.0, %v685
  %687 = vmatmul.bf16.gmra.mxu0 %v430
  %v688 = vpop.f32.mrf.mxu0
  %v689 = vadd.f32 0.0, %v688
  %v690 = vpop.f32.mrf.mxu0
  %v691 = vadd.f32 0.0, %v690
  %692 = vdwg.mxu0
  %693 = vmatpush.bf16.msra.mxu0 0
  %694 = vmatpush.bf16.msra.mxu0 0
  %695 = vmatpush.bf16.msra.mxu0 0
  %696 = vmatpush.bf16.msra.mxu0 0
  %697 = vmatpush.bf16.msra.mxu0 0
  %698 = vmatpush.bf16.msra.mxu0 0
  %699 = vmatpush.bf16.msra.mxu0 %v384
  %700 = vmatpush.bf16.msra.mxu0 %v368
  %701 = vmatmul.bf16.gmra.mxu0 %v421
  %v702 = vpop.f32.mrf.mxu0
  %v703 = vadd.f32 0.0, %v702
  %v704 = vpop.f32.mrf.mxu0
  %v705 = vadd.f32 0.0, %v704
  %706 = vmatmul.bf16.gmra.mxu0 %v424
  %v707 = vpop.f32.mrf.mxu0
  %v708 = vadd.f32 0.0, %v707
  %v709 = vpop.f32.mrf.mxu0
  %v710 = vadd.f32 0.0, %v709
  %711 = vmatmul.bf16.gmra.mxu0 %v427
  %v712 = vpop.f32.mrf.mxu0
  %v713 = vadd.f32 0.0, %v712
  %v714 = vpop.f32.mrf.mxu0
  %v715 = vadd.f32 0.0, %v714
  %716 = vmatmul.bf16.gmra.mxu0 %v430
  %v717 = vpop.f32.mrf.mxu0
  %v718 = vadd.f32 0.0, %v717
  %v719 = vpop.f32.mrf.mxu0
  %v720 = vadd.f32 0.0, %v719
  %721 = vdwg.mxu0
  %722 = vmatpush.bf16.msra.mxu0 0
  %723 = vmatpush.bf16.msra.mxu0 0
  %724 = vmatpush.bf16.msra.mxu0 0
  %725 = vmatpush.bf16.msra.mxu0 0
  %726 = vmatpush.bf16.msra.mxu0 0
  %727 = vmatpush.bf16.msra.mxu0 0
  %728 = vmatpush.bf16.msra.mxu0 %v385
  %729 = vmatpush.bf16.msra.mxu0 %v369
  %730 = vmatmul.bf16.gmra.mxu0 %v421
  %v731 = vpop.f32.mrf.mxu0
  %v732 = vadd.f32 0.0, %v731
  %v733 = vpop.f32.mrf.mxu0
  %v734 = vadd.f32 0.0, %v733
  %735 = vmatmul.bf16.gmra.mxu0 %v424
  %v736 = vpop.f32.mrf.mxu0
  %v737 = vadd.f32 0.0, %v736
  %v738 = vpop.f32.mrf.mxu0
  %v739 = vadd.f32 0.0, %v738
  %740 = vmatmul.bf16.gmra.mxu0 %v427
  %v741 = vpop.f32.mrf.mxu0
  %v742 = vadd.f32 0.0, %v741
  %v743 = vpop.f32.mrf.mxu0
  %v744 = vadd.f32 0.0, %v743
  %745 = vmatmul.bf16.gmra.mxu0 %v430
  %v746 = vpop.f32.mrf.mxu0
  %v747 = vadd.f32 0.0, %v746
  %v748 = vpop.f32.mrf.mxu0
  %v749 = vadd.f32 0.0, %v748
  %750 = vdwg.mxu0
  %751 = vmatpush.bf16.msra.mxu0 0
  %752 = vmatpush.bf16.msra.mxu0 0
  %753 = vmatpush.bf16.msra.mxu0 0
  %754 = vmatpush.bf16.msra.mxu0 0
  %755 = vmatpush.bf16.msra.mxu0 0
  %756 = vmatpush.bf16.msra.mxu0 0
  %757 = vmatpush.bf16.msra.mxu0 %v386
  %758 = vmatpush.bf16.msra.mxu0 %v370
  %759 = vmatmul.bf16.gmra.mxu0 %v421
  %v760 = vpop.f32.mrf.mxu0
  %v761 = vadd.f32 0.0, %v760
  %v762 = vpop.f32.mrf.mxu0
  %v763 = vadd.f32 0.0, %v762
  %764 = vmatmul.bf16.gmra.mxu0 %v424
  %v765 = vpop.f32.mrf.mxu0
  %v766 = vadd.f32 0.0, %v765
  %v767 = vpop.f32.mrf.mxu0
  %v768 = vadd.f32 0.0, %v767
  %769 = vmatmul.bf16.gmra.mxu0 %v427
  %v770 = vpop.f32.mrf.mxu0
  %v771 = vadd.f32 0.0, %v770
  %v772 = vpop.f32.mrf.mxu0
  %v773 = vadd.f32 0.0, %v772
  %774 = vmatmul.bf16.gmra.mxu0 %v430
  %v775 = vpop.f32.mrf.mxu0
  %v776 = vadd.f32 0.0, %v775
  %v777 = vpop.f32.mrf.mxu0
  %v778 = vadd.f32 0.0, %v777
  %779 = vdwg.mxu0
  %780 = vmatpush.bf16.msra.mxu0 0
  %781 = vmatpush.bf16.msra.mxu0 0
  %782 = vmatpush.bf16.msra.mxu0 0
  %783 = vmatpush.bf16.msra.mxu0 0
  %784 = vmatpush.bf16.msra.mxu0 0
  %785 = vmatpush.bf16.msra.mxu0 0
  %786 = vmatpush.bf16.msra.mxu0 %v387
  %787 = vmatpush.bf16.msra.mxu0 %v371
  %788 = vmatmul.bf16.gmra.mxu0 %v421
  %v789 = vpop.f32.mrf.mxu0
  %v790 = vadd.f32 0.0, %v789
  %v791 = vpop.f32.mrf.mxu0
  %v792 = vadd.f32 0.0, %v791
  %793 = vmatmul.bf16.gmra.mxu0 %v424
  %v794 = vpop.f32.mrf.mxu0
  %v795 = vadd.f32 0.0, %v794
  %v796 = vpop.f32.mrf.mxu0
  %v797 = vadd.f32 0.0, %v796
  %798 = vmatmul.bf16.gmra.mxu0 %v427
  %v799 = vpop.f32.mrf.mxu0
  %v800 = vadd.f32 0.0, %v799
  %v801 = vpop.f32.mrf.mxu0
  %v802 = vadd.f32 0.0, %v801
  %803 = vmatmul.bf16.gmra.mxu0 %v430
  %v804 = vpop.f32.mrf.mxu0
  %v805 = vadd.f32 0.0, %v804
  %v806 = vpop.f32.mrf.mxu0
  %v807 = vadd.f32 0.0, %v806
  %808 = vdwg.mxu0
  %809 = vmatpush.bf16.msra.mxu0 0
  %810 = vmatpush.bf16.msra.mxu0 0
  %811 = vmatpush.bf16.msra.mxu0 0
  %812 = vmatpush.bf16.msra.mxu0 0
  %813 = vmatpush.bf16.msra.mxu0 0
  %814 = vmatpush.bf16.msra.mxu0 0
  %815 = vmatpush.bf16.msra.mxu0 %v388
  %816 = vmatpush.bf16.msra.mxu0 %v372
  %817 = vmatmul.bf16.gmra.mxu0 %v421
  %v818 = vpop.f32.mrf.mxu0
  %v819 = vadd.f32 0.0, %v818
  %v820 = vpop.f32.mrf.mxu0
  %v821 = vadd.f32 0.0, %v820
  %822 = vmatmul.bf16.gmra.mxu0 %v424
  %v823 = vpop.f32.mrf.mxu0
  %v824 = vadd.f32 0.0, %v823
  %v825 = vpop.f32.mrf.mxu0
  %v826 = vadd.f32 0.0, %v825
  %827 = vmatmul.bf16.gmra.mxu0 %v427
  %v828 = vpop.f32.mrf.mxu0
  %v829 = vadd.f32 0.0, %v828
  %v830 = vpop.f32.mrf.mxu0
  %v831 = vadd.f32 0.0, %v830
  %832 = vmatmul.bf16.gmra.mxu0 %v430
  %v833 = vpop.f32.mrf.mxu0
  %v834 = vadd.f32 0.0, %v833
  %v835 = vpop.f32.mrf.mxu0
  %v836 = vadd.f32 0.0, %v835
  %837 = vdwg.mxu0
  %838 = vmatpush.bf16.msra.mxu0 0
  %839 = vmatpush.bf16.msra.mxu0 0
  %840 = vmatpush.bf16.msra.mxu0 0
  %841 = vmatpush.bf16.msra.mxu0 0
  %842 = vmatpush.bf16.msra.mxu0 0
  %843 = vmatpush.bf16.msra.mxu0 0
  %844 = vmatpush.bf16.msra.mxu0 %v389
  %845 = vmatpush.bf16.msra.mxu0 %v373
  %846 = vmatmul.bf16.gmra.mxu0 %v421
  %v847 = vpop.f32.mrf.mxu0
  %v848 = vadd.f32 0.0, %v847
  %v849 = vpop.f32.mrf.mxu0
  %v850 = vadd.f32 0.0, %v849
  %851 = vmatmul.bf16.gmra.mxu0 %v424
  %v852 = vpop.f32.mrf.mxu0
  %v853 = vadd.f32 0.0, %v852
  %v854 = vpop.f32.mrf.mxu0
  %v855 = vadd.f32 0.0, %v854
  %856 = vmatmul.bf16.gmra.mxu0 %v427
  %v857 = vpop.f32.mrf.mxu0
  %v858 = vadd.f32 0.0, %v857
  %v859 = vpop.f32.mrf.mxu0
  %v860 = vadd.f32 0.0, %v859
  %861 = vmatmul.bf16.gmra.mxu0 %v430
  %v862 = vpop.f32.mrf.mxu0
  %v863 = vadd.f32 0.0, %v862
  %v864 = vpop.f32.mrf.mxu0
  %v865 = vadd.f32 0.0, %v864
  %866 = vdwg.mxu0
  %867 = vmatpush.bf16.msra.mxu0 0
  %868 = vmatpush.bf16.msra.mxu0 0
  %869 = vmatpush.bf16.msra.mxu0 0
  %870 = vmatpush.bf16.msra.mxu0 0
  %871 = vmatpush.bf16.msra.mxu0 0
  %872 = vmatpush.bf16.msra.mxu0 0
  %873 = vmatpush.bf16.msra.mxu0 %v390
  %874 = vmatpush.bf16.msra.mxu0 %v374
  %875 = vmatmul.bf16.gmra.mxu0 %v421
  %v876 = vpop.f32.mrf.mxu0
  %v877 = vadd.f32 0.0, %v876
  %v878 = vpop.f32.mrf.mxu0
  %v879 = vadd.f32 0.0, %v878
  %880 = vmatmul.bf16.gmra.mxu0 %v424
  %v881 = vpop.f32.mrf.mxu0
  %v882 = vadd.f32 0.0, %v881
  %v883 = vpop.f32.mrf.mxu0
  %v884 = vadd.f32 0.0, %v883
  %885 = vmatmul.bf16.gmra.mxu0 %v427
  %v886 = vpop.f32.mrf.mxu0
  %v887 = vadd.f32 0.0, %v886
  %v888 = vpop.f32.mrf.mxu0
  %v889 = vadd.f32 0.0, %v888
  %890 = vmatmul.bf16.gmra.mxu0 %v430
  %v891 = vpop.f32.mrf.mxu0
  %v892 = vadd.f32 0.0, %v891
  %v893 = vpop.f32.mrf.mxu0
  %v894 = vadd.f32 0.0, %v893
  %895 = vdwg.mxu0
  %v896 = vld [vmem:[%s3] sm:$0xff]
  %v897 = vld [vmem:[%s3 + $0x8] sm:$0xff]
  %v900 = vperm.slane %v896, 0
  %v901 = vperm.slane %v896, 1
  %v902 = vperm.slane %v896, 2
  %v903 = vperm.slane %v896, 3
  %v904 = vperm.slane %v896, 4
  %v905 = vperm.slane %v896, 5
  %v906 = vperm.slane %v896, 6
  %v907 = vperm.slane %v896, 7
  %v908 = vperm.slane %v897, 0
  %v909 = vperm.slane %v897, 1
  %v910 = vperm.slane %v897, 2
  %v911 = vperm.slane %v897, 3
  %v912 = vperm.slane %v897, 4
  %v913 = vperm.slane %v897, 5
  %v914 = vperm.slane %v897, 6
  %v915 = vperm.slane %v897, 7
  %v932 = vmul.f32 %v442, %v900
  %v933 = vmul.f32 %v471, %v901
  %v934 = vmul.f32 %v500, %v902
  %v935 = vmul.f32 %v529, %v903
  %v936 = vmul.f32 %v558, %v904
  %v937 = vmul.f32 %v587, %v905
  %v938 = vmul.f32 %v616, %v906
  %v939 = vmul.f32 %v645, %v907
  %v940 = vmul.f32 %v674, %v908
  %v941 = vmul.f32 %v703, %v909
  %v942 = vmul.f32 %v732, %v910
  %v943 = vmul.f32 %v761, %v911
  %v944 = vmul.f32 %v790, %v912
  %v945 = vmul.f32 %v819, %v913
  %v946 = vmul.f32 %v848, %v914
  %v947 = vmul.f32 %v877, %v915
  %v948 = vmul.f32 %v444, %v900
  %v949 = vmul.f32 %v473, %v901
  %v950 = vmul.f32 %v502, %v902
  %v951 = vmul.f32 %v531, %v903
  %v952 = vmul.f32 %v560, %v904
  %v953 = vmul.f32 %v589, %v905
  %v954 = vmul.f32 %v618, %v906
  %v955 = vmul.f32 %v647, %v907
  %v956 = vmul.f32 %v676, %v908
  %v957 = vmul.f32 %v705, %v909
  %v958 = vmul.f32 %v734, %v910
  %v959 = vmul.f32 %v763, %v911
  %v960 = vmul.f32 %v792, %v912
  %v961 = vmul.f32 %v821, %v913
  %v962 = vmul.f32 %v850, %v914
  %v963 = vmul.f32 %v879, %v915
  %v964 = vmul.f32 %v447, %v900
  %v965 = vmul.f32 %v476, %v901
  %v966 = vmul.f32 %v505, %v902
  %v967 = vmul.f32 %v534, %v903
  %v968 = vmul.f32 %v563, %v904
  %v969 = vmul.f32 %v592, %v905
  %v970 = vmul.f32 %v621, %v906
  %v971 = vmul.f32 %v650, %v907
  %v972 = vmul.f32 %v679, %v908
  %v973 = vmul.f32 %v708, %v909
  %v974 = vmul.f32 %v737, %v910
  %v975 = vmul.f32 %v766, %v911
  %v976 = vmul.f32 %v795, %v912
  %v977 = vmul.f32 %v824, %v913
  %v978 = vmul.f32 %v853, %v914
  %v979 = vmul.f32 %v882, %v915
  %v980 = vmul.f32 %v449, %v900
  %v981 = vmul.f32 %v478, %v901
  %v982 = vmul.f32 %v507, %v902
  %v983 = vmul.f32 %v536, %v903
  %v984 = vmul.f32 %v565, %v904
  %v985 = vmul.f32 %v594, %v905
  %v986 = vmul.f32 %v623, %v906
  %v987 = vmul.f32 %v652, %v907
  %v988 = vmul.f32 %v681, %v908
  %v989 = vmul.f32 %v710, %v909
  %v990 = vmul.f32 %v739, %v910
  %v991 = vmul.f32 %v768, %v911
  %v992 = vmul.f32 %v797, %v912
  %v993 = vmul.f32 %v826, %v913
  %v994 = vmul.f32 %v855, %v914
  %v995 = vmul.f32 %v884, %v915
  %v996 = vmul.f32 %v452, %v900
  %v997 = vmul.f32 %v481, %v901
  %v998 = vmul.f32 %v510, %v902
  %v999 = vmul.f32 %v539, %v903
  %v1000 = vmul.f32 %v568, %v904
  %v1001 = vmul.f32 %v597, %v905
  %v1002 = vmul.f32 %v626, %v906
  %v1003 = vmul.f32 %v655, %v907
  %v1004 = vmul.f32 %v684, %v908
  %v1005 = vmul.f32 %v713, %v909
  %v1006 = vmul.f32 %v742, %v910
  %v1007 = vmul.f32 %v771, %v911
  %v1008 = vmul.f32 %v800, %v912
  %v1009 = vmul.f32 %v829, %v913
  %v1010 = vmul.f32 %v858, %v914
  %v1011 = vmul.f32 %v887, %v915
  %v1012 = vmul.f32 %v454, %v900
  %v1013 = vmul.f32 %v483, %v901
  %v1014 = vmul.f32 %v512, %v902
  %v1015 = vmul.f32 %v541, %v903
  %v1016 = vmul.f32 %v570, %v904
  %v1017 = vmul.f32 %v599, %v905
  %v1018 = vmul.f32 %v628, %v906
  %v1019 = vmul.f32 %v657, %v907
  %v1020 = vmul.f32 %v686, %v908
  %v1021 = vmul.f32 %v715, %v909
  %v1022 = vmul.f32 %v744, %v910
  %v1023 = vmul.f32 %v773, %v911
  %v1024 = vmul.f32 %v802, %v912
  %v1025 = vmul.f32 %v831, %v913
  %v1026 = vmul.f32 %v860, %v914
  %v1027 = vmul.f32 %v889, %v915
  %v1028 = vmul.f32 %v457, %v900
  %v1029 = vmul.f32 %v486, %v901
  %v1030 = vmul.f32 %v515, %v902
  %v1031 = vmul.f32 %v544, %v903
  %v1032 = vmul.f32 %v573, %v904
  %v1033 = vmul.f32 %v602, %v905
  %v1034 = vmul.f32 %v631, %v906
  %v1035 = vmul.f32 %v660, %v907
  %v1036 = vmul.f32 %v689, %v908
  %v1037 = vmul.f32 %v718, %v909
  %v1038 = vmul.f32 %v747, %v910
  %v1039 = vmul.f32 %v776, %v911
  %v1040 = vmul.f32 %v805, %v912
  %v1041 = vmul.f32 %v834, %v913
  %v1042 = vmul.f32 %v863, %v914
  %v1043 = vmul.f32 %v892, %v915
  %v1044 = vmul.f32 %v459, %v900
  %v1045 = vmul.f32 %v488, %v901
  %v1046 = vmul.f32 %v517, %v902
  %v1047 = vmul.f32 %v546, %v903
  %v1048 = vmul.f32 %v575, %v904
  %v1049 = vmul.f32 %v604, %v905
  %v1050 = vmul.f32 %v633, %v906
  %v1051 = vmul.f32 %v662, %v907
  %v1052 = vmul.f32 %v691, %v908
  %v1053 = vmul.f32 %v720, %v909
  %v1054 = vmul.f32 %v749, %v910
  %v1055 = vmul.f32 %v778, %v911
  %v1056 = vmul.f32 %v807, %v912
  %v1057 = vmul.f32 %v836, %v913
  %v1058 = vmul.f32 %v865, %v914
  %v1059 = vmul.f32 %v894, %v915
  %v1060 = vpack.c.bf16 %v933, %v932
  %v1061 = vpack.c.bf16 %v935, %v934
  %v1062 = vpack.c.bf16 %v937, %v936
  %v1063 = vpack.c.bf16 %v939, %v938
  %v1064 = vpack.c.bf16 %v941, %v940
  %v1065 = vpack.c.bf16 %v943, %v942
  %v1066 = vpack.c.bf16 %v945, %v944
  %v1067 = vpack.c.bf16 %v947, %v946
  %v1068 = vpack.c.bf16 %v949, %v948
  %v1069 = vpack.c.bf16 %v951, %v950
  %v1070 = vpack.c.bf16 %v953, %v952
  %v1071 = vpack.c.bf16 %v955, %v954
  %v1072 = vpack.c.bf16 %v957, %v956
  %v1073 = vpack.c.bf16 %v959, %v958
  %v1074 = vpack.c.bf16 %v961, %v960
  %v1075 = vpack.c.bf16 %v963, %v962
  %v1076 = vpack.c.bf16 %v965, %v964
  %v1077 = vpack.c.bf16 %v967, %v966
  %v1078 = vpack.c.bf16 %v969, %v968
  %v1079 = vpack.c.bf16 %v971, %v970
  %v1080 = vpack.c.bf16 %v973, %v972
  %v1081 = vpack.c.bf16 %v975, %v974
  %v1082 = vpack.c.bf16 %v977, %v976
  %v1083 = vpack.c.bf16 %v979, %v978
  %v1084 = vpack.c.bf16 %v981, %v980
  %v1085 = vpack.c.bf16 %v983, %v982
  %v1086 = vpack.c.bf16 %v985, %v984
  %v1087 = vpack.c.bf16 %v987, %v986
  %v1088 = vpack.c.bf16 %v989, %v988
  %v1089 = vpack.c.bf16 %v991, %v990
  %v1090 = vpack.c.bf16 %v993, %v992
  %v1091 = vpack.c.bf16 %v995, %v994
  %v1092 = vpack.c.bf16 %v997, %v996
  %v1093 = vpack.c.bf16 %v999, %v998
  %v1094 = vpack.c.bf16 %v1001, %v1000
  %v1095 = vpack.c.bf16 %v1003, %v1002
  %v1096 = vpack.c.bf16 %v1005, %v1004
  %v1097 = vpack.c.bf16 %v1007, %v1006
  %v1098 = vpack.c.bf16 %v1009, %v1008
  %v1099 = vpack.c.bf16 %v1011, %v1010
  %v1100 = vpack.c.bf16 %v1013, %v1012
  %v1101 = vpack.c.bf16 %v1015, %v1014
  %v1102 = vpack.c.bf16 %v1017, %v1016
  %v1103 = vpack.c.bf16 %v1019, %v1018
  %v1104 = vpack.c.bf16 %v1021, %v1020
  %v1105 = vpack.c.bf16 %v1023, %v1022
  %v1106 = vpack.c.bf16 %v1025, %v1024
  %v1107 = vpack.c.bf16 %v1027, %v1026
  %v1108 = vpack.c.bf16 %v1029, %v1028
  %v1109 = vpack.c.bf16 %v1031, %v1030
  %v1110 = vpack.c.bf16 %v1033, %v1032
  %v1111 = vpack.c.bf16 %v1035, %v1034
  %v1112 = vpack.c.bf16 %v1037, %v1036
  %v1113 = vpack.c.bf16 %v1039, %v1038
  %v1114 = vpack.c.bf16 %v1041, %v1040
  %v1115 = vpack.c.bf16 %v1043, %v1042
  %v1116 = vpack.c.bf16 %v1045, %v1044
  %v1117 = vpack.c.bf16 %v1047, %v1046
  %v1118 = vpack.c.bf16 %v1049, %v1048
  %v1119 = vpack.c.bf16 %v1051, %v1050
  %v1120 = vpack.c.bf16 %v1053, %v1052
  %v1121 = vpack.c.bf16 %v1055, %v1054
  %v1122 = vpack.c.bf16 %v1057, %v1056
  %v1123 = vpack.c.bf16 %v1059, %v1058
  %1124 = vst [vmem:[%s5] sm:$0xff] %v1060
  %1125 = vst [vmem:[%s5 + $0x8] sm:$0xff] %v1061
  %1126 = vst [vmem:[%s5 + $0x10] sm:$0xff] %v1062
  %1127 = vst [vmem:[%s5 + $0x18] sm:$0xff] %v1063
  %1128 = vst [vmem:[%s5 + $0x20] sm:$0xff] %v1064
  %1129 = vst [vmem:[%s5 + $0x28] sm:$0xff] %v1065
  %1130 = vst [vmem:[%s5 + $0x30] sm:$0xff] %v1066
  %1131 = vst [vmem:[%s5 + $0x38] sm:$0xff] %v1067
  %1132 = vst [vmem:[%s5 + $0x40] sm:$0xff] %v1068
  %1133 = vst [vmem:[%s5 + $0x48] sm:$0xff] %v1069
  %1134 = vst [vmem:[%s5 + $0x50] sm:$0xff] %v1070
  %1135 = vst [vmem:[%s5 + $0x58] sm:$0xff] %v1071
  %1136 = vst [vmem:[%s5 + $0x60] sm:$0xff] %v1072
  %1137 = vst [vmem:[%s5 + $0x68] sm:$0xff] %v1073
  %1138 = vst [vmem:[%s5 + $0x70] sm:$0xff] %v1074
  %1139 = vst [vmem:[%s5 + $0x78] sm:$0xff] %v1075
  %1140 = vst [vmem:[%s5 + $0x80] sm:$0xff] %v1076
  %1141 = vst [vmem:[%s5 + $0x88] sm:$0xff] %v1077
  %1142 = vst [vmem:[%s5 + $0x90] sm:$0xff] %v1078
  %1143 = vst [vmem:[%s5 + $0x98] sm:$0xff] %v1079
  %1144 = vst [vmem:[%s5 + $0xa0] sm:$0xff] %v1080
  %1145 = vst [vmem:[%s5 + $0xa8] sm:$0xff] %v1081
  %1146 = vst [vmem:[%s5 + $0xb0] sm:$0xff] %v1082
  %1147 = vst [vmem:[%s5 + $0xb8] sm:$0xff] %v1083
  %1148 = vst [vmem:[%s5 + $0xc0] sm:$0xff] %v1084
  %1149 = vst [vmem:[%s5 + $0xc8] sm:$0xff] %v1085
  %1150 = vst [vmem:[%s5 + $0xd0] sm:$0xff] %v1086
  %1151 = vst [vmem:[%s5 + $0xd8] sm:$0xff] %v1087
  %1152 = vst [vmem:[%s5 + $0xe0] sm:$0xff] %v1088
  %1153 = vst [vmem:[%s5 + $0xe8] sm:$0xff] %v1089
  %1154 = vst [vmem:[%s5 + $0xf0] sm:$0xff] %v1090
  %1155 = vst [vmem:[%s5 + $0xf8] sm:$0xff] %v1091
  %1156 = vst [vmem:[%s5 + $0x100] sm:$0xff] %v1092
  %1157 = vst [vmem:[%s5 + $0x108] sm:$0xff] %v1093
  %1158 = vst [vmem:[%s5 + $0x110] sm:$0xff] %v1094
  %1159 = vst [vmem:[%s5 + $0x118] sm:$0xff] %v1095
  %1160 = vst [vmem:[%s5 + $0x120] sm:$0xff] %v1096
  %1161 = vst [vmem:[%s5 + $0x128] sm:$0xff] %v1097
  %1162 = vst [vmem:[%s5 + $0x130] sm:$0xff] %v1098
  %1163 = vst [vmem:[%s5 + $0x138] sm:$0xff] %v1099
  %1164 = vst [vmem:[%s5 + $0x140] sm:$0xff] %v1100
  %1165 = vst [vmem:[%s5 + $0x148] sm:$0xff] %v1101
  %1166 = vst [vmem:[%s5 + $0x150] sm:$0xff] %v1102
  %1167 = vst [vmem:[%s5 + $0x158] sm:$0xff] %v1103
  %1168 = vst [vmem:[%s5 + $0x160] sm:$0xff] %v1104
  %1169 = vst [vmem:[%s5 + $0x168] sm:$0xff] %v1105
  %1170 = vst [vmem:[%s5 + $0x170] sm:$0xff] %v1106
  %1171 = vst [vmem:[%s5 + $0x178] sm:$0xff] %v1107
  %1172 = vst [vmem:[%s5 + $0x180] sm:$0xff] %v1108
  %1173 = vst [vmem:[%s5 + $0x188] sm:$0xff] %v1109
  %1174 = vst [vmem:[%s5 + $0x190] sm:$0xff] %v1110
  %1175 = vst [vmem:[%s5 + $0x198] sm:$0xff] %v1111
  %1176 = vst [vmem:[%s5 + $0x1a0] sm:$0xff] %v1112
  %1177 = vst [vmem:[%s5 + $0x1a8] sm:$0xff] %v1113
  %1178 = vst [vmem:[%s5 + $0x1b0] sm:$0xff] %v1114
  %1179 = vst [vmem:[%s5 + $0x1b8] sm:$0xff] %v1115
  %1180 = vst [vmem:[%s5 + $0x1c0] sm:$0xff] %v1116
  %1181 = vst [vmem:[%s5 + $0x1c8] sm:$0xff] %v1117
  %1182 = vst [vmem:[%s5 + $0x1d0] sm:$0xff] %v1118
  %1183 = vst [vmem:[%s5 + $0x1d8] sm:$0xff] %v1119
  %1184 = vst [vmem:[%s5 + $0x1e0] sm:$0xff] %v1120
  %1185 = vst [vmem:[%s5 + $0x1e8] sm:$0xff] %v1121
  %1186 = vst [vmem:[%s5 + $0x1f0] sm:$0xff] %v1122
  %1187 = vst [vmem:[%s5 + $0x1f8] sm:$0xff] %v1123
  %v1188 = vadd.f32 %v932, %v933
  %v1189 = vadd.f32 %v1188, %v934
  %v1190 = vadd.f32 %v1189, %v935
  %v1191 = vadd.f32 %v1190, %v936
  %v1192 = vadd.f32 %v1191, %v937
  %v1193 = vadd.f32 %v1192, %v938
  %v1194 = vadd.f32 %v1193, %v939
  %v1195 = vadd.f32 %v1194, %v940
  %v1196 = vadd.f32 %v1195, %v941
  %v1197 = vadd.f32 %v1196, %v942
  %v1198 = vadd.f32 %v1197, %v943
  %v1199 = vadd.f32 %v1198, %v944
  %v1200 = vadd.f32 %v1199, %v945
  %v1201 = vadd.f32 %v1200, %v946
  %v1202 = vadd.f32 %v1201, %v947
  %1203 = vadd.xlane.f32.xlu0 %v1202
  %v1204 = vpop.xlane.xlu0 %1203
  %v1205 = vadd.f32 %v948, %v949
  %v1206 = vadd.f32 %v1205, %v950
  %v1207 = vadd.f32 %v1206, %v951
  %v1208 = vadd.f32 %v1207, %v952
  %v1209 = vadd.f32 %v1208, %v953
  %v1210 = vadd.f32 %v1209, %v954
  %v1211 = vadd.f32 %v1210, %v955
  %v1212 = vadd.f32 %v1211, %v956
  %v1213 = vadd.f32 %v1212, %v957
  %v1214 = vadd.f32 %v1213, %v958
  %v1215 = vadd.f32 %v1214, %v959
  %v1216 = vadd.f32 %v1215, %v960
  %v1217 = vadd.f32 %v1216, %v961
  %v1218 = vadd.f32 %v1217, %v962
  %v1219 = vadd.f32 %v1218, %v963
  %1220 = vadd.xlane.f32.xlu0 %v1219
  %v1221 = vpop.xlane.xlu0 %1220
  %v1222 = vadd.f32 %v964, %v965
  %v1223 = vadd.f32 %v1222, %v966
  %v1224 = vadd.f32 %v1223, %v967
  %v1225 = vadd.f32 %v1224, %v968
  %v1226 = vadd.f32 %v1225, %v969
  %v1227 = vadd.f32 %v1226, %v970
  %v1228 = vadd.f32 %v1227, %v971
  %v1229 = vadd.f32 %v1228, %v972
  %v1230 = vadd.f32 %v1229, %v973
  %v1231 = vadd.f32 %v1230, %v974
  %v1232 = vadd.f32 %v1231, %v975
  %v1233 = vadd.f32 %v1232, %v976
  %v1234 = vadd.f32 %v1233, %v977
  %v1235 = vadd.f32 %v1234, %v978
  %v1236 = vadd.f32 %v1235, %v979
  %1237 = vadd.xlane.f32.xlu0 %v1236
  %v1238 = vpop.xlane.xlu0 %1237
  %v1239 = vadd.f32 %v980, %v981
  %v1240 = vadd.f32 %v1239, %v982
  %v1241 = vadd.f32 %v1240, %v983
  %v1242 = vadd.f32 %v1241, %v984
  %v1243 = vadd.f32 %v1242, %v985
  %v1244 = vadd.f32 %v1243, %v986
  %v1245 = vadd.f32 %v1244, %v987
  %v1246 = vadd.f32 %v1245, %v988
  %v1247 = vadd.f32 %v1246, %v989
  %v1248 = vadd.f32 %v1247, %v990
  %v1249 = vadd.f32 %v1248, %v991
  %v1250 = vadd.f32 %v1249, %v992
  %v1251 = vadd.f32 %v1250, %v993
  %v1252 = vadd.f32 %v1251, %v994
  %v1253 = vadd.f32 %v1252, %v995
  %1254 = vadd.xlane.f32.xlu0 %v1253
  %v1255 = vpop.xlane.xlu0 %1254
  %v1256 = vadd.f32 %v996, %v997
  %v1257 = vadd.f32 %v1256, %v998
  %v1258 = vadd.f32 %v1257, %v999
  %v1259 = vadd.f32 %v1258, %v1000
  %v1260 = vadd.f32 %v1259, %v1001
  %v1261 = vadd.f32 %v1260, %v1002
  %v1262 = vadd.f32 %v1261, %v1003
  %v1263 = vadd.f32 %v1262, %v1004
  %v1264 = vadd.f32 %v1263, %v1005
  %v1265 = vadd.f32 %v1264, %v1006
  %v1266 = vadd.f32 %v1265, %v1007
  %v1267 = vadd.f32 %v1266, %v1008
  %v1268 = vadd.f32 %v1267, %v1009
  %v1269 = vadd.f32 %v1268, %v1010
  %v1270 = vadd.f32 %v1269, %v1011
  %1271 = vadd.xlane.f32.xlu0 %v1270
  %v1272 = vpop.xlane.xlu0 %1271
  %v1273 = vadd.f32 %v1012, %v1013
  %v1274 = vadd.f32 %v1273, %v1014
  %v1275 = vadd.f32 %v1274, %v1015
  %v1276 = vadd.f32 %v1275, %v1016
  %v1277 = vadd.f32 %v1276, %v1017
  %v1278 = vadd.f32 %v1277, %v1018
  %v1279 = vadd.f32 %v1278, %v1019
  %v1280 = vadd.f32 %v1279, %v1020
  %v1281 = vadd.f32 %v1280, %v1021
  %v1282 = vadd.f32 %v1281, %v1022
  %v1283 = vadd.f32 %v1282, %v1023
  %v1284 = vadd.f32 %v1283, %v1024
  %v1285 = vadd.f32 %v1284, %v1025
  %v1286 = vadd.f32 %v1285, %v1026
  %v1287 = vadd.f32 %v1286, %v1027
  %1288 = vadd.xlane.f32.xlu0 %v1287
  %v1289 = vpop.xlane.xlu0 %1288
  %v1290 = vadd.f32 %v1028, %v1029
  %v1291 = vadd.f32 %v1290, %v1030
  %v1292 = vadd.f32 %v1291, %v1031
  %v1293 = vadd.f32 %v1292, %v1032
  %v1294 = vadd.f32 %v1293, %v1033
  %v1295 = vadd.f32 %v1294, %v1034
  %v1296 = vadd.f32 %v1295, %v1035
  %v1297 = vadd.f32 %v1296, %v1036
  %v1298 = vadd.f32 %v1297, %v1037
  %v1299 = vadd.f32 %v1298, %v1038
  %v1300 = vadd.f32 %v1299, %v1039
  %v1301 = vadd.f32 %v1300, %v1040
  %v1302 = vadd.f32 %v1301, %v1041
  %v1303 = vadd.f32 %v1302, %v1042
  %v1304 = vadd.f32 %v1303, %v1043
  %1305 = vadd.xlane.f32.xlu0 %v1304
  %v1306 = vpop.xlane.xlu0 %1305
  %v1307 = vadd.f32 %v1044, %v1045
  %v1308 = vadd.f32 %v1307, %v1046
  %v1309 = vadd.f32 %v1308, %v1047
  %v1310 = vadd.f32 %v1309, %v1048
  %v1311 = vadd.f32 %v1310, %v1049
  %v1312 = vadd.f32 %v1311, %v1050
  %v1313 = vadd.f32 %v1312, %v1051
  %v1314 = vadd.f32 %v1313, %v1052
  %v1315 = vadd.f32 %v1314, %v1053
  %v1316 = vadd.f32 %v1315, %v1054
  %v1317 = vadd.f32 %v1316, %v1055
  %v1318 = vadd.f32 %v1317, %v1056
  %v1319 = vadd.f32 %v1318, %v1057
  %v1320 = vadd.f32 %v1319, %v1058
  %v1321 = vadd.f32 %v1320, %v1059
  %1322 = vadd.xlane.f32.xlu0 %v1321
  %v1323 = vpop.xlane.xlu0 %1322
  %v1324 = vmul.f32 %v932, %v932
  %v1325 = vmul.f32 %v933, %v933
  %v1326 = vmul.f32 %v934, %v934
  %v1327 = vmul.f32 %v935, %v935
  %v1328 = vmul.f32 %v936, %v936
  %v1329 = vmul.f32 %v937, %v937
  %v1330 = vmul.f32 %v938, %v938
  %v1331 = vmul.f32 %v939, %v939
  %v1332 = vmul.f32 %v940, %v940
  %v1333 = vmul.f32 %v941, %v941
  %v1334 = vmul.f32 %v942, %v942
  %v1335 = vmul.f32 %v943, %v943
  %v1336 = vmul.f32 %v944, %v944
  %v1337 = vmul.f32 %v945, %v945
  %v1338 = vmul.f32 %v946, %v946
  %v1339 = vmul.f32 %v947, %v947
  %v1340 = vmul.f32 %v948, %v948
  %v1341 = vmul.f32 %v949, %v949
  %v1342 = vmul.f32 %v950, %v950
  %v1343 = vmul.f32 %v951, %v951
  %v1344 = vmul.f32 %v952, %v952
  %v1345 = vmul.f32 %v953, %v953
  %v1346 = vmul.f32 %v954, %v954
  %v1347 = vmul.f32 %v955, %v955
  %v1348 = vmul.f32 %v956, %v956
  %v1349 = vmul.f32 %v957, %v957
  %v1350 = vmul.f32 %v958, %v958
  %v1351 = vmul.f32 %v959, %v959
  %v1352 = vmul.f32 %v960, %v960
  %v1353 = vmul.f32 %v961, %v961
  %v1354 = vmul.f32 %v962, %v962
  %v1355 = vmul.f32 %v963, %v963
  %v1356 = vmul.f32 %v964, %v964
  %v1357 = vmul.f32 %v965, %v965
  %v1358 = vmul.f32 %v966, %v966
  %v1359 = vmul.f32 %v967, %v967
  %v1360 = vmul.f32 %v968, %v968
  %v1361 = vmul.f32 %v969, %v969
  %v1362 = vmul.f32 %v970, %v970
  %v1363 = vmul.f32 %v971, %v971
  %v1364 = vmul.f32 %v972, %v972
  %v1365 = vmul.f32 %v973, %v973
  %v1366 = vmul.f32 %v974, %v974
  %v1367 = vmul.f32 %v975, %v975
  %v1368 = vmul.f32 %v976, %v976
  %v1369 = vmul.f32 %v977, %v977
  %v1370 = vmul.f32 %v978, %v978
  %v1371 = vmul.f32 %v979, %v979
  %v1372 = vmul.f32 %v980, %v980
  %v1373 = vmul.f32 %v981, %v981
  %v1374 = vmul.f32 %v982, %v982
  %v1375 = vmul.f32 %v983, %v983
  %v1376 = vmul.f32 %v984, %v984
  %v1377 = vmul.f32 %v985, %v985
  %v1378 = vmul.f32 %v986, %v986
  %v1379 = vmul.f32 %v987, %v987
  %v1380 = vmul.f32 %v988, %v988
  %v1381 = vmul.f32 %v989, %v989
  %v1382 = vmul.f32 %v990, %v990
  %v1383 = vmul.f32 %v991, %v991
  %v1384 = vmul.f32 %v992, %v992
  %v1385 = vmul.f32 %v993, %v993
  %v1386 = vmul.f32 %v994, %v994
  %v1387 = vmul.f32 %v995, %v995
  %v1388 = vmul.f32 %v996, %v996
  %v1389 = vmul.f32 %v997, %v997
  %v1390 = vmul.f32 %v998, %v998
  %v1391 = vmul.f32 %v999, %v999
  %v1392 = vmul.f32 %v1000, %v1000
  %v1393 = vmul.f32 %v1001, %v1001
  %v1394 = vmul.f32 %v1002, %v1002
  %v1395 = vmul.f32 %v1003, %v1003
  %v1396 = vmul.f32 %v1004, %v1004
  %v1397 = vmul.f32 %v1005, %v1005
  %v1398 = vmul.f32 %v1006, %v1006
  %v1399 = vmul.f32 %v1007, %v1007
  %v1400 = vmul.f32 %v1008, %v1008
  %v1401 = vmul.f32 %v1009, %v1009
  %v1402 = vmul.f32 %v1010, %v1010
  %v1403 = vmul.f32 %v1011, %v1011
  %v1404 = vmul.f32 %v1012, %v1012
  %v1405 = vmul.f32 %v1013, %v1013
  %v1406 = vmul.f32 %v1014, %v1014
  %v1407 = vmul.f32 %v1015, %v1015
  %v1408 = vmul.f32 %v1016, %v1016
  %v1409 = vmul.f32 %v1017, %v1017
  %v1410 = vmul.f32 %v1018, %v1018
  %v1411 = vmul.f32 %v1019, %v1019
  %v1412 = vmul.f32 %v1020, %v1020
  %v1413 = vmul.f32 %v1021, %v1021
  %v1414 = vmul.f32 %v1022, %v1022
  %v1415 = vmul.f32 %v1023, %v1023
  %v1416 = vmul.f32 %v1024, %v1024
  %v1417 = vmul.f32 %v1025, %v1025
  %v1418 = vmul.f32 %v1026, %v1026
  %v1419 = vmul.f32 %v1027, %v1027
  %v1420 = vmul.f32 %v1028, %v1028
  %v1421 = vmul.f32 %v1029, %v1029
  %v1422 = vmul.f32 %v1030, %v1030
  %v1423 = vmul.f32 %v1031, %v1031
  %v1424 = vmul.f32 %v1032, %v1032
  %v1425 = vmul.f32 %v1033, %v1033
  %v1426 = vmul.f32 %v1034, %v1034
  %v1427 = vmul.f32 %v1035, %v1035
  %v1428 = vmul.f32 %v1036, %v1036
  %v1429 = vmul.f32 %v1037, %v1037
  %v1430 = vmul.f32 %v1038, %v1038
  %v1431 = vmul.f32 %v1039, %v1039
  %v1432 = vmul.f32 %v1040, %v1040
  %v1433 = vmul.f32 %v1041, %v1041
  %v1434 = vmul.f32 %v1042, %v1042
  %v1435 = vmul.f32 %v1043, %v1043
  %v1436 = vmul.f32 %v1044, %v1044
  %v1437 = vmul.f32 %v1045, %v1045
  %v1438 = vmul.f32 %v1046, %v1046
  %v1439 = vmul.f32 %v1047, %v1047
  %v1440 = vmul.f32 %v1048, %v1048
  %v1441 = vmul.f32 %v1049, %v1049
  %v1442 = vmul.f32 %v1050, %v1050
  %v1443 = vmul.f32 %v1051, %v1051
  %v1444 = vmul.f32 %v1052, %v1052
  %v1445 = vmul.f32 %v1053, %v1053
  %v1446 = vmul.f32 %v1054, %v1054
  %v1447 = vmul.f32 %v1055, %v1055
  %v1448 = vmul.f32 %v1056, %v1056
  %v1449 = vmul.f32 %v1057, %v1057
  %v1450 = vmul.f32 %v1058, %v1058
  %v1451 = vmul.f32 %v1059, %v1059
  %v1452 = vadd.f32 %v1324, %v1325
  %v1453 = vadd.f32 %v1452, %v1326
  %v1454 = vadd.f32 %v1453, %v1327
  %v1455 = vadd.f32 %v1454, %v1328
  %v1456 = vadd.f32 %v1455, %v1329
  %v1457 = vadd.f32 %v1456, %v1330
  %v1458 = vadd.f32 %v1457, %v1331
  %v1459 = vadd.f32 %v1458, %v1332
  %v1460 = vadd.f32 %v1459, %v1333
  %v1461 = vadd.f32 %v1460, %v1334
  %v1462 = vadd.f32 %v1461, %v1335
  %v1463 = vadd.f32 %v1462, %v1336
  %v1464 = vadd.f32 %v1463, %v1337
  %v1465 = vadd.f32 %v1464, %v1338
  %v1466 = vadd.f32 %v1465, %v1339
  %1467 = vadd.xlane.f32.xlu0 %v1466
  %v1468 = vpop.xlane.xlu0 %1467
  %v1469 = vadd.f32 %v1340, %v1341
  %v1470 = vadd.f32 %v1469, %v1342
  %v1471 = vadd.f32 %v1470, %v1343
  %v1472 = vadd.f32 %v1471, %v1344
  %v1473 = vadd.f32 %v1472, %v1345
  %v1474 = vadd.f32 %v1473, %v1346
  %v1475 = vadd.f32 %v1474, %v1347
  %v1476 = vadd.f32 %v1475, %v1348
  %v1477 = vadd.f32 %v1476, %v1349
  %v1478 = vadd.f32 %v1477, %v1350
  %v1479 = vadd.f32 %v1478, %v1351
  %v1480 = vadd.f32 %v1479, %v1352
  %v1481 = vadd.f32 %v1480, %v1353
  %v1482 = vadd.f32 %v1481, %v1354
  %v1483 = vadd.f32 %v1482, %v1355
  %1484 = vadd.xlane.f32.xlu0 %v1483
  %v1485 = vpop.xlane.xlu0 %1484
  %v1486 = vadd.f32 %v1356, %v1357
  %v1487 = vadd.f32 %v1486, %v1358
  %v1488 = vadd.f32 %v1487, %v1359
  %v1489 = vadd.f32 %v1488, %v1360
  %v1490 = vadd.f32 %v1489, %v1361
  %v1491 = vadd.f32 %v1490, %v1362
  %v1492 = vadd.f32 %v1491, %v1363
  %v1493 = vadd.f32 %v1492, %v1364
  %v1494 = vadd.f32 %v1493, %v1365
  %v1495 = vadd.f32 %v1494, %v1366
  %v1496 = vadd.f32 %v1495, %v1367
  %v1497 = vadd.f32 %v1496, %v1368
  %v1498 = vadd.f32 %v1497, %v1369
  %v1499 = vadd.f32 %v1498, %v1370
  %v1500 = vadd.f32 %v1499, %v1371
  %1501 = vadd.xlane.f32.xlu0 %v1500
  %v1502 = vpop.xlane.xlu0 %1501
  %v1503 = vadd.f32 %v1372, %v1373
  %v1504 = vadd.f32 %v1503, %v1374
  %v1505 = vadd.f32 %v1504, %v1375
  %v1506 = vadd.f32 %v1505, %v1376
  %v1507 = vadd.f32 %v1506, %v1377
  %v1508 = vadd.f32 %v1507, %v1378
  %v1509 = vadd.f32 %v1508, %v1379
  %v1510 = vadd.f32 %v1509, %v1380
  %v1511 = vadd.f32 %v1510, %v1381
  %v1512 = vadd.f32 %v1511, %v1382
  %v1513 = vadd.f32 %v1512, %v1383
  %v1514 = vadd.f32 %v1513, %v1384
  %v1515 = vadd.f32 %v1514, %v1385
  %v1516 = vadd.f32 %v1515, %v1386
  %v1517 = vadd.f32 %v1516, %v1387
  %1518 = vadd.xlane.f32.xlu0 %v1517
  %v1519 = vpop.xlane.xlu0 %1518
  %v1520 = vadd.f32 %v1388, %v1389
  %v1521 = vadd.f32 %v1520, %v1390
  %v1522 = vadd.f32 %v1521, %v1391
  %v1523 = vadd.f32 %v1522, %v1392
  %v1524 = vadd.f32 %v1523, %v1393
  %v1525 = vadd.f32 %v1524, %v1394
  %v1526 = vadd.f32 %v1525, %v1395
  %v1527 = vadd.f32 %v1526, %v1396
  %v1528 = vadd.f32 %v1527, %v1397
  %v1529 = vadd.f32 %v1528, %v1398
  %v1530 = vadd.f32 %v1529, %v1399
  %v1531 = vadd.f32 %v1530, %v1400
  %v1532 = vadd.f32 %v1531, %v1401
  %v1533 = vadd.f32 %v1532, %v1402
  %v1534 = vadd.f32 %v1533, %v1403
  %1535 = vadd.xlane.f32.xlu0 %v1534
  %v1536 = vpop.xlane.xlu0 %1535
  %v1537 = vadd.f32 %v1404, %v1405
  %v1538 = vadd.f32 %v1537, %v1406
  %v1539 = vadd.f32 %v1538, %v1407
  %v1540 = vadd.f32 %v1539, %v1408
  %v1541 = vadd.f32 %v1540, %v1409
  %v1542 = vadd.f32 %v1541, %v1410
  %v1543 = vadd.f32 %v1542, %v1411
  %v1544 = vadd.f32 %v1543, %v1412
  %v1545 = vadd.f32 %v1544, %v1413
  %v1546 = vadd.f32 %v1545, %v1414
  %v1547 = vadd.f32 %v1546, %v1415
  %v1548 = vadd.f32 %v1547, %v1416
  %v1549 = vadd.f32 %v1548, %v1417
  %v1550 = vadd.f32 %v1549, %v1418
  %v1551 = vadd.f32 %v1550, %v1419
  %1552 = vadd.xlane.f32.xlu0 %v1551
  %v1553 = vpop.xlane.xlu0 %1552
  %v1554 = vadd.f32 %v1420, %v1421
  %v1555 = vadd.f32 %v1554, %v1422
  %v1556 = vadd.f32 %v1555, %v1423
  %v1557 = vadd.f32 %v1556, %v1424
  %v1558 = vadd.f32 %v1557, %v1425
  %v1559 = vadd.f32 %v1558, %v1426
  %v1560 = vadd.f32 %v1559, %v1427
  %v1561 = vadd.f32 %v1560, %v1428
  %v1562 = vadd.f32 %v1561, %v1429
  %v1563 = vadd.f32 %v1562, %v1430
  %v1564 = vadd.f32 %v1563, %v1431
  %v1565 = vadd.f32 %v1564, %v1432
  %v1566 = vadd.f32 %v1565, %v1433
  %v1567 = vadd.f32 %v1566, %v1434
  %v1568 = vadd.f32 %v1567, %v1435
  %1569 = vadd.xlane.f32.xlu0 %v1568
  %v1570 = vpop.xlane.xlu0 %1569
  %v1571 = vadd.f32 %v1436, %v1437
  %v1572 = vadd.f32 %v1571, %v1438
  %v1573 = vadd.f32 %v1572, %v1439
  %v1574 = vadd.f32 %v1573, %v1440
  %v1575 = vadd.f32 %v1574, %v1441
  %v1576 = vadd.f32 %v1575, %v1442
  %v1577 = vadd.f32 %v1576, %v1443
  %v1578 = vadd.f32 %v1577, %v1444
  %v1579 = vadd.f32 %v1578, %v1445
  %v1580 = vadd.f32 %v1579, %v1446
  %v1581 = vadd.f32 %v1580, %v1447
  %v1582 = vadd.f32 %v1581, %v1448
  %v1583 = vadd.f32 %v1582, %v1449
  %v1584 = vadd.f32 %v1583, %v1450
  %v1585 = vadd.f32 %v1584, %v1451
  %1586 = vadd.xlane.f32.xlu0 %v1585
  %v1587 = vpop.xlane.xlu0 %1586
  %vm1588 = vcmask 7168
  %1589 = vst.msk [vmem:[%s6] sm:$0xff] %vm1588, %v1204
  %1590 = vst.msk [vmem:[%s6 + $0x8] sm:$0xff] %vm1588, %v1221
  %1591 = vst.msk [vmem:[%s6 + $0x10] sm:$0xff] %vm1588, %v1238
  %1592 = vst.msk [vmem:[%s6 + $0x18] sm:$0xff] %vm1588, %v1255
  %1593 = vst.msk [vmem:[%s6 + $0x20] sm:$0xff] %vm1588, %v1272
  %1594 = vst.msk [vmem:[%s6 + $0x28] sm:$0xff] %vm1588, %v1289
  %1595 = vst.msk [vmem:[%s6 + $0x30] sm:$0xff] %vm1588, %v1306
  %1596 = vst.msk [vmem:[%s6 + $0x38] sm:$0xff] %vm1588, %v1323
  %1597 = vst.msk [vmem:[%s6 + $0x40] sm:$0xff] %vm1588, %v1468
  %1598 = vst.msk [vmem:[%s6 + $0x48] sm:$0xff] %vm1588, %v1485
  %1599 = vst.msk [vmem:[%s6 + $0x50] sm:$0xff] %vm1588, %v1502
  %1600 = vst.msk [vmem:[%s6 + $0x58] sm:$0xff] %vm1588, %v1519
  %1601 = vst.msk [vmem:[%s6 + $0x60] sm:$0xff] %vm1588, %v1536
  %1602 = vst.msk [vmem:[%s6 + $0x68] sm:$0xff] %vm1588, %v1553
  %1603 = vst.msk [vmem:[%s6 + $0x70] sm:$0xff] %vm1588, %v1570
  %1604 = vst.msk [vmem:[%s6 + $0x78] sm:$0xff] %vm1588, %v1587
  // Predicated region
  $region22: #{set_abstraction_mlp.4} parent=0 // pred_check
    _
  $region23: #{set_abstraction_mlp.4} parent=0 // pred_check_branch
    %1606 = sbr.rel (0) target = $region25
  $region24: #{set_abstraction_mlp.4} parent=0 // pred_region
    _
  $region25: #{set_abstraction_mlp.4} parent=0 // pred_fallthru
    _
  // Predicated region
  $region26: #{set_abstraction_mlp.4} parent=0 // pred_check
    _
  $region27: #{set_abstraction_mlp.4} parent=0 // pred_check_branch
    %1608 = sbr.rel (0) target = $region29
  $region28: #{set_abstraction_mlp.4} parent=0 // pred_region
    _
  $region29: #{set_abstraction_mlp.4} parent=0 // pred_fallthru
    _
  // Predicated region
  $region30: #{set_abstraction_mlp.4} parent=0 // pred_check
    _
  $region31: #{set_abstraction_mlp.4} parent=0 // pred_check_branch
    %1610 = sbr.rel (0) target = $region33
  $region32: #{set_abstraction_mlp.4} parent=0 // pred_region
    _
  $region33: #{set_abstraction_mlp.4} parent=0 // pred_fallthru
    _
  // Predicated region
  $region34: #{set_abstraction_mlp.4} parent=0 // pred_check
    _
  $region35: #{set_abstraction_mlp.4} parent=0 // pred_check_branch
    %1612 = sbr.rel (0) target = $region37
  $region36: #{set_abstraction_mlp.4} parent=0 // pred_region
    _
  $region37: #{set_abstraction_mlp.4} parent=0 // pred_fallthru
    _

</llo_original>
